<compile_context>
chip_gen: v7x
topology: tpu7x:2x2x1
jax: 0.10.0
libtpu: 0.0.40
codegen_flags: <defaults>
</compile_context>

<pallas_src>
import jax
import jax.numpy as jnp
import numpy as np
from jax.experimental import pallas as pl
from jax.experimental.pallas import tpu as pltpu

# problem sizes (M = encoder hidden, P = decoder hidden, T = decoder steps)
M = 32
P = 32
T = 8
B = 8


# ----------------------------------------------------------------------------
# Pallas kernel: entire decoder recurrence for one batch block
# ----------------------------------------------------------------------------
def _decoder_kernel(y1_ref, epg_ref, epy_ref, y_ref,        # batched, pre-projected
                    wdd_ref, wds_ref, bd_ref, vd_ref,       # W_d split (bf16), bias, block-diag v_d (bf16)
                    wyg_ref, whh_ref, bg_ref,               # fused gate weights: y part, hh (bf16), bias
                    wdec_ref, bdec_ref,                     # W_dec rows P.. (bf16) + bias
                    wyd_ref, by_ref,                        # W_y: d part (bf16), bias
                    vy_ref, vyb_ref,                        # v_y (bf16), bias
                    out_ref,
                    dt_ref):                                # scratch: (B, T*P) d history (store-only)
    Bk = y1_ref.shape[0]
    Pk = wyd_ref.shape[0]
    Tk = vd_ref.shape[1]
    Gk = whh_ref.shape[1]          # 4P

    y1 = y1_ref[...]               # (B, T*M)  U_d(enc), hoisted out of the recurrence
    epg = epg_ref[...]             # (B, T*4P) enc pre-projected through Wc_gate
    bd = bd_ref[...]
    wyg = wyg_ref[...]
    bg = bg_ref[...]
    wdd = wdd_ref[...]             # bf16 (P, T*M)
    wds = wds_ref[...]             # bf16 (P, T*M)
    vd = vd_ref[...]               # bf16 (T*M, T) block-diagonal
    whh = whh_ref[...]             # bf16 (P, 4P)

    d = jnp.zeros((Bk, Pk), jnp.float32)     # d_{t-1}  (LSTM hidden), loop-carried in vregs
    s = jnp.zeros((Bk, Pk), jnp.float32)     # s'_{t-1} (LSTM cell)
    beta = jnp.zeros((Bk, Tk), jnp.float32)  # last-step attention weights (defines c_T)

    for t in range(Tk):
        d_bf = d.astype(wdd.dtype)
        s_bf = s.astype(wds.dtype)

        # W_d([d ; s']) tiled over T along lanes (tiling baked into the weights);
        # the two K=P matmuls are independent and co-issue.
        x1 = (jnp.dot(d_bf, wdd, preferred_element_type=jnp.float32)
              + jnp.dot(s_bf, wds, preferred_element_type=jnp.float32)
              + bd)                                                           # (B, T*M)
        z1 = jnp.tanh(x1 + y1)                                                # (B, T*M)
        l_it = jnp.dot(z1.astype(vd.dtype), vd,
                       preferred_element_type=jnp.float32)                    # (B, T)

        # softmax over T. Max-subtraction dropped: z1 in [-1,1] and |v_d| <= 1/sqrt(M)
        # => |l_it| <= sqrt(M) ~ 5.7, exp is safe. Normalization kept exact.
        e = jnp.exp(l_it)
        beta = e / jnp.sum(e, axis=-1, keepdims=True)                         # (B, T)

        # c_t contribution to the LSTM gates: sum_t beta_t * (enc_t @ Wc_gate).
        # Pure VPU broadcast-FMAs on (B,128) vregs — no MXU op, c_t never built.
        c_gate = beta[:, 0:1] * epg[:, 0:Gk]
        for tt in range(1, Tk):
            c_gate = c_gate + beta[:, tt:tt + 1] * epg[:, tt * Gk:(tt + 1) * Gk]

        # LSTMCell(input_size=1, hidden_size=P); w_tilda folded into the gate weights.
        gates = (c_gate
                 + y_ref[:, t:t + 1] * wyg
                 + jnp.dot(d_bf, whh, preferred_element_type=jnp.float32)
                 + bg)                                                        # (B, 4P)
        sig = jax.nn.sigmoid(gates)          # lane-dense (B,128) nonlinearities
        tnh = jnp.tanh(gates)
        i_g = sig[:, 0 * Pk:1 * Pk]
        f_g = sig[:, 1 * Pk:2 * Pk]
        g_g = tnh[:, 2 * Pk:3 * Pk]
        o_g = sig[:, 3 * Pk:4 * Pk]
        s = f_g * s + i_g * g_g
        d = o_g * jnp.tanh(s)

        dt_ref[:, t * Pk:(t + 1) * Pk] = d   # d history (read only after the loop)

    # W_dec(dt_list): leading P zero-columns skipped; ONE K=T*P matmul.
    d_final = (jnp.dot(dt_ref[...].astype(wdec_ref.dtype), wdec_ref[...],
                       preferred_element_type=jnp.float32)
               + bdec_ref[...])                                               # (B, P)

    # c_T contribution to W_y, assembled from pre-projected encoder slices with
    # the last step's beta (matches the PyTorch code, where c_t persists after the loop).
    epy = epy_ref[...]                                                        # (B, T*P)
    c_y = beta[:, 0:1] * epy[:, 0:Pk]
    for tt in range(1, Tk):
        c_y = c_y + beta[:, tt:tt + 1] * epy[:, tt * Pk:(tt + 1) * Pk]

    h = (jnp.dot(d_final.astype(wyd_ref.dtype), wyd_ref[...],
                 preferred_element_type=jnp.float32)
         + c_y + by_ref[...])                                                 # (B, P) == W_y([d ; c_T])
    out_ref[...] = (jnp.dot(h.astype(vy_ref.dtype), vy_ref[...],
                            preferred_element_type=jnp.float32)
                    + vyb_ref[...])                                           # (B, 1)


# ----------------------------------------------------------------------------
# Wrapper: weight fusion / re-layout, loop-invariant encoder projections, pallas_call
# ----------------------------------------------------------------------------
def temporal_attention_decoder(enc, y, p):
    Bn = enc.shape[0]
    enc_f = enc.astype(jnp.float32)                           # (B, T, M)
    y2d = y.reshape(Bn, T).astype(jnp.float32)                # (B, T)

    f32 = jnp.float32
    bf16 = jnp.bfloat16

    # ---- fused gate weights (w_tilda folded into the LSTM input path) ----
    wih_row = p['lstm_w_ih'].T.astype(f32)                    # (1, 4P)
    wtc = p['w_tilda_w'][:, :M].T.astype(f32)                 # (M, 1)   c-part of w_tilda
    wty = p['w_tilda_w'][0, M].astype(f32)                    # scalar   y-part
    wtb = p['w_tilda_b'][0].astype(f32)                       # scalar   bias
    Wc_gate = wtc @ wih_row                                   # (M, 4P)
    wy_gate = wty * wih_row                                   # (1, 4P)
    b_gate = wtb * wih_row + (p['lstm_b_ih'] + p['lstm_b_hh'])[None, :].astype(f32)

    Wyd = p['W_y_w'][:, :P].T.astype(f32)                     # (P, P)  W_y d-part
    Wyc = p['W_y_w'][:, P:].T.astype(f32)                     # (M, P)  W_y c-part

    # ---- loop-invariant encoder projections (hoisted out of the recurrence) ----
    y1 = jnp.einsum('btm,nm->btn', enc_f, p['U_d_w']).reshape(Bn, T * M)      # U_d(enc)
    epg = jnp.einsum('btm,mg->btg', enc_f, Wc_gate).reshape(Bn, T * 4 * P)    # enc @ Wc_gate
    epy = jnp.einsum('btm,mp->btp', enc_f, Wyc).reshape(Bn, T * P)            # enc @ Wyc

    # ---- remaining weights (lane-tiled / split); matmul weights shipped bf16 ----
    wd_d = jnp.tile(p['W_d_w'][:, :P].T, (1, T)).astype(bf16)  # (P, T*M)
    wd_s = jnp.tile(p['W_d_w'][:, P:].T, (1, T)).astype(bf16)  # (P, T*M)
    bd = jnp.tile(p['W_d_b'][None, :], (1, T)).astype(f32)     # (1, T*M)
    vd_bd = jnp.kron(jnp.eye(T, dtype=f32), p['v_d_w'].T).astype(bf16)   # (T*M, T)
    whh = p['lstm_w_hh'].T.astype(bf16)                        # (P, 4P)
    wdec = p['W_dec_w'][:, P:].T.astype(bf16)                  # (T*P, P)
    bdec = p['W_dec_b'][None, :].astype(f32)                   # (1, P)
    by = p['W_y_b'][None, :].astype(f32)                       # (1, P)
    vy = p['v_y_w'].T.astype(bf16)                             # (P, 1)
    vyb = p['v_y_b'][None, :].astype(f32)                      # (1, 1)

    batched = (y1.astype(f32), epg.astype(f32), epy.astype(f32), y2d)
    weights = (wd_d, wd_s, bd, vd_bd,
               wy_gate.astype(f32), whh, b_gate.astype(f32),
               wdec, bdec,
               Wyd.astype(bf16), by,
               vy, vyb)

    # Batch-parallel grid axis. For B >= 16, split the batch into two blocks so the
    # v7x megacore shards it across both TensorCores; at B=8 it is a single block.
    if Bn >= 16 and Bn % 16 == 0:
        b_blk = Bn // 2
    else:
        b_blk = Bn
    assert Bn % b_blk == 0
    grid = (Bn // b_blk,)

    def batch_spec(arr):
        cols = arr.shape[1]
        return pl.BlockSpec((b_blk, cols), lambda i: (i, 0))

    def weight_spec(arr):
        return pl.BlockSpec(arr.shape, lambda i: (0, 0))

    out = pl.pallas_call(
        _decoder_kernel,
        out_shape=jax.ShapeDtypeStruct((Bn, 1), jnp.float32),
        grid=grid,
        in_specs=[batch_spec(a) for a in batched] + [weight_spec(w) for w in weights],
        out_specs=pl.BlockSpec((b_blk, 1), lambda i: (i, 0)),
        scratch_shapes=[pltpu.VMEM((b_blk, T * P), jnp.float32)],
        compiler_params=pltpu.CompilerParams(dimension_semantics=("parallel",)),
    )(*batched, *weights)
    return out


# ----------------------------------------------------------------------------
# Deterministic parameter init (PyTorch-style shapes & uniform fan-in init)
# ----------------------------------------------------------------------------
def init_params(key):
    ks = jax.random.split(key, 16)

    def u(k, shape, fan_in):
        bound = 1.0 / np.sqrt(fan_in)
        return jax.random.uniform(k, shape, jnp.float32, -bound, bound)

    return {
        'W_d_w':     u(ks[0],  (M, 2 * P), 2 * P),
        'W_d_b':     u(ks[1],  (M,), 2 * P),
        'U_d_w':     u(ks[2],  (M, M), M),
        'v_d_w':     u(ks[3],  (1, M), M),
        'w_tilda_w': u(ks[4],  (1, M + 1), M + 1),
        'w_tilda_b': u(ks[5],  (1,), M + 1),
        'lstm_w_ih': u(ks[6],  (4 * P, 1), P),
        'lstm_w_hh': u(ks[7],  (4 * P, P), P),
        'lstm_b_ih': u(ks[8],  (4 * P,), P),
        'lstm_b_hh': u(ks[9],  (4 * P,), P),
        'W_y_w':     u(ks[10], (P, P + M), P + M),
        'W_y_b':     u(ks[11], (P,), P + M),
        'v_y_w':     u(ks[12], (1, P), P),
        'v_y_b':     u(ks[13], (1,), P),
        'W_dec_w':   u(ks[14], (P, P * (T + 1)), P * (T + 1)),
        'W_dec_b':   u(ks[15], (P,), P * (T + 1)),
    }


# ----------------------------------------------------------------------------
# Pure-JAX reference, mirroring the PyTorch forward line by line
# ----------------------------------------------------------------------------
def reference_forward(enc, y, p):
    Bn = enc.shape[0]
    d = jnp.zeros((Bn, P), jnp.float32)
    s = jnp.zeros((Bn, P), jnp.float32)
    dt_list = jnp.zeros((Bn, P), jnp.float32)
    c_t = jnp.zeros((Bn, M), jnp.float32)
    for t in range(T):
        ds = jnp.concatenate([d, s], axis=1)
        x1 = ds @ p['W_d_w'].T + p['W_d_b']
        y1 = jnp.einsum('btm,nm->btn', enc, p['U_d_w'])
        z1 = jnp.tanh(x1[:, None, :] + y1)
        l = jnp.einsum('btm,om->bto', z1, p['v_d_w'])
        beta = jax.nn.softmax(l, axis=1)
        c_t = jnp.sum(beta * enc, axis=1)
        yc = jnp.concatenate([c_t, y[:, t, :]], axis=1)
        y_tilda = yc @ p['w_tilda_w'].T + p['w_tilda_b']
        gates = (y_tilda @ p['lstm_w_ih'].T + p['lstm_b_ih']
                 + d @ p['lstm_w_hh'].T + p['lstm_b_hh'])
        i_g = jax.nn.sigmoid(gates[:, :P])
        f_g = jax.nn.sigmoid(gates[:, P:2 * P])
        g_g = jnp.tanh(gates[:, 2 * P:3 * P])
        o_g = jax.nn.sigmoid(gates[:, 3 * P:4 * P])
        s = f_g * s + i_g * g_g
        d = o_g * jnp.tanh(s)
        dt_list = jnp.concatenate([dt_list, d], axis=-1)
    d_f = dt_list @ p['W_dec_w'].T + p['W_dec_b']
    dc = jnp.concatenate([d_f, c_t], axis=1)
    return (dc @ p['W_y_w'].T + p['W_y_b']) @ p['v_y_w'].T + p['v_y_b']


if __name__ == "__main__":
    # Primary check with PRNGKey(0), plus extra seeds per the correctness feedback
    # (same shapes -> kernel compiles once).
    max_diff = 0.0
    for seed in (0, 1, 2):
        key = jax.random.PRNGKey(seed)
        kp, ke, ky = jax.random.split(key, 3)

        params = init_params(kp)
        encoded_inputs = jax.random.normal(ke, (B, T, M), jnp.float32)
        y_in = jax.random.normal(ky, (B, T, 1), jnp.float32)

        out = temporal_attention_decoder(encoded_inputs, y_in, params)
        out = np.asarray(jax.block_until_ready(out))
        assert out.shape == (B, 1)

        with jax.default_matmul_precision('highest'):
            ref = reference_forward(encoded_inputs, y_in, params)
        ref = np.asarray(jax.block_until_ready(ref))

        diff = float(np.max(np.abs(out - ref)))
        max_diff = max(max_diff, diff)
        # Kernel matmuls run single-pass bf16 (default MXU precision / bf16 weights)
        # through a T-step recurrence, while the reference runs at HIGHEST precision.
        if not np.allclose(out, ref, atol=5e-2, rtol=5e-2):
            raise AssertionError(
                f"kernel/reference mismatch for seed {seed}, max abs diff = {diff}")

    print("KERNEL_OK")
</pallas_src>

<mosaic_0001>
module attributes {stable_mosaic.version = 11 : i64} {
  func.func @_decoder_kernel(%arg0: i32, %arg1: memref<8x256xf32, #tpu.memory_space<vmem>>, %arg2: memref<8x1024xf32, #tpu.memory_space<vmem>>, %arg3: memref<8x256xf32, #tpu.memory_space<vmem>>, %arg4: memref<8x8xf32, #tpu.memory_space<vmem>>, %arg5: memref<32x256xbf16, #tpu.memory_space<vmem>>, %arg6: memref<32x256xbf16, #tpu.memory_space<vmem>>, %arg7: memref<1x256xf32, #tpu.memory_space<vmem>>, %arg8: memref<256x8xbf16, #tpu.memory_space<vmem>>, %arg9: memref<1x128xf32, #tpu.memory_space<vmem>>, %arg10: memref<32x128xbf16, #tpu.memory_space<vmem>>, %arg11: memref<1x128xf32, #tpu.memory_space<vmem>>, %arg12: memref<256x32xbf16, #tpu.memory_space<vmem>>, %arg13: memref<1x32xf32, #tpu.memory_space<vmem>>, %arg14: memref<32x32xbf16, #tpu.memory_space<vmem>>, %arg15: memref<1x32xf32, #tpu.memory_space<vmem>>, %arg16: memref<32x1xbf16, #tpu.memory_space<vmem>>, %arg17: memref<1x1xf32, #tpu.memory_space<vmem>>, %arg18: memref<8x1xf32, #tpu.memory_space<vmem>>, %arg19: memref<8x256xf32, #tpu.memory_space<vmem>>) attributes {dimension_semantics = [#tpu.dimension_semantics<parallel>], iteration_bounds = array<i64: 1>, scalar_prefetch = 0 : i64, scratch_operands = 1 : i64, tpu.core_type = #tpu.core_type<tc>, window_params = [{transform_indices = @transform_0, window_bounds = array<i64: 8, 256>}, {transform_indices = @transform_1, window_bounds = array<i64: 8, 1024>}, {transform_indices = @transform_2, window_bounds = array<i64: 8, 256>}, {transform_indices = @transform_3, window_bounds = array<i64: 8, 8>}, {pipeline_mode = #tpu.pipeline_mode<synchronous>, transform_indices = @transform_4, window_bounds = array<i64: 32, 256>}, {pipeline_mode = #tpu.pipeline_mode<synchronous>, transform_indices = @transform_5, window_bounds = array<i64: 32, 256>}, {pipeline_mode = #tpu.pipeline_mode<synchronous>, transform_indices = @transform_6, window_bounds = array<i64: 1, 256>}, {pipeline_mode = #tpu.pipeline_mode<synchronous>, transform_indices = @transform_7, window_bounds = array<i64: 256, 8>}, {pipeline_mode = #tpu.pipeline_mode<synchronous>, transform_indices = @transform_8, window_bounds = array<i64: 1, 128>}, {pipeline_mode = #tpu.pipeline_mode<synchronous>, transform_indices = @transform_9, window_bounds = array<i64: 32, 128>}, {pipeline_mode = #tpu.pipeline_mode<synchronous>, transform_indices = @transform_10, window_bounds = array<i64: 1, 128>}, {pipeline_mode = #tpu.pipeline_mode<synchronous>, transform_indices = @transform_11, window_bounds = array<i64: 256, 32>}, {pipeline_mode = #tpu.pipeline_mode<synchronous>, transform_indices = @transform_12, window_bounds = array<i64: 1, 32>}, {pipeline_mode = #tpu.pipeline_mode<synchronous>, transform_indices = @transform_13, window_bounds = array<i64: 32, 32>}, {pipeline_mode = #tpu.pipeline_mode<synchronous>, transform_indices = @transform_14, window_bounds = array<i64: 1, 32>}, {pipeline_mode = #tpu.pipeline_mode<synchronous>, transform_indices = @transform_15, window_bounds = array<i64: 32, 1>}, {pipeline_mode = #tpu.pipeline_mode<synchronous>, transform_indices = @transform_16, window_bounds = array<i64: 1, 1>}, {transform_indices = @transform_17, window_bounds = array<i64: 8, 1>}]} {
    %c0 = arith.constant 0 : index
    %c0_0 = arith.constant 0 : index
    %0 = vector.load %arg1[%c0, %c0_0] : memref<8x256xf32, #tpu.memory_space<vmem>>, vector<8x256xf32>
    %c0_1 = arith.constant 0 : index
    %c0_2 = arith.constant 0 : index
    %1 = vector.load %arg2[%c0_1, %c0_2] : memref<8x1024xf32, #tpu.memory_space<vmem>>, vector<8x1024xf32>
    %c0_3 = arith.constant 0 : index
    %c0_4 = arith.constant 0 : index
    %2 = vector.load %arg7[%c0_3, %c0_4] : memref<1x256xf32, #tpu.memory_space<vmem>>, vector<1x256xf32>
    %c0_5 = arith.constant 0 : index
    %c0_6 = arith.constant 0 : index
    %3 = vector.load %arg9[%c0_5, %c0_6] : memref<1x128xf32, #tpu.memory_space<vmem>>, vector<1x128xf32>
    %c0_7 = arith.constant 0 : index
    %c0_8 = arith.constant 0 : index
    %4 = vector.load %arg11[%c0_7, %c0_8] : memref<1x128xf32, #tpu.memory_space<vmem>>, vector<1x128xf32>
    %c0_9 = arith.constant 0 : index
    %c0_10 = arith.constant 0 : index
    %5 = vector.load %arg5[%c0_9, %c0_10] : memref<32x256xbf16, #tpu.memory_space<vmem>>, vector<32x256xbf16>
    %c0_11 = arith.constant 0 : index
    %c0_12 = arith.constant 0 : index
    %6 = vector.load %arg6[%c0_11, %c0_12] : memref<32x256xbf16, #tpu.memory_space<vmem>>, vector<32x256xbf16>
    %c0_13 = arith.constant 0 : index
    %c0_14 = arith.constant 0 : index
    %7 = vector.load %arg8[%c0_13, %c0_14] : memref<256x8xbf16, #tpu.memory_space<vmem>>, vector<256x8xbf16>
    %c0_15 = arith.constant 0 : index
    %c0_16 = arith.constant 0 : index
    %8 = vector.load %arg10[%c0_15, %c0_16] : memref<32x128xbf16, #tpu.memory_space<vmem>>, vector<32x128xbf16>
    %cst = arith.constant 0.000000e+00 : f32
    %9 = vector.broadcast %cst : f32 to vector<8x32xf32>
    %cst_17 = arith.constant 0.000000e+00 : f32
    %10 = vector.broadcast %cst_17 : f32 to vector<8x32xf32>
    %11 = arith.truncf %9 : vector<8x32xf32> to vector<8x32xbf16>
    %12 = arith.truncf %10 : vector<8x32xf32> to vector<8x32xbf16>
    %cst_18 = arith.constant dense<0.000000e+00> : vector<8x256xf32>
    %13 = tpu.matmul %11, %5, %cst_18 {dimension_numbers = #tpu.dot_dimension_numbers<[1], [0], [0], [1], [0, 0, 1, 1], [], []>} : vector<8x32xbf16>, vector<32x256xbf16>, vector<8x256xf32> -> vector<8x256xf32>
    %cst_19 = arith.constant dense<0.000000e+00> : vector<8x256xf32>
    %14 = tpu.matmul %12, %6, %cst_19 {dimension_numbers = #tpu.dot_dimension_numbers<[1], [0], [0], [1], [0, 0, 1, 1], [], []>} : vector<8x32xbf16>, vector<32x256xbf16>, vector<8x256xf32> -> vector<8x256xf32>
    %15 = arith.addf %13, %14 : vector<8x256xf32>
    %16 = vector.broadcast %2 : vector<1x256xf32> to vector<8x256xf32>
    %17 = arith.addf %15, %16 : vector<8x256xf32>
    %18 = arith.addf %17, %0 : vector<8x256xf32>
    %19 = math.tanh %18 : vector<8x256xf32>
    %20 = arith.truncf %19 : vector<8x256xf32> to vector<8x256xbf16>
    %cst_20 = arith.constant dense<0.000000e+00> : vector<8x8xf32>
    %21 = tpu.matmul %20, %7, %cst_20 {dimension_numbers = #tpu.dot_dimension_numbers<[1], [0], [0], [1], [0, 0, 1, 1], [], []>} : vector<8x256xbf16>, vector<256x8xbf16>, vector<8x8xf32> -> vector<8x8xf32>
    %22 = math.exp %21 : vector<8x8xf32>
    %cst_21 = arith.constant dense<0.000000e+00> : vector<8xf32>
    %23 = vector.multi_reduction <add>, %22, %cst_21 [1] : vector<8x8xf32> to vector<8xf32>
    %24 = vector.shape_cast %23 : vector<8xf32> to vector<8x1xf32>
    %25 = vector.broadcast %24 : vector<8x1xf32> to vector<8x8xf32>
    %26 = arith.divf %22, %25 : vector<8x8xf32>
    %27 = vector.extract_strided_slice %26 {offsets = [0, 0], sizes = [8, 1], strides = [1, 1]} : vector<8x8xf32> to vector<8x1xf32>
    %28 = vector.extract_strided_slice %1 {offsets = [0, 0], sizes = [8, 128], strides = [1, 1]} : vector<8x1024xf32> to vector<8x128xf32>
    %29 = vector.broadcast %27 : vector<8x1xf32> to vector<8x128xf32>
    %30 = arith.mulf %29, %28 : vector<8x128xf32>
    %31 = vector.extract_strided_slice %26 {offsets = [0, 1], sizes = [8, 1], strides = [1, 1]} : vector<8x8xf32> to vector<8x1xf32>
    %32 = vector.extract_strided_slice %1 {offsets = [0, 128], sizes = [8, 128], strides = [1, 1]} : vector<8x1024xf32> to vector<8x128xf32>
    %33 = vector.broadcast %31 : vector<8x1xf32> to vector<8x128xf32>
    %34 = arith.mulf %33, %32 : vector<8x128xf32>
    %35 = arith.addf %30, %34 : vector<8x128xf32>
    %36 = vector.extract_strided_slice %26 {offsets = [0, 2], sizes = [8, 1], strides = [1, 1]} : vector<8x8xf32> to vector<8x1xf32>
    %37 = vector.extract_strided_slice %1 {offsets = [0, 256], sizes = [8, 128], strides = [1, 1]} : vector<8x1024xf32> to vector<8x128xf32>
    %38 = vector.broadcast %36 : vector<8x1xf32> to vector<8x128xf32>
    %39 = arith.mulf %38, %37 : vector<8x128xf32>
    %40 = arith.addf %35, %39 : vector<8x128xf32>
    %41 = vector.extract_strided_slice %26 {offsets = [0, 3], sizes = [8, 1], strides = [1, 1]} : vector<8x8xf32> to vector<8x1xf32>
    %42 = vector.extract_strided_slice %1 {offsets = [0, 384], sizes = [8, 128], strides = [1, 1]} : vector<8x1024xf32> to vector<8x128xf32>
    %43 = vector.broadcast %41 : vector<8x1xf32> to vector<8x128xf32>
    %44 = arith.mulf %43, %42 : vector<8x128xf32>
    %45 = arith.addf %40, %44 : vector<8x128xf32>
    %46 = vector.extract_strided_slice %26 {offsets = [0, 4], sizes = [8, 1], strides = [1, 1]} : vector<8x8xf32> to vector<8x1xf32>
    %47 = vector.extract_strided_slice %1 {offsets = [0, 512], sizes = [8, 128], strides = [1, 1]} : vector<8x1024xf32> to vector<8x128xf32>
    %48 = vector.broadcast %46 : vector<8x1xf32> to vector<8x128xf32>
    %49 = arith.mulf %48, %47 : vector<8x128xf32>
    %50 = arith.addf %45, %49 : vector<8x128xf32>
    %51 = vector.extract_strided_slice %26 {offsets = [0, 5], sizes = [8, 1], strides = [1, 1]} : vector<8x8xf32> to vector<8x1xf32>
    %52 = vector.extract_strided_slice %1 {offsets = [0, 640], sizes = [8, 128], strides = [1, 1]} : vector<8x1024xf32> to vector<8x128xf32>
    %53 = vector.broadcast %51 : vector<8x1xf32> to vector<8x128xf32>
    %54 = arith.mulf %53, %52 : vector<8x128xf32>
    %55 = arith.addf %50, %54 : vector<8x128xf32>
    %56 = vector.extract_strided_slice %26 {offsets = [0, 6], sizes = [8, 1], strides = [1, 1]} : vector<8x8xf32> to vector<8x1xf32>
    %57 = vector.extract_strided_slice %1 {offsets = [0, 768], sizes = [8, 128], strides = [1, 1]} : vector<8x1024xf32> to vector<8x128xf32>
    %58 = vector.broadcast %56 : vector<8x1xf32> to vector<8x128xf32>
    %59 = arith.mulf %58, %57 : vector<8x128xf32>
    %60 = arith.addf %55, %59 : vector<8x128xf32>
    %61 = vector.extract_strided_slice %26 {offsets = [0, 7], sizes = [8, 1], strides = [1, 1]} : vector<8x8xf32> to vector<8x1xf32>
    %62 = vector.extract_strided_slice %1 {offsets = [0, 896], sizes = [8, 128], strides = [1, 1]} : vector<8x1024xf32> to vector<8x128xf32>
    %63 = vector.broadcast %61 : vector<8x1xf32> to vector<8x128xf32>
    %64 = arith.mulf %63, %62 : vector<8x128xf32>
    %65 = arith.addf %60, %64 : vector<8x128xf32>
    %c0_22 = arith.constant 0 : index
    %c0_23 = arith.constant 0 : index
    %66 = vector.load %arg4[%c0_22, %c0_23] : memref<8x8xf32, #tpu.memory_space<vmem>>, vector<8x1xf32>
    %67 = vector.broadcast %66 : vector<8x1xf32> to vector<8x128xf32>
    %68 = vector.broadcast %3 : vector<1x128xf32> to vector<8x128xf32>
    %69 = arith.mulf %67, %68 : vector<8x128xf32>
    %70 = arith.addf %65, %69 : vector<8x128xf32>
    %cst_24 = arith.constant dense<0.000000e+00> : vector<8x128xf32>
    %71 = tpu.matmul %11, %8, %cst_24 {dimension_numbers = #tpu.dot_dimension_numbers<[1], [0], [0], [1], [0, 0, 1, 1], [], []>} : vector<8x32xbf16>, vector<32x128xbf16>, vector<8x128xf32> -> vector<8x128xf32>
    %72 = arith.addf %70, %71 : vector<8x128xf32>
    %73 = vector.broadcast %4 : vector<1x128xf32> to vector<8x128xf32>
    %74 = arith.addf %72, %73 : vector<8x128xf32>
    %75 = arith.negf %74 : vector<8x128xf32>
    %76 = math.exp %75 : vector<8x128xf32>
    %cst_25 = arith.constant 1.000000e+00 : f32
    %77 = vector.broadcast %cst_25 : f32 to vector<8x128xf32>
    %78 = arith.addf %77, %76 : vector<8x128xf32>
    %79 = arith.divf %77, %78 : vector<8x128xf32>
    %80 = math.tanh %74 : vector<8x128xf32>
    %81 = vector.extract_strided_slice %79 {offsets = [0, 0], sizes = [8, 32], strides = [1, 1]} : vector<8x128xf32> to vector<8x32xf32>
    %82 = vector.extract_strided_slice %79 {offsets = [0, 32], sizes = [8, 32], strides = [1, 1]} : vector<8x128xf32> to vector<8x32xf32>
    %83 = vector.extract_strided_slice %80 {offsets = [0, 64], sizes = [8, 32], strides = [1, 1]} : vector<8x128xf32> to vector<8x32xf32>
    %84 = vector.extract_strided_slice %79 {offsets = [0, 96], sizes = [8, 32], strides = [1, 1]} : vector<8x128xf32> to vector<8x32xf32>
    %85 = arith.mulf %82, %10 : vector<8x32xf32>
    %86 = arith.mulf %81, %83 : vector<8x32xf32>
    %87 = arith.addf %85, %86 : vector<8x32xf32>
    %88 = math.tanh %87 : vector<8x32xf32>
    %89 = arith.mulf %84, %88 : vector<8x32xf32>
    %c0_26 = arith.constant 0 : index
    %c0_27 = arith.constant 0 : index
    %90 = vector.load %arg19[%c0_26, %c0_27] : memref<8x256xf32, #tpu.memory_space<vmem>>, vector<8x32xf32>
    tpu.vector_store %arg19[%c0_26, %c0_27], %89 {strides = array<i32>} : memref<8x256xf32, #tpu.memory_space<vmem>>, vector<8x32xf32>,
    %91 = arith.truncf %89 : vector<8x32xf32> to vector<8x32xbf16>
    %92 = arith.truncf %87 : vector<8x32xf32> to vector<8x32xbf16>
    %cst_28 = arith.constant dense<0.000000e+00> : vector<8x256xf32>
    %93 = tpu.matmul %91, %5, %cst_28 {dimension_numbers = #tpu.dot_dimension_numbers<[1], [0], [0], [1], [0, 0, 1, 1], [], []>} : vector<8x32xbf16>, vector<32x256xbf16>, vector<8x256xf32> -> vector<8x256xf32>
    %cst_29 = arith.constant dense<0.000000e+00> : vector<8x256xf32>
    %94 = tpu.matmul %92, %6, %cst_29 {dimension_numbers = #tpu.dot_dimension_numbers<[1], [0], [0], [1], [0, 0, 1, 1], [], []>} : vector<8x32xbf16>, vector<32x256xbf16>, vector<8x256xf32> -> vector<8x256xf32>
    %95 = arith.addf %93, %94 : vector<8x256xf32>
    %96 = vector.broadcast %2 : vector<1x256xf32> to vector<8x256xf32>
    %97 = arith.addf %95, %96 : vector<8x256xf32>
    %98 = arith.addf %97, %0 : vector<8x256xf32>
    %99 = math.tanh %98 : vector<8x256xf32>
    %100 = arith.truncf %99 : vector<8x256xf32> to vector<8x256xbf16>
    %cst_30 = arith.constant dense<0.000000e+00> : vector<8x8xf32>
    %101 = tpu.matmul %100, %7, %cst_30 {dimension_numbers = #tpu.dot_dimension_numbers<[1], [0], [0], [1], [0, 0, 1, 1], [], []>} : vector<8x256xbf16>, vector<256x8xbf16>, vector<8x8xf32> -> vector<8x8xf32>
    %102 = math.exp %101 : vector<8x8xf32>
    %cst_31 = arith.constant dense<0.000000e+00> : vector<8xf32>
    %103 = vector.multi_reduction <add>, %102, %cst_31 [1] : vector<8x8xf32> to vector<8xf32>
    %104 = vector.shape_cast %103 : vector<8xf32> to vector<8x1xf32>
    %105 = vector.broadcast %104 : vector<8x1xf32> to vector<8x8xf32>
    %106 = arith.divf %102, %105 : vector<8x8xf32>
    %107 = vector.extract_strided_slice %106 {offsets = [0, 0], sizes = [8, 1], strides = [1, 1]} : vector<8x8xf32> to vector<8x1xf32>
    %108 = vector.extract_strided_slice %1 {offsets = [0, 0], sizes = [8, 128], strides = [1, 1]} : vector<8x1024xf32> to vector<8x128xf32>
    %109 = vector.broadcast %107 : vector<8x1xf32> to vector<8x128xf32>
    %110 = arith.mulf %109, %108 : vector<8x128xf32>
    %111 = vector.extract_strided_slice %106 {offsets = [0, 1], sizes = [8, 1], strides = [1, 1]} : vector<8x8xf32> to vector<8x1xf32>
    %112 = vector.extract_strided_slice %1 {offsets = [0, 128], sizes = [8, 128], strides = [1, 1]} : vector<8x1024xf32> to vector<8x128xf32>
    %113 = vector.broadcast %111 : vector<8x1xf32> to vector<8x128xf32>
    %114 = arith.mulf %113, %112 : vector<8x128xf32>
    %115 = arith.addf %110, %114 : vector<8x128xf32>
    %116 = vector.extract_strided_slice %106 {offsets = [0, 2], sizes = [8, 1], strides = [1, 1]} : vector<8x8xf32> to vector<8x1xf32>
    %117 = vector.extract_strided_slice %1 {offsets = [0, 256], sizes = [8, 128], strides = [1, 1]} : vector<8x1024xf32> to vector<8x128xf32>
    %118 = vector.broadcast %116 : vector<8x1xf32> to vector<8x128xf32>
    %119 = arith.mulf %118, %117 : vector<8x128xf32>
    %120 = arith.addf %115, %119 : vector<8x128xf32>
    %121 = vector.extract_strided_slice %106 {offsets = [0, 3], sizes = [8, 1], strides = [1, 1]} : vector<8x8xf32> to vector<8x1xf32>
    %122 = vector.extract_strided_slice %1 {offsets = [0, 384], sizes = [8, 128], strides = [1, 1]} : vector<8x1024xf32> to vector<8x128xf32>
    %123 = vector.broadcast %121 : vector<8x1xf32> to vector<8x128xf32>
    %124 = arith.mulf %123, %122 : vector<8x128xf32>
    %125 = arith.addf %120, %124 : vector<8x128xf32>
    %126 = vector.extract_strided_slice %106 {offsets = [0, 4], sizes = [8, 1], strides = [1, 1]} : vector<8x8xf32> to vector<8x1xf32>
    %127 = vector.extract_strided_slice %1 {offsets = [0, 512], sizes = [8, 128], strides = [1, 1]} : vector<8x1024xf32> to vector<8x128xf32>
    %128 = vector.broadcast %126 : vector<8x1xf32> to vector<8x128xf32>
    %129 = arith.mulf %128, %127 : vector<8x128xf32>
    %130 = arith.addf %125, %129 : vector<8x128xf32>
    %131 = vector.extract_strided_slice %106 {offsets = [0, 5], sizes = [8, 1], strides = [1, 1]} : vector<8x8xf32> to vector<8x1xf32>
    %132 = vector.extract_strided_slice %1 {offsets = [0, 640], sizes = [8, 128], strides = [1, 1]} : vector<8x1024xf32> to vector<8x128xf32>
    %133 = vector.broadcast %131 : vector<8x1xf32> to vector<8x128xf32>
    %134 = arith.mulf %133, %132 : vector<8x128xf32>
    %135 = arith.addf %130, %134 : vector<8x128xf32>
    %136 = vector.extract_strided_slice %106 {offsets = [0, 6], sizes = [8, 1], strides = [1, 1]} : vector<8x8xf32> to vector<8x1xf32>
    %137 = vector.extract_strided_slice %1 {offsets = [0, 768], sizes = [8, 128], strides = [1, 1]} : vector<8x1024xf32> to vector<8x128xf32>
    %138 = vector.broadcast %136 : vector<8x1xf32> to vector<8x128xf32>
    %139 = arith.mulf %138, %137 : vector<8x128xf32>
    %140 = arith.addf %135, %139 : vector<8x128xf32>
    %141 = vector.extract_strided_slice %106 {offsets = [0, 7], sizes = [8, 1], strides = [1, 1]} : vector<8x8xf32> to vector<8x1xf32>
    %142 = vector.extract_strided_slice %1 {offsets = [0, 896], sizes = [8, 128], strides = [1, 1]} : vector<8x1024xf32> to vector<8x128xf32>
    %143 = vector.broadcast %141 : vector<8x1xf32> to vector<8x128xf32>
    %144 = arith.mulf %143, %142 : vector<8x128xf32>
    %145 = arith.addf %140, %144 : vector<8x128xf32>
    %c0_32 = arith.constant 0 : index
    %c1 = arith.constant 1 : index
    %146 = vector.load %arg4[%c0_32, %c1] : memref<8x8xf32, #tpu.memory_space<vmem>>, vector<8x1xf32>
    %147 = vector.broadcast %146 : vector<8x1xf32> to vector<8x128xf32>
    %148 = vector.broadcast %3 : vector<1x128xf32> to vector<8x128xf32>
    %149 = arith.mulf %147, %148 : vector<8x128xf32>
    %150 = arith.addf %145, %149 : vector<8x128xf32>
    %cst_33 = arith.constant dense<0.000000e+00> : vector<8x128xf32>
    %151 = tpu.matmul %91, %8, %cst_33 {dimension_numbers = #tpu.dot_dimension_numbers<[1], [0], [0], [1], [0, 0, 1, 1], [], []>} : vector<8x32xbf16>, vector<32x128xbf16>, vector<8x128xf32> -> vector<8x128xf32>
    %152 = arith.addf %150, %151 : vector<8x128xf32>
    %153 = vector.broadcast %4 : vector<1x128xf32> to vector<8x128xf32>
    %154 = arith.addf %152, %153 : vector<8x128xf32>
    %155 = arith.negf %154 : vector<8x128xf32>
    %156 = math.exp %155 : vector<8x128xf32>
    %cst_34 = arith.constant 1.000000e+00 : f32
    %157 = vector.broadcast %cst_34 : f32 to vector<8x128xf32>
    %158 = arith.addf %157, %156 : vector<8x128xf32>
    %159 = arith.divf %157, %158 : vector<8x128xf32>
    %160 = math.tanh %154 : vector<8x128xf32>
    %161 = vector.extract_strided_slice %159 {offsets = [0, 0], sizes = [8, 32], strides = [1, 1]} : vector<8x128xf32> to vector<8x32xf32>
    %162 = vector.extract_strided_slice %159 {offsets = [0, 32], sizes = [8, 32], strides = [1, 1]} : vector<8x128xf32> to vector<8x32xf32>
    %163 = vector.extract_strided_slice %160 {offsets = [0, 64], sizes = [8, 32], strides = [1, 1]} : vector<8x128xf32> to vector<8x32xf32>
    %164 = vector.extract_strided_slice %159 {offsets = [0, 96], sizes = [8, 32], strides = [1, 1]} : vector<8x128xf32> to vector<8x32xf32>
    %165 = arith.mulf %162, %87 : vector<8x32xf32>
    %166 = arith.mulf %161, %163 : vector<8x32xf32>
    %167 = arith.addf %165, %166 : vector<8x32xf32>
    %168 = math.tanh %167 : vector<8x32xf32>
    %169 = arith.mulf %164, %168 : vector<8x32xf32>
    %c0_35 = arith.constant 0 : index
    %c32 = arith.constant 32 : index
    %170 = vector.load %arg19[%c0_35, %c32] : memref<8x256xf32, #tpu.memory_space<vmem>>, vector<8x32xf32>
    tpu.vector_store %arg19[%c0_35, %c32], %169 {strides = array<i32>} : memref<8x256xf32, #tpu.memory_space<vmem>>, vector<8x32xf32>,
    %171 = arith.truncf %169 : vector<8x32xf32> to vector<8x32xbf16>
    %172 = arith.truncf %167 : vector<8x32xf32> to vector<8x32xbf16>
    %cst_36 = arith.constant dense<0.000000e+00> : vector<8x256xf32>
    %173 = tpu.matmul %171, %5, %cst_36 {dimension_numbers = #tpu.dot_dimension_numbers<[1], [0], [0], [1], [0, 0, 1, 1], [], []>} : vector<8x32xbf16>, vector<32x256xbf16>, vector<8x256xf32> -> vector<8x256xf32>
    %cst_37 = arith.constant dense<0.000000e+00> : vector<8x256xf32>
    %174 = tpu.matmul %172, %6, %cst_37 {dimension_numbers = #tpu.dot_dimension_numbers<[1], [0], [0], [1], [0, 0, 1, 1], [], []>} : vector<8x32xbf16>, vector<32x256xbf16>, vector<8x256xf32> -> vector<8x256xf32>
    %175 = arith.addf %173, %174 : vector<8x256xf32>
    %176 = vector.broadcast %2 : vector<1x256xf32> to vector<8x256xf32>
    %177 = arith.addf %175, %176 : vector<8x256xf32>
    %178 = arith.addf %177, %0 : vector<8x256xf32>
    %179 = math.tanh %178 : vector<8x256xf32>
    %180 = arith.truncf %179 : vector<8x256xf32> to vector<8x256xbf16>
    %cst_38 = arith.constant dense<0.000000e+00> : vector<8x8xf32>
    %181 = tpu.matmul %180, %7, %cst_38 {dimension_numbers = #tpu.dot_dimension_numbers<[1], [0], [0], [1], [0, 0, 1, 1], [], []>} : vector<8x256xbf16>, vector<256x8xbf16>, vector<8x8xf32> -> vector<8x8xf32>
    %182 = math.exp %181 : vector<8x8xf32>
    %cst_39 = arith.constant dense<0.000000e+00> : vector<8xf32>
    %183 = vector.multi_reduction <add>, %182, %cst_39 [1] : vector<8x8xf32> to vector<8xf32>
    %184 = vector.shape_cast %183 : vector<8xf32> to vector<8x1xf32>
    %185 = vector.broadcast %184 : vector<8x1xf32> to vector<8x8xf32>
    %186 = arith.divf %182, %185 : vector<8x8xf32>
    %187 = vector.extract_strided_slice %186 {offsets = [0, 0], sizes = [8, 1], strides = [1, 1]} : vector<8x8xf32> to vector<8x1xf32>
    %188 = vector.extract_strided_slice %1 {offsets = [0, 0], sizes = [8, 128], strides = [1, 1]} : vector<8x1024xf32> to vector<8x128xf32>
    %189 = vector.broadcast %187 : vector<8x1xf32> to vector<8x128xf32>
    %190 = arith.mulf %189, %188 : vector<8x128xf32>
    %191 = vector.extract_strided_slice %186 {offsets = [0, 1], sizes = [8, 1], strides = [1, 1]} : vector<8x8xf32> to vector<8x1xf32>
    %192 = vector.extract_strided_slice %1 {offsets = [0, 128], sizes = [8, 128], strides = [1, 1]} : vector<8x1024xf32> to vector<8x128xf32>
    %193 = vector.broadcast %191 : vector<8x1xf32> to vector<8x128xf32>
    %194 = arith.mulf %193, %192 : vector<8x128xf32>
    %195 = arith.addf %190, %194 : vector<8x128xf32>
    %196 = vector.extract_strided_slice %186 {offsets = [0, 2], sizes = [8, 1], strides = [1, 1]} : vector<8x8xf32> to vector<8x1xf32>
    %197 = vector.extract_strided_slice %1 {offsets = [0, 256], sizes = [8, 128], strides = [1, 1]} : vector<8x1024xf32> to vector<8x128xf32>
    %198 = vector.broadcast %196 : vector<8x1xf32> to vector<8x128xf32>
    %199 = arith.mulf %198, %197 : vector<8x128xf32>
    %200 = arith.addf %195, %199 : vector<8x128xf32>
    %201 = vector.extract_strided_slice %186 {offsets = [0, 3], sizes = [8, 1], strides = [1, 1]} : vector<8x8xf32> to vector<8x1xf32>
    %202 = vector.extract_strided_slice %1 {offsets = [0, 384], sizes = [8, 128], strides = [1, 1]} : vector<8x1024xf32> to vector<8x128xf32>
    %203 = vector.broadcast %201 : vector<8x1xf32> to vector<8x128xf32>
    %204 = arith.mulf %203, %202 : vector<8x128xf32>
    %205 = arith.addf %200, %204 : vector<8x128xf32>
    %206 = vector.extract_strided_slice %186 {offsets = [0, 4], sizes = [8, 1], strides = [1, 1]} : vector<8x8xf32> to vector<8x1xf32>
    %207 = vector.extract_strided_slice %1 {offsets = [0, 512], sizes = [8, 128], strides = [1, 1]} : vector<8x1024xf32> to vector<8x128xf32>
    %208 = vector.broadcast %206 : vector<8x1xf32> to vector<8x128xf32>
    %209 = arith.mulf %208, %207 : vector<8x128xf32>
    %210 = arith.addf %205, %209 : vector<8x128xf32>
    %211 = vector.extract_strided_slice %186 {offsets = [0, 5], sizes = [8, 1], strides = [1, 1]} : vector<8x8xf32> to vector<8x1xf32>
    %212 = vector.extract_strided_slice %1 {offsets = [0, 640], sizes = [8, 128], strides = [1, 1]} : vector<8x1024xf32> to vector<8x128xf32>
    %213 = vector.broadcast %211 : vector<8x1xf32> to vector<8x128xf32>
    %214 = arith.mulf %213, %212 : vector<8x128xf32>
    %215 = arith.addf %210, %214 : vector<8x128xf32>
    %216 = vector.extract_strided_slice %186 {offsets = [0, 6], sizes = [8, 1], strides = [1, 1]} : vector<8x8xf32> to vector<8x1xf32>
    %217 = vector.extract_strided_slice %1 {offsets = [0, 768], sizes = [8, 128], strides = [1, 1]} : vector<8x1024xf32> to vector<8x128xf32>
    %218 = vector.broadcast %216 : vector<8x1xf32> to vector<8x128xf32>
    %219 = arith.mulf %218, %217 : vector<8x128xf32>
    %220 = arith.addf %215, %219 : vector<8x128xf32>
    %221 = vector.extract_strided_slice %186 {offsets = [0, 7], sizes = [8, 1], strides = [1, 1]} : vector<8x8xf32> to vector<8x1xf32>
    %222 = vector.extract_strided_slice %1 {offsets = [0, 896], sizes = [8, 128], strides = [1, 1]} : vector<8x1024xf32> to vector<8x128xf32>
    %223 = vector.broadcast %221 : vector<8x1xf32> to vector<8x128xf32>
    %224 = arith.mulf %223, %222 : vector<8x128xf32>
    %225 = arith.addf %220, %224 : vector<8x128xf32>
    %c0_40 = arith.constant 0 : index
    %c2 = arith.constant 2 : index
    %226 = vector.load %arg4[%c0_40, %c2] : memref<8x8xf32, #tpu.memory_space<vmem>>, vector<8x1xf32>
    %227 = vector.broadcast %226 : vector<8x1xf32> to vector<8x128xf32>
    %228 = vector.broadcast %3 : vector<1x128xf32> to vector<8x128xf32>
    %229 = arith.mulf %227, %228 : vector<8x128xf32>
    %230 = arith.addf %225, %229 : vector<8x128xf32>
    %cst_41 = arith.constant dense<0.000000e+00> : vector<8x128xf32>
    %231 = tpu.matmul %171, %8, %cst_41 {dimension_numbers = #tpu.dot_dimension_numbers<[1], [0], [0], [1], [0, 0, 1, 1], [], []>} : vector<8x32xbf16>, vector<32x128xbf16>, vector<8x128xf32> -> vector<8x128xf32>
    %232 = arith.addf %230, %231 : vector<8x128xf32>
    %233 = vector.broadcast %4 : vector<1x128xf32> to vector<8x128xf32>
    %234 = arith.addf %232, %233 : vector<8x128xf32>
    %235 = arith.negf %234 : vector<8x128xf32>
    %236 = math.exp %235 : vector<8x128xf32>
    %cst_42 = arith.constant 1.000000e+00 : f32
    %237 = vector.broadcast %cst_42 : f32 to vector<8x128xf32>
    %238 = arith.addf %237, %236 : vector<8x128xf32>
    %239 = arith.divf %237, %238 : vector<8x128xf32>
    %240 = math.tanh %234 : vector<8x128xf32>
    %241 = vector.extract_strided_slice %239 {offsets = [0, 0], sizes = [8, 32], strides = [1, 1]} : vector<8x128xf32> to vector<8x32xf32>
    %242 = vector.extract_strided_slice %239 {offsets = [0, 32], sizes = [8, 32], strides = [1, 1]} : vector<8x128xf32> to vector<8x32xf32>
    %243 = vector.extract_strided_slice %240 {offsets = [0, 64], sizes = [8, 32], strides = [1, 1]} : vector<8x128xf32> to vector<8x32xf32>
    %244 = vector.extract_strided_slice %239 {offsets = [0, 96], sizes = [8, 32], strides = [1, 1]} : vector<8x128xf32> to vector<8x32xf32>
    %245 = arith.mulf %242, %167 : vector<8x32xf32>
    %246 = arith.mulf %241, %243 : vector<8x32xf32>
    %247 = arith.addf %245, %246 : vector<8x32xf32>
    %248 = math.tanh %247 : vector<8x32xf32>
    %249 = arith.mulf %244, %248 : vector<8x32xf32>
    %c0_43 = arith.constant 0 : index
    %c64 = arith.constant 64 : index
    %250 = vector.load %arg19[%c0_43, %c64] : memref<8x256xf32, #tpu.memory_space<vmem>>, vector<8x32xf32>
    tpu.vector_store %arg19[%c0_43, %c64], %249 {strides = array<i32>} : memref<8x256xf32, #tpu.memory_space<vmem>>, vector<8x32xf32>,
    %251 = arith.truncf %249 : vector<8x32xf32> to vector<8x32xbf16>
    %252 = arith.truncf %247 : vector<8x32xf32> to vector<8x32xbf16>
    %cst_44 = arith.constant dense<0.000000e+00> : vector<8x256xf32>
    %253 = tpu.matmul %251, %5, %cst_44 {dimension_numbers = #tpu.dot_dimension_numbers<[1], [0], [0], [1], [0, 0, 1, 1], [], []>} : vector<8x32xbf16>, vector<32x256xbf16>, vector<8x256xf32> -> vector<8x256xf32>
    %cst_45 = arith.constant dense<0.000000e+00> : vector<8x256xf32>
    %254 = tpu.matmul %252, %6, %cst_45 {dimension_numbers = #tpu.dot_dimension_numbers<[1], [0], [0], [1], [0, 0, 1, 1], [], []>} : vector<8x32xbf16>, vector<32x256xbf16>, vector<8x256xf32> -> vector<8x256xf32>
    %255 = arith.addf %253, %254 : vector<8x256xf32>
    %256 = vector.broadcast %2 : vector<1x256xf32> to vector<8x256xf32>
    %257 = arith.addf %255, %256 : vector<8x256xf32>
    %258 = arith.addf %257, %0 : vector<8x256xf32>
    %259 = math.tanh %258 : vector<8x256xf32>
    %260 = arith.truncf %259 : vector<8x256xf32> to vector<8x256xbf16>
    %cst_46 = arith.constant dense<0.000000e+00> : vector<8x8xf32>
    %261 = tpu.matmul %260, %7, %cst_46 {dimension_numbers = #tpu.dot_dimension_numbers<[1], [0], [0], [1], [0, 0, 1, 1], [], []>} : vector<8x256xbf16>, vector<256x8xbf16>, vector<8x8xf32> -> vector<8x8xf32>
    %262 = math.exp %261 : vector<8x8xf32>
    %cst_47 = arith.constant dense<0.000000e+00> : vector<8xf32>
    %263 = vector.multi_reduction <add>, %262, %cst_47 [1] : vector<8x8xf32> to vector<8xf32>
    %264 = vector.shape_cast %263 : vector<8xf32> to vector<8x1xf32>
    %265 = vector.broadcast %264 : vector<8x1xf32> to vector<8x8xf32>
    %266 = arith.divf %262, %265 : vector<8x8xf32>
    %267 = vector.extract_strided_slice %266 {offsets = [0, 0], sizes = [8, 1], strides = [1, 1]} : vector<8x8xf32> to vector<8x1xf32>
    %268 = vector.extract_strided_slice %1 {offsets = [0, 0], sizes = [8, 128], strides = [1, 1]} : vector<8x1024xf32> to vector<8x128xf32>
    %269 = vector.broadcast %267 : vector<8x1xf32> to vector<8x128xf32>
    %270 = arith.mulf %269, %268 : vector<8x128xf32>
    %271 = vector.extract_strided_slice %266 {offsets = [0, 1], sizes = [8, 1], strides = [1, 1]} : vector<8x8xf32> to vector<8x1xf32>
    %272 = vector.extract_strided_slice %1 {offsets = [0, 128], sizes = [8, 128], strides = [1, 1]} : vector<8x1024xf32> to vector<8x128xf32>
    %273 = vector.broadcast %271 : vector<8x1xf32> to vector<8x128xf32>
    %274 = arith.mulf %273, %272 : vector<8x128xf32>
    %275 = arith.addf %270, %274 : vector<8x128xf32>
    %276 = vector.extract_strided_slice %266 {offsets = [0, 2], sizes = [8, 1], strides = [1, 1]} : vector<8x8xf32> to vector<8x1xf32>
    %277 = vector.extract_strided_slice %1 {offsets = [0, 256], sizes = [8, 128], strides = [1, 1]} : vector<8x1024xf32> to vector<8x128xf32>
    %278 = vector.broadcast %276 : vector<8x1xf32> to vector<8x128xf32>
    %279 = arith.mulf %278, %277 : vector<8x128xf32>
    %280 = arith.addf %275, %279 : vector<8x128xf32>
    %281 = vector.extract_strided_slice %266 {offsets = [0, 3], sizes = [8, 1], strides = [1, 1]} : vector<8x8xf32> to vector<8x1xf32>
    %282 = vector.extract_strided_slice %1 {offsets = [0, 384], sizes = [8, 128], strides = [1, 1]} : vector<8x1024xf32> to vector<8x128xf32>
    %283 = vector.broadcast %281 : vector<8x1xf32> to vector<8x128xf32>
    %284 = arith.mulf %283, %282 : vector<8x128xf32>
    %285 = arith.addf %280, %284 : vector<8x128xf32>
    %286 = vector.extract_strided_slice %266 {offsets = [0, 4], sizes = [8, 1], strides = [1, 1]} : vector<8x8xf32> to vector<8x1xf32>
    %287 = vector.extract_strided_slice %1 {offsets = [0, 512], sizes = [8, 128], strides = [1, 1]} : vector<8x1024xf32> to vector<8x128xf32>
    %288 = vector.broadcast %286 : vector<8x1xf32> to vector<8x128xf32>
    %289 = arith.mulf %288, %287 : vector<8x128xf32>
    %290 = arith.addf %285, %289 : vector<8x128xf32>
    %291 = vector.extract_strided_slice %266 {offsets = [0, 5], sizes = [8, 1], strides = [1, 1]} : vector<8x8xf32> to vector<8x1xf32>
    %292 = vector.extract_strided_slice %1 {offsets = [0, 640], sizes = [8, 128], strides = [1, 1]} : vector<8x1024xf32> to vector<8x128xf32>
    %293 = vector.broadcast %291 : vector<8x1xf32> to vector<8x128xf32>
    %294 = arith.mulf %293, %292 : vector<8x128xf32>
    %295 = arith.addf %290, %294 : vector<8x128xf32>
    %296 = vector.extract_strided_slice %266 {offsets = [0, 6], sizes = [8, 1], strides = [1, 1]} : vector<8x8xf32> to vector<8x1xf32>
    %297 = vector.extract_strided_slice %1 {offsets = [0, 768], sizes = [8, 128], strides = [1, 1]} : vector<8x1024xf32> to vector<8x128xf32>
    %298 = vector.broadcast %296 : vector<8x1xf32> to vector<8x128xf32>
    %299 = arith.mulf %298, %297 : vector<8x128xf32>
    %300 = arith.addf %295, %299 : vector<8x128xf32>
    %301 = vector.extract_strided_slice %266 {offsets = [0, 7], sizes = [8, 1], strides = [1, 1]} : vector<8x8xf32> to vector<8x1xf32>
    %302 = vector.extract_strided_slice %1 {offsets = [0, 896], sizes = [8, 128], strides = [1, 1]} : vector<8x1024xf32> to vector<8x128xf32>
    %303 = vector.broadcast %301 : vector<8x1xf32> to vector<8x128xf32>
    %304 = arith.mulf %303, %302 : vector<8x128xf32>
    %305 = arith.addf %300, %304 : vector<8x128xf32>
    %c0_48 = arith.constant 0 : index
    %c3 = arith.constant 3 : index
    %306 = vector.load %arg4[%c0_48, %c3] : memref<8x8xf32, #tpu.memory_space<vmem>>, vector<8x1xf32>
    %307 = vector.broadcast %306 : vector<8x1xf32> to vector<8x128xf32>
    %308 = vector.broadcast %3 : vector<1x128xf32> to vector<8x128xf32>
    %309 = arith.mulf %307, %308 : vector<8x128xf32>
    %310 = arith.addf %305, %309 : vector<8x128xf32>
    %cst_49 = arith.constant dense<0.000000e+00> : vector<8x128xf32>
    %311 = tpu.matmul %251, %8, %cst_49 {dimension_numbers = #tpu.dot_dimension_numbers<[1], [0], [0], [1], [0, 0, 1, 1], [], []>} : vector<8x32xbf16>, vector<32x128xbf16>, vector<8x128xf32> -> vector<8x128xf32>
    %312 = arith.addf %310, %311 : vector<8x128xf32>
    %313 = vector.broadcast %4 : vector<1x128xf32> to vector<8x128xf32>
    %314 = arith.addf %312, %313 : vector<8x128xf32>
    %315 = arith.negf %314 : vector<8x128xf32>
    %316 = math.exp %315 : vector<8x128xf32>
    %cst_50 = arith.constant 1.000000e+00 : f32
    %317 = vector.broadcast %cst_50 : f32 to vector<8x128xf32>
    %318 = arith.addf %317, %316 : vector<8x128xf32>
    %319 = arith.divf %317, %318 : vector<8x128xf32>
    %320 = math.tanh %314 : vector<8x128xf32>
    %321 = vector.extract_strided_slice %319 {offsets = [0, 0], sizes = [8, 32], strides = [1, 1]} : vector<8x128xf32> to vector<8x32xf32>
    %322 = vector.extract_strided_slice %319 {offsets = [0, 32], sizes = [8, 32], strides = [1, 1]} : vector<8x128xf32> to vector<8x32xf32>
    %323 = vector.extract_strided_slice %320 {offsets = [0, 64], sizes = [8, 32], strides = [1, 1]} : vector<8x128xf32> to vector<8x32xf32>
    %324 = vector.extract_strided_slice %319 {offsets = [0, 96], sizes = [8, 32], strides = [1, 1]} : vector<8x128xf32> to vector<8x32xf32>
    %325 = arith.mulf %322, %247 : vector<8x32xf32>
    %326 = arith.mulf %321, %323 : vector<8x32xf32>
    %327 = arith.addf %325, %326 : vector<8x32xf32>
    %328 = math.tanh %327 : vector<8x32xf32>
    %329 = arith.mulf %324, %328 : vector<8x32xf32>
    %c0_51 = arith.constant 0 : index
    %c96 = arith.constant 96 : index
    %330 = vector.load %arg19[%c0_51, %c96] : memref<8x256xf32, #tpu.memory_space<vmem>>, vector<8x32xf32>
    tpu.vector_store %arg19[%c0_51, %c96], %329 {strides = array<i32>} : memref<8x256xf32, #tpu.memory_space<vmem>>, vector<8x32xf32>,
    %331 = arith.truncf %329 : vector<8x32xf32> to vector<8x32xbf16>
    %332 = arith.truncf %327 : vector<8x32xf32> to vector<8x32xbf16>
    %cst_52 = arith.constant dense<0.000000e+00> : vector<8x256xf32>
    %333 = tpu.matmul %331, %5, %cst_52 {dimension_numbers = #tpu.dot_dimension_numbers<[1], [0], [0], [1], [0, 0, 1, 1], [], []>} : vector<8x32xbf16>, vector<32x256xbf16>, vector<8x256xf32> -> vector<8x256xf32>
    %cst_53 = arith.constant dense<0.000000e+00> : vector<8x256xf32>
    %334 = tpu.matmul %332, %6, %cst_53 {dimension_numbers = #tpu.dot_dimension_numbers<[1], [0], [0], [1], [0, 0, 1, 1], [], []>} : vector<8x32xbf16>, vector<32x256xbf16>, vector<8x256xf32> -> vector<8x256xf32>
    %335 = arith.addf %333, %334 : vector<8x256xf32>
    %336 = vector.broadcast %2 : vector<1x256xf32> to vector<8x256xf32>
    %337 = arith.addf %335, %336 : vector<8x256xf32>
    %338 = arith.addf %337, %0 : vector<8x256xf32>
    %339 = math.tanh %338 : vector<8x256xf32>
    %340 = arith.truncf %339 : vector<8x256xf32> to vector<8x256xbf16>
    %cst_54 = arith.constant dense<0.000000e+00> : vector<8x8xf32>
    %341 = tpu.matmul %340, %7, %cst_54 {dimension_numbers = #tpu.dot_dimension_numbers<[1], [0], [0], [1], [0, 0, 1, 1], [], []>} : vector<8x256xbf16>, vector<256x8xbf16>, vector<8x8xf32> -> vector<8x8xf32>
    %342 = math.exp %341 : vector<8x8xf32>
    %cst_55 = arith.constant dense<0.000000e+00> : vector<8xf32>
    %343 = vector.multi_reduction <add>, %342, %cst_55 [1] : vector<8x8xf32> to vector<8xf32>
    %344 = vector.shape_cast %343 : vector<8xf32> to vector<8x1xf32>
    %345 = vector.broadcast %344 : vector<8x1xf32> to vector<8x8xf32>
    %346 = arith.divf %342, %345 : vector<8x8xf32>
    %347 = vector.extract_strided_slice %346 {offsets = [0, 0], sizes = [8, 1], strides = [1, 1]} : vector<8x8xf32> to vector<8x1xf32>
    %348 = vector.extract_strided_slice %1 {offsets = [0, 0], sizes = [8, 128], strides = [1, 1]} : vector<8x1024xf32> to vector<8x128xf32>
    %349 = vector.broadcast %347 : vector<8x1xf32> to vector<8x128xf32>
    %350 = arith.mulf %349, %348 : vector<8x128xf32>
    %351 = vector.extract_strided_slice %346 {offsets = [0, 1], sizes = [8, 1], strides = [1, 1]} : vector<8x8xf32> to vector<8x1xf32>
    %352 = vector.extract_strided_slice %1 {offsets = [0, 128], sizes = [8, 128], strides = [1, 1]} : vector<8x1024xf32> to vector<8x128xf32>
    %353 = vector.broadcast %351 : vector<8x1xf32> to vector<8x128xf32>
    %354 = arith.mulf %353, %352 : vector<8x128xf32>
    %355 = arith.addf %350, %354 : vector<8x128xf32>
    %356 = vector.extract_strided_slice %346 {offsets = [0, 2], sizes = [8, 1], strides = [1, 1]} : vector<8x8xf32> to vector<8x1xf32>
    %357 = vector.extract_strided_slice %1 {offsets = [0, 256], sizes = [8, 128], strides = [1, 1]} : vector<8x1024xf32> to vector<8x128xf32>
    %358 = vector.broadcast %356 : vector<8x1xf32> to vector<8x128xf32>
    %359 = arith.mulf %358, %357 : vector<8x128xf32>
    %360 = arith.addf %355, %359 : vector<8x128xf32>
    %361 = vector.extract_strided_slice %346 {offsets = [0, 3], sizes = [8, 1], strides = [1, 1]} : vector<8x8xf32> to vector<8x1xf32>
    %362 = vector.extract_strided_slice %1 {offsets = [0, 384], sizes = [8, 128], strides = [1, 1]} : vector<8x1024xf32> to vector<8x128xf32>
    %363 = vector.broadcast %361 : vector<8x1xf32> to vector<8x128xf32>
    %364 = arith.mulf %363, %362 : vector<8x128xf32>
    %365 = arith.addf %360, %364 : vector<8x128xf32>
    %366 = vector.extract_strided_slice %346 {offsets = [0, 4], sizes = [8, 1], strides = [1, 1]} : vector<8x8xf32> to vector<8x1xf32>
    %367 = vector.extract_strided_slice %1 {offsets = [0, 512], sizes = [8, 128], strides = [1, 1]} : vector<8x1024xf32> to vector<8x128xf32>
    %368 = vector.broadcast %366 : vector<8x1xf32> to vector<8x128xf32>
    %369 = arith.mulf %368, %367 : vector<8x128xf32>
    %370 = arith.addf %365, %369 : vector<8x128xf32>
    %371 = vector.extract_strided_slice %346 {offsets = [0, 5], sizes = [8, 1], strides = [1, 1]} : vector<8x8xf32> to vector<8x1xf32>
    %372 = vector.extract_strided_slice %1 {offsets = [0, 640], sizes = [8, 128], strides = [1, 1]} : vector<8x1024xf32> to vector<8x128xf32>
    %373 = vector.broadcast %371 : vector<8x1xf32> to vector<8x128xf32>
    %374 = arith.mulf %373, %372 : vector<8x128xf32>
    %375 = arith.addf %370, %374 : vector<8x128xf32>
    %376 = vector.extract_strided_slice %346 {offsets = [0, 6], sizes = [8, 1], strides = [1, 1]} : vector<8x8xf32> to vector<8x1xf32>
    %377 = vector.extract_strided_slice %1 {offsets = [0, 768], sizes = [8, 128], strides = [1, 1]} : vector<8x1024xf32> to vector<8x128xf32>
    %378 = vector.broadcast %376 : vector<8x1xf32> to vector<8x128xf32>
    %379 = arith.mulf %378, %377 : vector<8x128xf32>
    %380 = arith.addf %375, %379 : vector<8x128xf32>
    %381 = vector.extract_strided_slice %346 {offsets = [0, 7], sizes = [8, 1], strides = [1, 1]} : vector<8x8xf32> to vector<8x1xf32>
    %382 = vector.extract_strided_slice %1 {offsets = [0, 896], sizes = [8, 128], strides = [1, 1]} : vector<8x1024xf32> to vector<8x128xf32>
    %383 = vector.broadcast %381 : vector<8x1xf32> to vector<8x128xf32>
    %384 = arith.mulf %383, %382 : vector<8x128xf32>
    %385 = arith.addf %380, %384 : vector<8x128xf32>
    %c0_56 = arith.constant 0 : index
    %c4 = arith.constant 4 : index
    %386 = vector.load %arg4[%c0_56, %c4] : memref<8x8xf32, #tpu.memory_space<vmem>>, vector<8x1xf32>
    %387 = vector.broadcast %386 : vector<8x1xf32> to vector<8x128xf32>
    %388 = vector.broadcast %3 : vector<1x128xf32> to vector<8x128xf32>
    %389 = arith.mulf %387, %388 : vector<8x128xf32>
    %390 = arith.addf %385, %389 : vector<8x128xf32>
    %cst_57 = arith.constant dense<0.000000e+00> : vector<8x128xf32>
    %391 = tpu.matmul %331, %8, %cst_57 {dimension_numbers = #tpu.dot_dimension_numbers<[1], [0], [0], [1], [0, 0, 1, 1], [], []>} : vector<8x32xbf16>, vector<32x128xbf16>, vector<8x128xf32> -> vector<8x128xf32>
    %392 = arith.addf %390, %391 : vector<8x128xf32>
    %393 = vector.broadcast %4 : vector<1x128xf32> to vector<8x128xf32>
    %394 = arith.addf %392, %393 : vector<8x128xf32>
    %395 = arith.negf %394 : vector<8x128xf32>
    %396 = math.exp %395 : vector<8x128xf32>
    %cst_58 = arith.constant 1.000000e+00 : f32
    %397 = vector.broadcast %cst_58 : f32 to vector<8x128xf32>
    %398 = arith.addf %397, %396 : vector<8x128xf32>
    %399 = arith.divf %397, %398 : vector<8x128xf32>
    %400 = math.tanh %394 : vector<8x128xf32>
    %401 = vector.extract_strided_slice %399 {offsets = [0, 0], sizes = [8, 32], strides = [1, 1]} : vector<8x128xf32> to vector<8x32xf32>
    %402 = vector.extract_strided_slice %399 {offsets = [0, 32], sizes = [8, 32], strides = [1, 1]} : vector<8x128xf32> to vector<8x32xf32>
    %403 = vector.extract_strided_slice %400 {offsets = [0, 64], sizes = [8, 32], strides = [1, 1]} : vector<8x128xf32> to vector<8x32xf32>
    %404 = vector.extract_strided_slice %399 {offsets = [0, 96], sizes = [8, 32], strides = [1, 1]} : vector<8x128xf32> to vector<8x32xf32>
    %405 = arith.mulf %402, %327 : vector<8x32xf32>
    %406 = arith.mulf %401, %403 : vector<8x32xf32>
    %407 = arith.addf %405, %406 : vector<8x32xf32>
    %408 = math.tanh %407 : vector<8x32xf32>
    %409 = arith.mulf %404, %408 : vector<8x32xf32>
    %c0_59 = arith.constant 0 : index
    %c128 = arith.constant 128 : index
    %410 = vector.load %arg19[%c0_59, %c128] : memref<8x256xf32, #tpu.memory_space<vmem>>, vector<8x32xf32>
    tpu.vector_store %arg19[%c0_59, %c128], %409 {strides = array<i32>} : memref<8x256xf32, #tpu.memory_space<vmem>>, vector<8x32xf32>,
    %411 = arith.truncf %409 : vector<8x32xf32> to vector<8x32xbf16>
    %412 = arith.truncf %407 : vector<8x32xf32> to vector<8x32xbf16>
    %cst_60 = arith.constant dense<0.000000e+00> : vector<8x256xf32>
    %413 = tpu.matmul %411, %5, %cst_60 {dimension_numbers = #tpu.dot_dimension_numbers<[1], [0], [0], [1], [0, 0, 1, 1], [], []>} : vector<8x32xbf16>, vector<32x256xbf16>, vector<8x256xf32> -> vector<8x256xf32>
    %cst_61 = arith.constant dense<0.000000e+00> : vector<8x256xf32>
    %414 = tpu.matmul %412, %6, %cst_61 {dimension_numbers = #tpu.dot_dimension_numbers<[1], [0], [0], [1], [0, 0, 1, 1], [], []>} : vector<8x32xbf16>, vector<32x256xbf16>, vector<8x256xf32> -> vector<8x256xf32>
    %415 = arith.addf %413, %414 : vector<8x256xf32>
    %416 = vector.broadcast %2 : vector<1x256xf32> to vector<8x256xf32>
    %417 = arith.addf %415, %416 : vector<8x256xf32>
    %418 = arith.addf %417, %0 : vector<8x256xf32>
    %419 = math.tanh %418 : vector<8x256xf32>
    %420 = arith.truncf %419 : vector<8x256xf32> to vector<8x256xbf16>
    %cst_62 = arith.constant dense<0.000000e+00> : vector<8x8xf32>
    %421 = tpu.matmul %420, %7, %cst_62 {dimension_numbers = #tpu.dot_dimension_numbers<[1], [0], [0], [1], [0, 0, 1, 1], [], []>} : vector<8x256xbf16>, vector<256x8xbf16>, vector<8x8xf32> -> vector<8x8xf32>
    %422 = math.exp %421 : vector<8x8xf32>
    %cst_63 = arith.constant dense<0.000000e+00> : vector<8xf32>
    %423 = vector.multi_reduction <add>, %422, %cst_63 [1] : vector<8x8xf32> to vector<8xf32>
    %424 = vector.shape_cast %423 : vector<8xf32> to vector<8x1xf32>
    %425 = vector.broadcast %424 : vector<8x1xf32> to vector<8x8xf32>
    %426 = arith.divf %422, %425 : vector<8x8xf32>
    %427 = vector.extract_strided_slice %426 {offsets = [0, 0], sizes = [8, 1], strides = [1, 1]} : vector<8x8xf32> to vector<8x1xf32>
    %428 = vector.extract_strided_slice %1 {offsets = [0, 0], sizes = [8, 128], strides = [1, 1]} : vector<8x1024xf32> to vector<8x128xf32>
    %429 = vector.broadcast %427 : vector<8x1xf32> to vector<8x128xf32>
    %430 = arith.mulf %429, %428 : vector<8x128xf32>
    %431 = vector.extract_strided_slice %426 {offsets = [0, 1], sizes = [8, 1], strides = [1, 1]} : vector<8x8xf32> to vector<8x1xf32>
    %432 = vector.extract_strided_slice %1 {offsets = [0, 128], sizes = [8, 128], strides = [1, 1]} : vector<8x1024xf32> to vector<8x128xf32>
    %433 = vector.broadcast %431 : vector<8x1xf32> to vector<8x128xf32>
    %434 = arith.mulf %433, %432 : vector<8x128xf32>
    %435 = arith.addf %430, %434 : vector<8x128xf32>
    %436 = vector.extract_strided_slice %426 {offsets = [0, 2], sizes = [8, 1], strides = [1, 1]} : vector<8x8xf32> to vector<8x1xf32>
    %437 = vector.extract_strided_slice %1 {offsets = [0, 256], sizes = [8, 128], strides = [1, 1]} : vector<8x1024xf32> to vector<8x128xf32>
    %438 = vector.broadcast %436 : vector<8x1xf32> to vector<8x128xf32>
    %439 = arith.mulf %438, %437 : vector<8x128xf32>
    %440 = arith.addf %435, %439 : vector<8x128xf32>
    %441 = vector.extract_strided_slice %426 {offsets = [0, 3], sizes = [8, 1], strides = [1, 1]} : vector<8x8xf32> to vector<8x1xf32>
    %442 = vector.extract_strided_slice %1 {offsets = [0, 384], sizes = [8, 128], strides = [1, 1]} : vector<8x1024xf32> to vector<8x128xf32>
    %443 = vector.broadcast %441 : vector<8x1xf32> to vector<8x128xf32>
    %444 = arith.mulf %443, %442 : vector<8x128xf32>
    %445 = arith.addf %440, %444 : vector<8x128xf32>
    %446 = vector.extract_strided_slice %426 {offsets = [0, 4], sizes = [8, 1], strides = [1, 1]} : vector<8x8xf32> to vector<8x1xf32>
    %447 = vector.extract_strided_slice %1 {offsets = [0, 512], sizes = [8, 128], strides = [1, 1]} : vector<8x1024xf32> to vector<8x128xf32>
    %448 = vector.broadcast %446 : vector<8x1xf32> to vector<8x128xf32>
    %449 = arith.mulf %448, %447 : vector<8x128xf32>
    %450 = arith.addf %445, %449 : vector<8x128xf32>
    %451 = vector.extract_strided_slice %426 {offsets = [0, 5], sizes = [8, 1], strides = [1, 1]} : vector<8x8xf32> to vector<8x1xf32>
    %452 = vector.extract_strided_slice %1 {offsets = [0, 640], sizes = [8, 128], strides = [1, 1]} : vector<8x1024xf32> to vector<8x128xf32>
    %453 = vector.broadcast %451 : vector<8x1xf32> to vector<8x128xf32>
    %454 = arith.mulf %453, %452 : vector<8x128xf32>
    %455 = arith.addf %450, %454 : vector<8x128xf32>
    %456 = vector.extract_strided_slice %426 {offsets = [0, 6], sizes = [8, 1], strides = [1, 1]} : vector<8x8xf32> to vector<8x1xf32>
    %457 = vector.extract_strided_slice %1 {offsets = [0, 768], sizes = [8, 128], strides = [1, 1]} : vector<8x1024xf32> to vector<8x128xf32>
    %458 = vector.broadcast %456 : vector<8x1xf32> to vector<8x128xf32>
    %459 = arith.mulf %458, %457 : vector<8x128xf32>
    %460 = arith.addf %455, %459 : vector<8x128xf32>
    %461 = vector.extract_strided_slice %426 {offsets = [0, 7], sizes = [8, 1], strides = [1, 1]} : vector<8x8xf32> to vector<8x1xf32>
    %462 = vector.extract_strided_slice %1 {offsets = [0, 896], sizes = [8, 128], strides = [1, 1]} : vector<8x1024xf32> to vector<8x128xf32>
    %463 = vector.broadcast %461 : vector<8x1xf32> to vector<8x128xf32>
    %464 = arith.mulf %463, %462 : vector<8x128xf32>
    %465 = arith.addf %460, %464 : vector<8x128xf32>
    %c0_64 = arith.constant 0 : index
    %c5 = arith.constant 5 : index
    %466 = vector.load %arg4[%c0_64, %c5] : memref<8x8xf32, #tpu.memory_space<vmem>>, vector<8x1xf32>
    %467 = vector.broadcast %466 : vector<8x1xf32> to vector<8x128xf32>
    %468 = vector.broadcast %3 : vector<1x128xf32> to vector<8x128xf32>
    %469 = arith.mulf %467, %468 : vector<8x128xf32>
    %470 = arith.addf %465, %469 : vector<8x128xf32>
    %cst_65 = arith.constant dense<0.000000e+00> : vector<8x128xf32>
    %471 = tpu.matmul %411, %8, %cst_65 {dimension_numbers = #tpu.dot_dimension_numbers<[1], [0], [0], [1], [0, 0, 1, 1], [], []>} : vector<8x32xbf16>, vector<32x128xbf16>, vector<8x128xf32> -> vector<8x128xf32>
    %472 = arith.addf %470, %471 : vector<8x128xf32>
    %473 = vector.broadcast %4 : vector<1x128xf32> to vector<8x128xf32>
    %474 = arith.addf %472, %473 : vector<8x128xf32>
    %475 = arith.negf %474 : vector<8x128xf32>
    %476 = math.exp %475 : vector<8x128xf32>
    %cst_66 = arith.constant 1.000000e+00 : f32
    %477 = vector.broadcast %cst_66 : f32 to vector<8x128xf32>
    %478 = arith.addf %477, %476 : vector<8x128xf32>
    %479 = arith.divf %477, %478 : vector<8x128xf32>
    %480 = math.tanh %474 : vector<8x128xf32>
    %481 = vector.extract_strided_slice %479 {offsets = [0, 0], sizes = [8, 32], strides = [1, 1]} : vector<8x128xf32> to vector<8x32xf32>
    %482 = vector.extract_strided_slice %479 {offsets = [0, 32], sizes = [8, 32], strides = [1, 1]} : vector<8x128xf32> to vector<8x32xf32>
    %483 = vector.extract_strided_slice %480 {offsets = [0, 64], sizes = [8, 32], strides = [1, 1]} : vector<8x128xf32> to vector<8x32xf32>
    %484 = vector.extract_strided_slice %479 {offsets = [0, 96], sizes = [8, 32], strides = [1, 1]} : vector<8x128xf32> to vector<8x32xf32>
    %485 = arith.mulf %482, %407 : vector<8x32xf32>
    %486 = arith.mulf %481, %483 : vector<8x32xf32>
    %487 = arith.addf %485, %486 : vector<8x32xf32>
    %488 = math.tanh %487 : vector<8x32xf32>
    %489 = arith.mulf %484, %488 : vector<8x32xf32>
    %c0_67 = arith.constant 0 : index
    %c160 = arith.constant 160 : index
    %490 = vector.load %arg19[%c0_67, %c160] : memref<8x256xf32, #tpu.memory_space<vmem>>, vector<8x32xf32>
    tpu.vector_store %arg19[%c0_67, %c160], %489 {strides = array<i32>} : memref<8x256xf32, #tpu.memory_space<vmem>>, vector<8x32xf32>,
    %491 = arith.truncf %489 : vector<8x32xf32> to vector<8x32xbf16>
    %492 = arith.truncf %487 : vector<8x32xf32> to vector<8x32xbf16>
    %cst_68 = arith.constant dense<0.000000e+00> : vector<8x256xf32>
    %493 = tpu.matmul %491, %5, %cst_68 {dimension_numbers = #tpu.dot_dimension_numbers<[1], [0], [0], [1], [0, 0, 1, 1], [], []>} : vector<8x32xbf16>, vector<32x256xbf16>, vector<8x256xf32> -> vector<8x256xf32>
    %cst_69 = arith.constant dense<0.000000e+00> : vector<8x256xf32>
    %494 = tpu.matmul %492, %6, %cst_69 {dimension_numbers = #tpu.dot_dimension_numbers<[1], [0], [0], [1], [0, 0, 1, 1], [], []>} : vector<8x32xbf16>, vector<32x256xbf16>, vector<8x256xf32> -> vector<8x256xf32>
    %495 = arith.addf %493, %494 : vector<8x256xf32>
    %496 = vector.broadcast %2 : vector<1x256xf32> to vector<8x256xf32>
    %497 = arith.addf %495, %496 : vector<8x256xf32>
    %498 = arith.addf %497, %0 : vector<8x256xf32>
    %499 = math.tanh %498 : vector<8x256xf32>
    %500 = arith.truncf %499 : vector<8x256xf32> to vector<8x256xbf16>
    %cst_70 = arith.constant dense<0.000000e+00> : vector<8x8xf32>
    %501 = tpu.matmul %500, %7, %cst_70 {dimension_numbers = #tpu.dot_dimension_numbers<[1], [0], [0], [1], [0, 0, 1, 1], [], []>} : vector<8x256xbf16>, vector<256x8xbf16>, vector<8x8xf32> -> vector<8x8xf32>
    %502 = math.exp %501 : vector<8x8xf32>
    %cst_71 = arith.constant dense<0.000000e+00> : vector<8xf32>
    %503 = vector.multi_reduction <add>, %502, %cst_71 [1] : vector<8x8xf32> to vector<8xf32>
    %504 = vector.shape_cast %503 : vector<8xf32> to vector<8x1xf32>
    %505 = vector.broadcast %504 : vector<8x1xf32> to vector<8x8xf32>
    %506 = arith.divf %502, %505 : vector<8x8xf32>
    %507 = vector.extract_strided_slice %506 {offsets = [0, 0], sizes = [8, 1], strides = [1, 1]} : vector<8x8xf32> to vector<8x1xf32>
    %508 = vector.extract_strided_slice %1 {offsets = [0, 0], sizes = [8, 128], strides = [1, 1]} : vector<8x1024xf32> to vector<8x128xf32>
    %509 = vector.broadcast %507 : vector<8x1xf32> to vector<8x128xf32>
    %510 = arith.mulf %509, %508 : vector<8x128xf32>
    %511 = vector.extract_strided_slice %506 {offsets = [0, 1], sizes = [8, 1], strides = [1, 1]} : vector<8x8xf32> to vector<8x1xf32>
    %512 = vector.extract_strided_slice %1 {offsets = [0, 128], sizes = [8, 128], strides = [1, 1]} : vector<8x1024xf32> to vector<8x128xf32>
    %513 = vector.broadcast %511 : vector<8x1xf32> to vector<8x128xf32>
    %514 = arith.mulf %513, %512 : vector<8x128xf32>
    %515 = arith.addf %510, %514 : vector<8x128xf32>
    %516 = vector.extract_strided_slice %506 {offsets = [0, 2], sizes = [8, 1], strides = [1, 1]} : vector<8x8xf32> to vector<8x1xf32>
    %517 = vector.extract_strided_slice %1 {offsets = [0, 256], sizes = [8, 128], strides = [1, 1]} : vector<8x1024xf32> to vector<8x128xf32>
    %518 = vector.broadcast %516 : vector<8x1xf32> to vector<8x128xf32>
    %519 = arith.mulf %518, %517 : vector<8x128xf32>
    %520 = arith.addf %515, %519 : vector<8x128xf32>
    %521 = vector.extract_strided_slice %506 {offsets = [0, 3], sizes = [8, 1], strides = [1, 1]} : vector<8x8xf32> to vector<8x1xf32>
    %522 = vector.extract_strided_slice %1 {offsets = [0, 384], sizes = [8, 128], strides = [1, 1]} : vector<8x1024xf32> to vector<8x128xf32>
    %523 = vector.broadcast %521 : vector<8x1xf32> to vector<8x128xf32>
    %524 = arith.mulf %523, %522 : vector<8x128xf32>
    %525 = arith.addf %520, %524 : vector<8x128xf32>
    %526 = vector.extract_strided_slice %506 {offsets = [0, 4], sizes = [8, 1], strides = [1, 1]} : vector<8x8xf32> to vector<8x1xf32>
    %527 = vector.extract_strided_slice %1 {offsets = [0, 512], sizes = [8, 128], strides = [1, 1]} : vector<8x1024xf32> to vector<8x128xf32>
    %528 = vector.broadcast %526 : vector<8x1xf32> to vector<8x128xf32>
    %529 = arith.mulf %528, %527 : vector<8x128xf32>
    %530 = arith.addf %525, %529 : vector<8x128xf32>
    %531 = vector.extract_strided_slice %506 {offsets = [0, 5], sizes = [8, 1], strides = [1, 1]} : vector<8x8xf32> to vector<8x1xf32>
    %532 = vector.extract_strided_slice %1 {offsets = [0, 640], sizes = [8, 128], strides = [1, 1]} : vector<8x1024xf32> to vector<8x128xf32>
    %533 = vector.broadcast %531 : vector<8x1xf32> to vector<8x128xf32>
    %534 = arith.mulf %533, %532 : vector<8x128xf32>
    %535 = arith.addf %530, %534 : vector<8x128xf32>
    %536 = vector.extract_strided_slice %506 {offsets = [0, 6], sizes = [8, 1], strides = [1, 1]} : vector<8x8xf32> to vector<8x1xf32>
    %537 = vector.extract_strided_slice %1 {offsets = [0, 768], sizes = [8, 128], strides = [1, 1]} : vector<8x1024xf32> to vector<8x128xf32>
    %538 = vector.broadcast %536 : vector<8x1xf32> to vector<8x128xf32>
    %539 = arith.mulf %538, %537 : vector<8x128xf32>
    %540 = arith.addf %535, %539 : vector<8x128xf32>
    %541 = vector.extract_strided_slice %506 {offsets = [0, 7], sizes = [8, 1], strides = [1, 1]} : vector<8x8xf32> to vector<8x1xf32>
    %542 = vector.extract_strided_slice %1 {offsets = [0, 896], sizes = [8, 128], strides = [1, 1]} : vector<8x1024xf32> to vector<8x128xf32>
    %543 = vector.broadcast %541 : vector<8x1xf32> to vector<8x128xf32>
    %544 = arith.mulf %543, %542 : vector<8x128xf32>
    %545 = arith.addf %540, %544 : vector<8x128xf32>
    %c0_72 = arith.constant 0 : index
    %c6 = arith.constant 6 : index
    %546 = vector.load %arg4[%c0_72, %c6] : memref<8x8xf32, #tpu.memory_space<vmem>>, vector<8x1xf32>
    %547 = vector.broadcast %546 : vector<8x1xf32> to vector<8x128xf32>
    %548 = vector.broadcast %3 : vector<1x128xf32> to vector<8x128xf32>
    %549 = arith.mulf %547, %548 : vector<8x128xf32>
    %550 = arith.addf %545, %549 : vector<8x128xf32>
    %cst_73 = arith.constant dense<0.000000e+00> : vector<8x128xf32>
    %551 = tpu.matmul %491, %8, %cst_73 {dimension_numbers = #tpu.dot_dimension_numbers<[1], [0], [0], [1], [0, 0, 1, 1], [], []>} : vector<8x32xbf16>, vector<32x128xbf16>, vector<8x128xf32> -> vector<8x128xf32>
    %552 = arith.addf %550, %551 : vector<8x128xf32>
    %553 = vector.broadcast %4 : vector<1x128xf32> to vector<8x128xf32>
    %554 = arith.addf %552, %553 : vector<8x128xf32>
    %555 = arith.negf %554 : vector<8x128xf32>
    %556 = math.exp %555 : vector<8x128xf32>
    %cst_74 = arith.constant 1.000000e+00 : f32
    %557 = vector.broadcast %cst_74 : f32 to vector<8x128xf32>
    %558 = arith.addf %557, %556 : vector<8x128xf32>
    %559 = arith.divf %557, %558 : vector<8x128xf32>
    %560 = math.tanh %554 : vector<8x128xf32>
    %561 = vector.extract_strided_slice %559 {offsets = [0, 0], sizes = [8, 32], strides = [1, 1]} : vector<8x128xf32> to vector<8x32xf32>
    %562 = vector.extract_strided_slice %559 {offsets = [0, 32], sizes = [8, 32], strides = [1, 1]} : vector<8x128xf32> to vector<8x32xf32>
    %563 = vector.extract_strided_slice %560 {offsets = [0, 64], sizes = [8, 32], strides = [1, 1]} : vector<8x128xf32> to vector<8x32xf32>
    %564 = vector.extract_strided_slice %559 {offsets = [0, 96], sizes = [8, 32], strides = [1, 1]} : vector<8x128xf32> to vector<8x32xf32>
    %565 = arith.mulf %562, %487 : vector<8x32xf32>
    %566 = arith.mulf %561, %563 : vector<8x32xf32>
    %567 = arith.addf %565, %566 : vector<8x32xf32>
    %568 = math.tanh %567 : vector<8x32xf32>
    %569 = arith.mulf %564, %568 : vector<8x32xf32>
    %c0_75 = arith.constant 0 : index
    %c192 = arith.constant 192 : index
    %570 = vector.load %arg19[%c0_75, %c192] : memref<8x256xf32, #tpu.memory_space<vmem>>, vector<8x32xf32>
    tpu.vector_store %arg19[%c0_75, %c192], %569 {strides = array<i32>} : memref<8x256xf32, #tpu.memory_space<vmem>>, vector<8x32xf32>,
    %571 = arith.truncf %569 : vector<8x32xf32> to vector<8x32xbf16>
    %572 = arith.truncf %567 : vector<8x32xf32> to vector<8x32xbf16>
    %cst_76 = arith.constant dense<0.000000e+00> : vector<8x256xf32>
    %573 = tpu.matmul %571, %5, %cst_76 {dimension_numbers = #tpu.dot_dimension_numbers<[1], [0], [0], [1], [0, 0, 1, 1], [], []>} : vector<8x32xbf16>, vector<32x256xbf16>, vector<8x256xf32> -> vector<8x256xf32>
    %cst_77 = arith.constant dense<0.000000e+00> : vector<8x256xf32>
    %574 = tpu.matmul %572, %6, %cst_77 {dimension_numbers = #tpu.dot_dimension_numbers<[1], [0], [0], [1], [0, 0, 1, 1], [], []>} : vector<8x32xbf16>, vector<32x256xbf16>, vector<8x256xf32> -> vector<8x256xf32>
    %575 = arith.addf %573, %574 : vector<8x256xf32>
    %576 = vector.broadcast %2 : vector<1x256xf32> to vector<8x256xf32>
    %577 = arith.addf %575, %576 : vector<8x256xf32>
    %578 = arith.addf %577, %0 : vector<8x256xf32>
    %579 = math.tanh %578 : vector<8x256xf32>
    %580 = arith.truncf %579 : vector<8x256xf32> to vector<8x256xbf16>
    %cst_78 = arith.constant dense<0.000000e+00> : vector<8x8xf32>
    %581 = tpu.matmul %580, %7, %cst_78 {dimension_numbers = #tpu.dot_dimension_numbers<[1], [0], [0], [1], [0, 0, 1, 1], [], []>} : vector<8x256xbf16>, vector<256x8xbf16>, vector<8x8xf32> -> vector<8x8xf32>
    %582 = math.exp %581 : vector<8x8xf32>
    %cst_79 = arith.constant dense<0.000000e+00> : vector<8xf32>
    %583 = vector.multi_reduction <add>, %582, %cst_79 [1] : vector<8x8xf32> to vector<8xf32>
    %584 = vector.shape_cast %583 : vector<8xf32> to vector<8x1xf32>
    %585 = vector.broadcast %584 : vector<8x1xf32> to vector<8x8xf32>
    %586 = arith.divf %582, %585 : vector<8x8xf32>
    %587 = vector.extract_strided_slice %586 {offsets = [0, 0], sizes = [8, 1], strides = [1, 1]} : vector<8x8xf32> to vector<8x1xf32>
    %588 = vector.extract_strided_slice %1 {offsets = [0, 0], sizes = [8, 128], strides = [1, 1]} : vector<8x1024xf32> to vector<8x128xf32>
    %589 = vector.broadcast %587 : vector<8x1xf32> to vector<8x128xf32>
    %590 = arith.mulf %589, %588 : vector<8x128xf32>
    %591 = vector.extract_strided_slice %586 {offsets = [0, 1], sizes = [8, 1], strides = [1, 1]} : vector<8x8xf32> to vector<8x1xf32>
    %592 = vector.extract_strided_slice %1 {offsets = [0, 128], sizes = [8, 128], strides = [1, 1]} : vector<8x1024xf32> to vector<8x128xf32>
    %593 = vector.broadcast %591 : vector<8x1xf32> to vector<8x128xf32>
    %594 = arith.mulf %593, %592 : vector<8x128xf32>
    %595 = arith.addf %590, %594 : vector<8x128xf32>
    %596 = vector.extract_strided_slice %586 {offsets = [0, 2], sizes = [8, 1], strides = [1, 1]} : vector<8x8xf32> to vector<8x1xf32>
    %597 = vector.extract_strided_slice %1 {offsets = [0, 256], sizes = [8, 128], strides = [1, 1]} : vector<8x1024xf32> to vector<8x128xf32>
    %598 = vector.broadcast %596 : vector<8x1xf32> to vector<8x128xf32>
    %599 = arith.mulf %598, %597 : vector<8x128xf32>
    %600 = arith.addf %595, %599 : vector<8x128xf32>
    %601 = vector.extract_strided_slice %586 {offsets = [0, 3], sizes = [8, 1], strides = [1, 1]} : vector<8x8xf32> to vector<8x1xf32>
    %602 = vector.extract_strided_slice %1 {offsets = [0, 384], sizes = [8, 128], strides = [1, 1]} : vector<8x1024xf32> to vector<8x128xf32>
    %603 = vector.broadcast %601 : vector<8x1xf32> to vector<8x128xf32>
    %604 = arith.mulf %603, %602 : vector<8x128xf32>
    %605 = arith.addf %600, %604 : vector<8x128xf32>
    %606 = vector.extract_strided_slice %586 {offsets = [0, 4], sizes = [8, 1], strides = [1, 1]} : vector<8x8xf32> to vector<8x1xf32>
    %607 = vector.extract_strided_slice %1 {offsets = [0, 512], sizes = [8, 128], strides = [1, 1]} : vector<8x1024xf32> to vector<8x128xf32>
    %608 = vector.broadcast %606 : vector<8x1xf32> to vector<8x128xf32>
    %609 = arith.mulf %608, %607 : vector<8x128xf32>
    %610 = arith.addf %605, %609 : vector<8x128xf32>
    %611 = vector.extract_strided_slice %586 {offsets = [0, 5], sizes = [8, 1], strides = [1, 1]} : vector<8x8xf32> to vector<8x1xf32>
    %612 = vector.extract_strided_slice %1 {offsets = [0, 640], sizes = [8, 128], strides = [1, 1]} : vector<8x1024xf32> to vector<8x128xf32>
    %613 = vector.broadcast %611 : vector<8x1xf32> to vector<8x128xf32>
    %614 = arith.mulf %613, %612 : vector<8x128xf32>
    %615 = arith.addf %610, %614 : vector<8x128xf32>
    %616 = vector.extract_strided_slice %586 {offsets = [0, 6], sizes = [8, 1], strides = [1, 1]} : vector<8x8xf32> to vector<8x1xf32>
    %617 = vector.extract_strided_slice %1 {offsets = [0, 768], sizes = [8, 128], strides = [1, 1]} : vector<8x1024xf32> to vector<8x128xf32>
    %618 = vector.broadcast %616 : vector<8x1xf32> to vector<8x128xf32>
    %619 = arith.mulf %618, %617 : vector<8x128xf32>
    %620 = arith.addf %615, %619 : vector<8x128xf32>
    %621 = vector.extract_strided_slice %586 {offsets = [0, 7], sizes = [8, 1], strides = [1, 1]} : vector<8x8xf32> to vector<8x1xf32>
    %622 = vector.extract_strided_slice %1 {offsets = [0, 896], sizes = [8, 128], strides = [1, 1]} : vector<8x1024xf32> to vector<8x128xf32>
    %623 = vector.broadcast %621 : vector<8x1xf32> to vector<8x128xf32>
    %624 = arith.mulf %623, %622 : vector<8x128xf32>
    %625 = arith.addf %620, %624 : vector<8x128xf32>
    %c0_80 = arith.constant 0 : index
    %c7 = arith.constant 7 : index
    %626 = vector.load %arg4[%c0_80, %c7] : memref<8x8xf32, #tpu.memory_space<vmem>>, vector<8x1xf32>
    %627 = vector.broadcast %626 : vector<8x1xf32> to vector<8x128xf32>
    %628 = vector.broadcast %3 : vector<1x128xf32> to vector<8x128xf32>
    %629 = arith.mulf %627, %628 : vector<8x128xf32>
    %630 = arith.addf %625, %629 : vector<8x128xf32>
    %cst_81 = arith.constant dense<0.000000e+00> : vector<8x128xf32>
    %631 = tpu.matmul %571, %8, %cst_81 {dimension_numbers = #tpu.dot_dimension_numbers<[1], [0], [0], [1], [0, 0, 1, 1], [], []>} : vector<8x32xbf16>, vector<32x128xbf16>, vector<8x128xf32> -> vector<8x128xf32>
    %632 = arith.addf %630, %631 : vector<8x128xf32>
    %633 = vector.broadcast %4 : vector<1x128xf32> to vector<8x128xf32>
    %634 = arith.addf %632, %633 : vector<8x128xf32>
    %635 = arith.negf %634 : vector<8x128xf32>
    %636 = math.exp %635 : vector<8x128xf32>
    %cst_82 = arith.constant 1.000000e+00 : f32
    %637 = vector.broadcast %cst_82 : f32 to vector<8x128xf32>
    %638 = arith.addf %637, %636 : vector<8x128xf32>
    %639 = arith.divf %637, %638 : vector<8x128xf32>
    %640 = math.tanh %634 : vector<8x128xf32>
    %641 = vector.extract_strided_slice %639 {offsets = [0, 0], sizes = [8, 32], strides = [1, 1]} : vector<8x128xf32> to vector<8x32xf32>
    %642 = vector.extract_strided_slice %639 {offsets = [0, 32], sizes = [8, 32], strides = [1, 1]} : vector<8x128xf32> to vector<8x32xf32>
    %643 = vector.extract_strided_slice %640 {offsets = [0, 64], sizes = [8, 32], strides = [1, 1]} : vector<8x128xf32> to vector<8x32xf32>
    %644 = vector.extract_strided_slice %639 {offsets = [0, 96], sizes = [8, 32], strides = [1, 1]} : vector<8x128xf32> to vector<8x32xf32>
    %645 = arith.mulf %642, %567 : vector<8x32xf32>
    %646 = arith.mulf %641, %643 : vector<8x32xf32>
    %647 = arith.addf %645, %646 : vector<8x32xf32>
    %648 = math.tanh %647 : vector<8x32xf32>
    %649 = arith.mulf %644, %648 : vector<8x32xf32>
    %c0_83 = arith.constant 0 : index
    %c224 = arith.constant 224 : index
    %650 = vector.load %arg19[%c0_83, %c224] : memref<8x256xf32, #tpu.memory_space<vmem>>, vector<8x32xf32>
    tpu.vector_store %arg19[%c0_83, %c224], %649 {strides = array<i32>} : memref<8x256xf32, #tpu.memory_space<vmem>>, vector<8x32xf32>,
    %c0_84 = arith.constant 0 : index
    %c0_85 = arith.constant 0 : index
    %651 = vector.load %arg19[%c0_84, %c0_85] : memref<8x256xf32, #tpu.memory_space<vmem>>, vector<8x256xf32>
    %652 = arith.truncf %651 : vector<8x256xf32> to vector<8x256xbf16>
    %c0_86 = arith.constant 0 : index
    %c0_87 = arith.constant 0 : index
    %653 = vector.load %arg12[%c0_86, %c0_87] : memref<256x32xbf16, #tpu.memory_space<vmem>>, vector<256x32xbf16>
    %cst_88 = arith.constant dense<0.000000e+00> : vector<8x32xf32>
    %654 = tpu.matmul %652, %653, %cst_88 {dimension_numbers = #tpu.dot_dimension_numbers<[1], [0], [0], [1], [0, 0, 1, 1], [], []>} : vector<8x256xbf16>, vector<256x32xbf16>, vector<8x32xf32> -> vector<8x32xf32>
    %c0_89 = arith.constant 0 : index
    %c0_90 = arith.constant 0 : index
    %655 = vector.load %arg13[%c0_89, %c0_90] : memref<1x32xf32, #tpu.memory_space<vmem>>, vector<1x32xf32>
    %656 = vector.broadcast %655 : vector<1x32xf32> to vector<8x32xf32>
    %657 = arith.addf %654, %656 : vector<8x32xf32>
    %c0_91 = arith.constant 0 : index
    %c0_92 = arith.constant 0 : index
    %658 = vector.load %arg3[%c0_91, %c0_92] : memref<8x256xf32, #tpu.memory_space<vmem>>, vector<8x256xf32>
    %659 = vector.extract_strided_slice %586 {offsets = [0, 0], sizes = [8, 1], strides = [1, 1]} : vector<8x8xf32> to vector<8x1xf32>
    %660 = vector.extract_strided_slice %658 {offsets = [0, 0], sizes = [8, 32], strides = [1, 1]} : vector<8x256xf32> to vector<8x32xf32>
    %661 = vector.broadcast %659 : vector<8x1xf32> to vector<8x32xf32>
    %662 = arith.mulf %661, %660 : vector<8x32xf32>
    %663 = vector.extract_strided_slice %586 {offsets = [0, 1], sizes = [8, 1], strides = [1, 1]} : vector<8x8xf32> to vector<8x1xf32>
    %664 = vector.extract_strided_slice %658 {offsets = [0, 32], sizes = [8, 32], strides = [1, 1]} : vector<8x256xf32> to vector<8x32xf32>
    %665 = vector.broadcast %663 : vector<8x1xf32> to vector<8x32xf32>
    %666 = arith.mulf %665, %664 : vector<8x32xf32>
    %667 = arith.addf %662, %666 : vector<8x32xf32>
    %668 = vector.extract_strided_slice %586 {offsets = [0, 2], sizes = [8, 1], strides = [1, 1]} : vector<8x8xf32> to vector<8x1xf32>
    %669 = vector.extract_strided_slice %658 {offsets = [0, 64], sizes = [8, 32], strides = [1, 1]} : vector<8x256xf32> to vector<8x32xf32>
    %670 = vector.broadcast %668 : vector<8x1xf32> to vector<8x32xf32>
    %671 = arith.mulf %670, %669 : vector<8x32xf32>
    %672 = arith.addf %667, %671 : vector<8x32xf32>
    %673 = vector.extract_strided_slice %586 {offsets = [0, 3], sizes = [8, 1], strides = [1, 1]} : vector<8x8xf32> to vector<8x1xf32>
    %674 = vector.extract_strided_slice %658 {offsets = [0, 96], sizes = [8, 32], strides = [1, 1]} : vector<8x256xf32> to vector<8x32xf32>
    %675 = vector.broadcast %673 : vector<8x1xf32> to vector<8x32xf32>
    %676 = arith.mulf %675, %674 : vector<8x32xf32>
    %677 = arith.addf %672, %676 : vector<8x32xf32>
    %678 = vector.extract_strided_slice %586 {offsets = [0, 4], sizes = [8, 1], strides = [1, 1]} : vector<8x8xf32> to vector<8x1xf32>
    %679 = vector.extract_strided_slice %658 {offsets = [0, 128], sizes = [8, 32], strides = [1, 1]} : vector<8x256xf32> to vector<8x32xf32>
    %680 = vector.broadcast %678 : vector<8x1xf32> to vector<8x32xf32>
    %681 = arith.mulf %680, %679 : vector<8x32xf32>
    %682 = arith.addf %677, %681 : vector<8x32xf32>
    %683 = vector.extract_strided_slice %586 {offsets = [0, 5], sizes = [8, 1], strides = [1, 1]} : vector<8x8xf32> to vector<8x1xf32>
    %684 = vector.extract_strided_slice %658 {offsets = [0, 160], sizes = [8, 32], strides = [1, 1]} : vector<8x256xf32> to vector<8x32xf32>
    %685 = vector.broadcast %683 : vector<8x1xf32> to vector<8x32xf32>
    %686 = arith.mulf %685, %684 : vector<8x32xf32>
    %687 = arith.addf %682, %686 : vector<8x32xf32>
    %688 = vector.extract_strided_slice %586 {offsets = [0, 6], sizes = [8, 1], strides = [1, 1]} : vector<8x8xf32> to vector<8x1xf32>
    %689 = vector.extract_strided_slice %658 {offsets = [0, 192], sizes = [8, 32], strides = [1, 1]} : vector<8x256xf32> to vector<8x32xf32>
    %690 = vector.broadcast %688 : vector<8x1xf32> to vector<8x32xf32>
    %691 = arith.mulf %690, %689 : vector<8x32xf32>
    %692 = arith.addf %687, %691 : vector<8x32xf32>
    %693 = vector.extract_strided_slice %586 {offsets = [0, 7], sizes = [8, 1], strides = [1, 1]} : vector<8x8xf32> to vector<8x1xf32>
    %694 = vector.extract_strided_slice %658 {offsets = [0, 224], sizes = [8, 32], strides = [1, 1]} : vector<8x256xf32> to vector<8x32xf32>
    %695 = vector.broadcast %693 : vector<8x1xf32> to vector<8x32xf32>
    %696 = arith.mulf %695, %694 : vector<8x32xf32>
    %697 = arith.addf %692, %696 : vector<8x32xf32>
    %698 = arith.truncf %657 : vector<8x32xf32> to vector<8x32xbf16>
    %c0_93 = arith.constant 0 : index
    %c0_94 = arith.constant 0 : index
    %699 = vector.load %arg14[%c0_93, %c0_94] : memref<32x32xbf16, #tpu.memory_space<vmem>>, vector<32x32xbf16>
    %cst_95 = arith.constant dense<0.000000e+00> : vector<8x32xf32>
    %700 = tpu.matmul %698, %699, %cst_95 {dimension_numbers = #tpu.dot_dimension_numbers<[1], [0], [0], [1], [0, 0, 1, 1], [], []>} : vector<8x32xbf16>, vector<32x32xbf16>, vector<8x32xf32> -> vector<8x32xf32>
    %701 = arith.addf %700, %697 : vector<8x32xf32>
    %c0_96 = arith.constant 0 : index
    %c0_97 = arith.constant 0 : index
    %702 = vector.load %arg15[%c0_96, %c0_97] : memref<1x32xf32, #tpu.memory_space<vmem>>, vector<1x32xf32>
    %703 = vector.broadcast %702 : vector<1x32xf32> to vector<8x32xf32>
    %704 = arith.addf %701, %703 : vector<8x32xf32>
    %705 = arith.truncf %704 : vector<8x32xf32> to vector<8x32xbf16>
    %c0_98 = arith.constant 0 : index
    %c0_99 = arith.constant 0 : index
    %706 = vector.load %arg16[%c0_98, %c0_99] : memref<32x1xbf16, #tpu.memory_space<vmem>>, vector<32x1xbf16>
    %cst_100 = arith.constant dense<0.000000e+00> : vector<8x1xf32>
    %707 = tpu.matmul %705, %706, %cst_100 {dimension_numbers = #tpu.dot_dimension_numbers<[1], [0], [0], [1], [0, 0, 1, 1], [], []>} : vector<8x32xbf16>, vector<32x1xbf16>, vector<8x1xf32> -> vector<8x1xf32>
    %c0_101 = arith.constant 0 : index
    %c0_102 = arith.constant 0 : index
    %708 = vector.load %arg17[%c0_101, %c0_102] : memref<1x1xf32, #tpu.memory_space<vmem>>, vector<1x1xf32>
    %709 = vector.broadcast %708 : vector<1x1xf32> to vector<8x1xf32>
    %710 = arith.addf %707, %709 : vector<8x1xf32>
    %c0_103 = arith.constant 0 : index
    %c0_104 = arith.constant 0 : index
    %711 = vector.load %arg18[%c0_103, %c0_104] : memref<8x1xf32, #tpu.memory_space<vmem>>, vector<8x1xf32>
    tpu.vector_store %arg18[%c0_103, %c0_104], %710 {strides = array<i32>} : memref<8x1xf32, #tpu.memory_space<vmem>>, vector<8x1xf32>,
    return
  }
  func.func @transform_0(%arg0: i32) -> (i32, i32) {
    %c0_i32 = arith.constant 0 : i32
    %c0_i32_0 = arith.constant 0 : i32
    return %arg0, %c0_i32 : i32, i32
  }
  func.func @transform_1(%arg0: i32) -> (i32, i32) {
    %c0_i32 = arith.constant 0 : i32
    %c0_i32_0 = arith.constant 0 : i32
    return %arg0, %c0_i32 : i32, i32
  }
  func.func @transform_2(%arg0: i32) -> (i32, i32) {
    %c0_i32 = arith.constant 0 : i32
    %c0_i32_0 = arith.constant 0 : i32
    return %arg0, %c0_i32 : i32, i32
  }
  func.func @transform_3(%arg0: i32) -> (i32, i32) {
    %c0_i32 = arith.constant 0 : i32
    %c0_i32_0 = arith.constant 0 : i32
    return %arg0, %c0_i32 : i32, i32
  }
  func.func @transform_4(%arg0: i32) -> (i32, i32) {
    %c0_i32 = arith.constant 0 : i32
    %c0_i32_0 = arith.constant 0 : i32
    %c0_i32_1 = arith.constant 0 : i32
    return %c0_i32, %c0_i32_0 : i32, i32
  }
  func.func @transform_5(%arg0: i32) -> (i32, i32) {
    %c0_i32 = arith.constant 0 : i32
    %c0_i32_0 = arith.constant 0 : i32
    %c0_i32_1 = arith.constant 0 : i32
    return %c0_i32, %c0_i32_0 : i32, i32
  }
  func.func @transform_6(%arg0: i32) -> (i32, i32) {
    %c0_i32 = arith.constant 0 : i32
    %c0_i32_0 = arith.constant 0 : i32
    %c0_i32_1 = arith.constant 0 : i32
    return %c0_i32, %c0_i32_0 : i32, i32
  }
  func.func @transform_7(%arg0: i32) -> (i32, i32) {
    %c0_i32 = arith.constant 0 : i32
    %c0_i32_0 = arith.constant 0 : i32
    %c0_i32_1 = arith.constant 0 : i32
    return %c0_i32, %c0_i32_0 : i32, i32
  }
  func.func @transform_8(%arg0: i32) -> (i32, i32) {
    %c0_i32 = arith.constant 0 : i32
    %c0_i32_0 = arith.constant 0 : i32
    %c0_i32_1 = arith.constant 0 : i32
    return %c0_i32, %c0_i32_0 : i32, i32
  }
  func.func @transform_9(%arg0: i32) -> (i32, i32) {
    %c0_i32 = arith.constant 0 : i32
    %c0_i32_0 = arith.constant 0 : i32
    %c0_i32_1 = arith.constant 0 : i32
    return %c0_i32, %c0_i32_0 : i32, i32
  }
  func.func @transform_10(%arg0: i32) -> (i32, i32) {
    %c0_i32 = arith.constant 0 : i32
    %c0_i32_0 = arith.constant 0 : i32
    %c0_i32_1 = arith.constant 0 : i32
    return %c0_i32, %c0_i32_0 : i32, i32
  }
  func.func @transform_11(%arg0: i32) -> (i32, i32) {
    %c0_i32 = arith.constant 0 : i32
    %c0_i32_0 = arith.constant 0 : i32
    %c0_i32_1 = arith.constant 0 : i32
    return %c0_i32, %c0_i32_0 : i32, i32
  }
  func.func @transform_12(%arg0: i32) -> (i32, i32) {
    %c0_i32 = arith.constant 0 : i32
    %c0_i32_0 = arith.constant 0 : i32
    %c0_i32_1 = arith.constant 0 : i32
    return %c0_i32, %c0_i32_0 : i32, i32
  }
  func.func @transform_13(%arg0: i32) -> (i32, i32) {
    %c0_i32 = arith.constant 0 : i32
    %c0_i32_0 = arith.constant 0 : i32
    %c0_i32_1 = arith.constant 0 : i32
    return %c0_i32, %c0_i32_0 : i32, i32
  }
  func.func @transform_14(%arg0: i32) -> (i32, i32) {
    %c0_i32 = arith.constant 0 : i32
    %c0_i32_0 = arith.constant 0 : i32
    %c0_i32_1 = arith.constant 0 : i32
    return %c0_i32, %c0_i32_0 : i32, i32
  }
  func.func @transform_15(%arg0: i32) -> (i32, i32) {
    %c0_i32 = arith.constant 0 : i32
    %c0_i32_0 = arith.constant 0 : i32
    %c0_i32_1 = arith.constant 0 : i32
    return %c0_i32, %c0_i32_0 : i32, i32
  }
  func.func @transform_16(%arg0: i32) -> (i32, i32) {
    %c0_i32 = arith.constant 0 : i32
    %c0_i32_0 = arith.constant 0 : i32
    %c0_i32_1 = arith.constant 0 : i32
    return %c0_i32, %c0_i32_0 : i32, i32
  }
  func.func @transform_17(%arg0: i32) -> (i32, i32) {
    %c0_i32 = arith.constant 0 : i32
    %c0_i32_0 = arith.constant 0 : i32
    return %arg0, %c0_i32 : i32, i32
  }
}

</mosaic_0001>

<llo_original>
// kernel: tpu_custom_call.1
$region0: #{tpu_custom_call.1}
  #allocation0 [shape = 'u32[]', space=smem, size = 0x4, offset = 0x4, fixed_abs, tag = 'smem constant byte address 0x4 - core index']
  #allocation1 [shape = 'u32[144,128]{1,0:T(1,128)}', space=vmem, size = 0x12000, scoped, tag = 'internal scratch']
  #allocation2 [shape = 'f32[8,256]{1,0:T(8,128)}', space=vmem, size = 0x2000, scoped, tag = 'scratch operand']
  #allocation3 [shape = 'f32[1,1]{1,0:T(1,128)S(1)}', space=vmem, size = 0x200, scoped, tag = 'scoped memory for tpu_custom_call.1']
  %s0 = inlined_call_operand.vmem [shape: f32[8,256], index: 0, kind: input, shape index: {}]
  %s1 = inlined_call_operand.vmem [shape: f32[8,1024], index: 1, kind: input, shape index: {}]
  %s2 = inlined_call_operand.vmem [shape: f32[8,256], index: 2, kind: input, shape index: {}]
  %s3 = inlined_call_operand.vmem [shape: f32[8,8], index: 3, kind: input, shape index: {}]
  %s4 = inlined_call_operand.vmem [shape: bf16[32,256], index: 4, kind: input, shape index: {}]
  %s5 = inlined_call_operand.vmem [shape: bf16[32,256], index: 5, kind: input, shape index: {}]
  %s6 = inlined_call_operand.vmem [shape: f32[1,256], index: 6, kind: input, shape index: {}]
  %s7 = inlined_call_operand.vmem [shape: bf16[256,8], index: 7, kind: input, shape index: {}]
  %s8 = inlined_call_operand.vmem [shape: f32[1,128], index: 8, kind: input, shape index: {}]
  %s9 = inlined_call_operand.vmem [shape: bf16[32,128], index: 9, kind: input, shape index: {}]
  %s10 = inlined_call_operand.vmem [shape: f32[1,128], index: 10, kind: input, shape index: {}]
  %s11 = inlined_call_operand.vmem [shape: bf16[256,32], index: 11, kind: input, shape index: {}]
  %s12 = inlined_call_operand.vmem [shape: f32[1,32], index: 12, kind: input, shape index: {}]
  %s13 = inlined_call_operand.vmem [shape: bf16[32,32], index: 13, kind: input, shape index: {}]
  %s14 = inlined_call_operand.vmem [shape: f32[1,32], index: 14, kind: input, shape index: {}]
  %s15 = inlined_call_operand.vmem [shape: bf16[32,1], index: 15, kind: input, shape index: {}]
  %s16 = inlined_call_operand.<no memory space> [shape: f32[1,1], index: 16, kind: input, shape index: {}]
  %s17 = inlined_call_operand.vmem [shape: f32[8,1], index: 17, kind: output, shape index: {}]
  %s18 = sld [smem:[#allocation0]]
  $region78: #{tpu_custom_call.1} parent=0
    _
  %s20 = ssub.s32 1, %s18
  %s21 = scalar_select 0, %s20, %s18
  %v22 = vstv %s16
  %23 = vst [vmem:[#allocation3] sm:$0x1] %v22
  // Predicated region
  $region2: #{tpu_custom_call.1} parent=0 // pred_check
    _
  $region3: #{tpu_custom_call.1} parent=0 // pred_check_branch
    %25 = sbr.rel (0) target = $region5
  $region4: #{tpu_custom_call.1} parent=0 // pred_region
    _
  $region5: #{tpu_custom_call.1} parent=0 // pred_fallthru
    _
  // Predicated region
  $region6: #{tpu_custom_call.1} parent=0 // pred_check
    _
  $region7: #{tpu_custom_call.1} parent=0 // pred_check_branch
    %27 = sbr.rel (0) target = $region9
  $region8: #{tpu_custom_call.1} parent=0 // pred_region
    _
  $region9: #{tpu_custom_call.1} parent=0 // pred_fallthru
    _
  // Predicated region
  $region10: #{tpu_custom_call.1} parent=0 // pred_check
    _
  $region11: #{tpu_custom_call.1} parent=0 // pred_check_branch
    %29 = sbr.rel (0) target = $region13
  $region12: #{tpu_custom_call.1} parent=0 // pred_region
    _
  $region13: #{tpu_custom_call.1} parent=0 // pred_fallthru
    _
  // Predicated region
  $region14: #{tpu_custom_call.1} parent=0 // pred_check
    _
  $region15: #{tpu_custom_call.1} parent=0 // pred_check_branch
    %31 = sbr.rel (0) target = $region17
  $region16: #{tpu_custom_call.1} parent=0 // pred_region
    _
  $region17: #{tpu_custom_call.1} parent=0 // pred_fallthru
    _
  // Predicated region
  $region18: #{tpu_custom_call.1} parent=0 // pred_check
    _
  $region19: #{tpu_custom_call.1} parent=0 // pred_check_branch
    %33 = sbr.rel (0) target = $region21
  $region20: #{tpu_custom_call.1} parent=0 // pred_region
    _
  $region21: #{tpu_custom_call.1} parent=0 // pred_fallthru
    _
  // Predicated region
  $region22: #{tpu_custom_call.1} parent=0 // pred_check
    _
  $region23: #{tpu_custom_call.1} parent=0 // pred_check_branch
    %35 = sbr.rel (0) target = $region25
  $region24: #{tpu_custom_call.1} parent=0 // pred_region
    _
  $region25: #{tpu_custom_call.1} parent=0 // pred_fallthru
    _
  // Predicated region
  $region26: #{tpu_custom_call.1} parent=0 // pred_check
    _
  $region27: #{tpu_custom_call.1} parent=0 // pred_check_branch
    %37 = sbr.rel (0) target = $region29
  $region28: #{tpu_custom_call.1} parent=0 // pred_region
    _
  $region29: #{tpu_custom_call.1} parent=0 // pred_fallthru
    _
  // Predicated region
  $region30: #{tpu_custom_call.1} parent=0 // pred_check
    _
  $region31: #{tpu_custom_call.1} parent=0 // pred_check_branch
    %39 = sbr.rel (0) target = $region33
  $region32: #{tpu_custom_call.1} parent=0 // pred_region
    _
  $region33: #{tpu_custom_call.1} parent=0 // pred_fallthru
    _
  // Predicated region
  $region34: #{tpu_custom_call.1} parent=0 // pred_check
    _
  $region35: #{tpu_custom_call.1} parent=0 // pred_check_branch
    %41 = sbr.rel (0) target = $region37
  $region36: #{tpu_custom_call.1} parent=0 // pred_region
    _
  $region37: #{tpu_custom_call.1} parent=0 // pred_fallthru
    _
  // Predicated region
  $region38: #{tpu_custom_call.1} parent=0 // pred_check
    _
  $region39: #{tpu_custom_call.1} parent=0 // pred_check_branch
    %43 = sbr.rel (0) target = $region41
  $region40: #{tpu_custom_call.1} parent=0 // pred_region
    _
  $region41: #{tpu_custom_call.1} parent=0 // pred_fallthru
    _
  // Predicated region
  $region42: #{tpu_custom_call.1} parent=0 // pred_check
    _
  $region43: #{tpu_custom_call.1} parent=0 // pred_check_branch
    %45 = sbr.rel (0) target = $region45
  $region44: #{tpu_custom_call.1} parent=0 // pred_region
    _
  $region45: #{tpu_custom_call.1} parent=0 // pred_fallthru
    _
  // Predicated region
  $region46: #{tpu_custom_call.1} parent=0 // pred_check
    _
  $region47: #{tpu_custom_call.1} parent=0 // pred_check_branch
    %47 = sbr.rel (0) target = $region49
  $region48: #{tpu_custom_call.1} parent=0 // pred_region
    _
  $region49: #{tpu_custom_call.1} parent=0 // pred_fallthru
    _
  // Predicated region
  $region50: #{tpu_custom_call.1} parent=0 // pred_check
    _
  $region51: #{tpu_custom_call.1} parent=0 // pred_check_branch
    %49 = sbr.rel (0) target = $region53
  $region52: #{tpu_custom_call.1} parent=0 // pred_region
    _
  $region53: #{tpu_custom_call.1} parent=0 // pred_fallthru
    _
  // Predicated region
  $region54: #{tpu_custom_call.1} parent=0 // pred_check
    _
  $region55: #{tpu_custom_call.1} parent=0 // pred_check_branch
    %51 = sbr.rel (0) target = $region57
  $region56: #{tpu_custom_call.1} parent=0 // pred_region
    _
  $region57: #{tpu_custom_call.1} parent=0 // pred_fallthru
    _
  // Predicated region
  $region58: #{tpu_custom_call.1} parent=0 // pred_check
    _
  $region59: #{tpu_custom_call.1} parent=0 // pred_check_branch
    %53 = sbr.rel (0) target = $region61
  $region60: #{tpu_custom_call.1} parent=0 // pred_region
    _
  $region61: #{tpu_custom_call.1} parent=0 // pred_fallthru
    _
  // Predicated region
  $region62: #{tpu_custom_call.1} parent=0 // pred_check
    _
  $region63: #{tpu_custom_call.1} parent=0 // pred_check_branch
    %55 = sbr.rel (0) target = $region65
  $region64: #{tpu_custom_call.1} parent=0 // pred_region
    _
  $region65: #{tpu_custom_call.1} parent=0 // pred_fallthru
    _
  // Predicated region
  $region66: #{tpu_custom_call.1} parent=0 // pred_check
    _
  $region67: #{tpu_custom_call.1} parent=0 // pred_check_branch
    %57 = sbr.rel (0) target = $region69
  $region68: #{tpu_custom_call.1} parent=0 // pred_region
    _
  $region69: #{tpu_custom_call.1} parent=0 // pred_fallthru
    _
  %v59 = vld [vmem:[%s0] sm:$0xff]
  %v60 = vld [vmem:[%s0 + $0x8] sm:$0xff]
  %v61 = vld [vmem:[%s1] sm:$0xff]
  %v62 = vld [vmem:[%s1 + $0x8] sm:$0xff]
  %v63 = vld [vmem:[%s1 + $0x10] sm:$0xff]
  %v64 = vld [vmem:[%s1 + $0x18] sm:$0xff]
  %v65 = vld [vmem:[%s1 + $0x20] sm:$0xff]
  %v66 = vld [vmem:[%s1 + $0x28] sm:$0xff]
  %v67 = vld [vmem:[%s1 + $0x30] sm:$0xff]
  %v68 = vld [vmem:[%s1 + $0x38] sm:$0xff]
  %v69 = vld [vmem:[%s6] sm:$0x3]
  %v70 = vld [vmem:[%s8] sm:$0x1]
  %v71 = vld [vmem:[%s10] sm:$0x1]
  %v72 = vld [vmem:[%s4] sm:$0xff]
  %v73 = vld [vmem:[%s4 + $0x8] sm:$0xff]
  %v74 = vld [vmem:[%s4 + $0x10] sm:$0xff]
  %v75 = vld [vmem:[%s4 + $0x18] sm:$0xff]
  %v76 = vld [vmem:[%s5] sm:$0xff]
  %v77 = vld [vmem:[%s5 + $0x8] sm:$0xff]
  %v78 = vld [vmem:[%s5 + $0x10] sm:$0xff]
  %v79 = vld [vmem:[%s5 + $0x18] sm:$0xff]
  %v80 = vld [vmem:[%s7] sm:$0xf]
  %v81 = vld [vmem:[%s7 + $0x4] sm:$0xf]
  %v82 = vld [vmem:[%s7 + $0x8] sm:$0xf]
  %v83 = vld [vmem:[%s7 + $0xc] sm:$0xf]
  %v84 = vld [vmem:[%s7 + $0x10] sm:$0xf]
  %v85 = vld [vmem:[%s7 + $0x14] sm:$0xf]
  %v86 = vld [vmem:[%s7 + $0x18] sm:$0xf]
  %v87 = vld [vmem:[%s7 + $0x1c] sm:$0xf]
  %v88 = vld [vmem:[%s7 + $0x20] sm:$0xf]
  %v89 = vld [vmem:[%s7 + $0x24] sm:$0xf]
  %v90 = vld [vmem:[%s7 + $0x28] sm:$0xf]
  %v91 = vld [vmem:[%s7 + $0x2c] sm:$0xf]
  %v92 = vld [vmem:[%s7 + $0x30] sm:$0xf]
  %v93 = vld [vmem:[%s7 + $0x34] sm:$0xf]
  %v94 = vld [vmem:[%s7 + $0x38] sm:$0xf]
  %v95 = vld [vmem:[%s7 + $0x3c] sm:$0xf]
  %v96 = vld [vmem:[%s7 + $0x40] sm:$0xf]
  %v97 = vld [vmem:[%s7 + $0x44] sm:$0xf]
  %v98 = vld [vmem:[%s7 + $0x48] sm:$0xf]
  %v99 = vld [vmem:[%s7 + $0x4c] sm:$0xf]
  %v100 = vld [vmem:[%s7 + $0x50] sm:$0xf]
  %v101 = vld [vmem:[%s7 + $0x54] sm:$0xf]
  %v102 = vld [vmem:[%s7 + $0x58] sm:$0xf]
  %v103 = vld [vmem:[%s7 + $0x5c] sm:$0xf]
  %v104 = vld [vmem:[%s7 + $0x60] sm:$0xf]
  %v105 = vld [vmem:[%s7 + $0x64] sm:$0xf]
  %v106 = vld [vmem:[%s7 + $0x68] sm:$0xf]
  %v107 = vld [vmem:[%s7 + $0x6c] sm:$0xf]
  %v108 = vld [vmem:[%s7 + $0x70] sm:$0xf]
  %v109 = vld [vmem:[%s7 + $0x74] sm:$0xf]
  %v110 = vld [vmem:[%s7 + $0x78] sm:$0xf]
  %v111 = vld [vmem:[%s7 + $0x7c] sm:$0xf]
  %v112 = vld [vmem:[%s9] sm:$0xf]
  %v113 = vld [vmem:[%s9 + $0x4] sm:$0xf]
  %v114 = vld [vmem:[%s9 + $0x8] sm:$0xf]
  %v115 = vld [vmem:[%s9 + $0xc] sm:$0xf]
  %v120 = vunpack.c.l.b16 %v76
  %v121 = vunpack.c.h.b16 %v76
  %v122 = vunpack.c.l.b16 %v77
  %v123 = vunpack.c.h.b16 %v77
  %v124 = vunpack.c.l.b16 %v78
  %v125 = vunpack.c.h.b16 %v78
  %v126 = vunpack.c.l.b16 %v79
  %v127 = vunpack.c.h.b16 %v79
  %v128 = vpack.c.b16 %v122, %v120
  %v129 = vpack.c.b16 %v123, %v121
  %v130 = vpack.c.b16 %v126, %v124
  %v131 = vpack.c.b16 %v127, %v125
  %vm136 = vcmask 261120
  %v138 = vsel %vm136, 0, 0
  %140 = vmatprep.subr.bf16.mxu0 %v129
  %141 = vmatpush1.bf16.msra.mxu0 %v128
  %142 = vmatprep.subr.bf16.mxu0 %v131
  %143 = vmatpush1.bf16.msra.mxu0 %v130
  %144 = vmatprep.subr.bf16.mxu0 0
  %145 = vmatpush1.bf16.msra.mxu0 0
  %146 = vmatprep.subr.bf16.mxu0 0
  %147 = vmatpush1.bf16.msra.mxu0 0
  %148 = vmatprep.subr.bf16.mxu0 0
  %149 = vmatpush1.bf16.msra.mxu0 0
  %150 = vmatprep.subr.bf16.mxu0 0
  %151 = vmatpush1.bf16.msra.mxu0 0
  %152 = vmatprep.subr.bf16.mxu0 0
  %153 = vmatpush1.bf16.msra.mxu0 0
  %154 = vmatprep.subr.bf16.mxu0 0
  %155 = vmatpush1.bf16.msra.mxu0 0
  %156 = vmatprep.subr.bf16.mxu0 0
  %157 = vmatpush1.bf16.msra.mxu0 0
  %158 = vmatprep.subr.bf16.mxu0 0
  %159 = vmatpush1.bf16.msra.mxu0 0
  %160 = vmatprep.subr.bf16.mxu0 0
  %161 = vmatpush1.bf16.msra.mxu0 0
  %162 = vmatprep.subr.bf16.mxu0 0
  %163 = vmatpush1.bf16.msra.mxu0 0
  %164 = vmatprep.subr.bf16.mxu0 0
  %165 = vmatpush1.bf16.msra.mxu0 0
  %166 = vmatprep.subr.bf16.mxu0 0
  %167 = vmatpush1.bf16.msra.mxu0 0
  %168 = vmatprep.subr.bf16.mxu0 0
  %169 = vmatpush1.bf16.msra.mxu0 0
  %170 = vmatprep.subr.bf16.mxu0 0
  %171 = vmatpush1.bf16.msra.mxu0 0
  %172 = vmatprep.mubr.bf16.mxu0 0
  %173 = vmatmul.mubr.bf16.gmra.mrb[0].mxu0 %v138
  %v174 = vpop.f32.mrb[0].mxu0
  %v175 = vadd.f32 0.0, %v174
  %v176 = vpop.f32.mrb[0].mxu0
  %v177 = vadd.f32 0.0, %v176
  %v178 = vpop.f32.mrb[0].mxu0
  %v179 = vpop.f32.mrb[0].mxu0
  %180 = vdwg.mxu0
  %v185 = vunpack.c.l.b16 %v72
  %v186 = vunpack.c.h.b16 %v72
  %v187 = vunpack.c.l.b16 %v73
  %v188 = vunpack.c.h.b16 %v73
  %v189 = vunpack.c.l.b16 %v74
  %v190 = vunpack.c.h.b16 %v74
  %v191 = vunpack.c.l.b16 %v75
  %v192 = vunpack.c.h.b16 %v75
  %v193 = vpack.c.b16 %v187, %v185
  %v194 = vpack.c.b16 %v188, %v186
  %v195 = vpack.c.b16 %v191, %v189
  %v196 = vpack.c.b16 %v192, %v190
  %201 = vmatprep.subr.bf16.mxu0 %v194
  %202 = vmatpush1.bf16.msra.mxu0 %v193
  %203 = vmatprep.subr.bf16.mxu0 %v196
  %204 = vmatpush1.bf16.msra.mxu0 %v195
  %205 = vmatprep.subr.bf16.mxu0 0
  %206 = vmatpush1.bf16.msra.mxu0 0
  %207 = vmatprep.subr.bf16.mxu0 0
  %208 = vmatpush1.bf16.msra.mxu0 0
  %209 = vmatprep.subr.bf16.mxu0 0
  %210 = vmatpush1.bf16.msra.mxu0 0
  %211 = vmatprep.subr.bf16.mxu0 0
  %212 = vmatpush1.bf16.msra.mxu0 0
  %213 = vmatprep.subr.bf16.mxu0 0
  %214 = vmatpush1.bf16.msra.mxu0 0
  %215 = vmatprep.subr.bf16.mxu0 0
  %216 = vmatpush1.bf16.msra.mxu0 0
  %217 = vmatprep.subr.bf16.mxu0 0
  %218 = vmatpush1.bf16.msra.mxu0 0
  %219 = vmatprep.subr.bf16.mxu0 0
  %220 = vmatpush1.bf16.msra.mxu0 0
  %221 = vmatprep.subr.bf16.mxu0 0
  %222 = vmatpush1.bf16.msra.mxu0 0
  %223 = vmatprep.subr.bf16.mxu0 0
  %224 = vmatpush1.bf16.msra.mxu0 0
  %225 = vmatprep.subr.bf16.mxu0 0
  %226 = vmatpush1.bf16.msra.mxu0 0
  %227 = vmatprep.subr.bf16.mxu0 0
  %228 = vmatpush1.bf16.msra.mxu0 0
  %229 = vmatprep.subr.bf16.mxu0 0
  %230 = vmatpush1.bf16.msra.mxu0 0
  %231 = vmatprep.subr.bf16.mxu0 0
  %232 = vmatpush1.bf16.msra.mxu0 0
  %233 = vmatprep.mubr.bf16.mxu0 0
  %234 = vmatmul.mubr.bf16.gmra.mrb[0].mxu0 %v138
  %v235 = vpop.f32.mrb[0].mxu0
  %v236 = vadd.f32 %v175, %v235
  %v237 = vpop.f32.mrb[0].mxu0
  %v238 = vadd.f32 %v177, %v237
  %v239 = vpop.f32.mrb[0].mxu0
  %v240 = vpop.f32.mrb[0].mxu0
  %241 = vdwg.mxu0
  %v243 = vlaneseq
  %v244 = vshrl.u32 %v243, 7
  %v245 = vsub.s32 0, %v244
  %v246 = vrot.slane %v69, %v245
  %v247 = vlaneseq
  %v248 = vshrl.u32 %v247, 7
  %v249 = vsub.s32 1, %v248
  %v250 = vrot.slane %v69, %v249
  %v253 = vadd.f32 %v236, %v246
  %v254 = vadd.f32 %v238, %v250
  %v255 = vadd.f32 %v253, %v59
  %v256 = vadd.f32 %v254, %v60
  %v257 = vtanh.pop %v255
  %v258 = vtanh.pop %v256
  %v259 = vpack.c.bf16 %v257, %v257
  %v260 = vpack.c.bf16 %v258, %v258
  %v293 = vunpack.c.l.b16 %v80
  %v294 = vunpack.c.l.b16 %v81
  %v295 = vunpack.c.l.b16 %v82
  %v296 = vunpack.c.l.b16 %v83
  %v297 = vunpack.c.l.b16 %v84
  %v298 = vunpack.c.l.b16 %v85
  %v299 = vunpack.c.l.b16 %v86
  %v300 = vunpack.c.l.b16 %v87
  %v301 = vunpack.c.l.b16 %v88
  %v302 = vunpack.c.l.b16 %v89
  %v303 = vunpack.c.l.b16 %v90
  %v304 = vunpack.c.l.b16 %v91
  %v305 = vunpack.c.l.b16 %v92
  %v306 = vunpack.c.l.b16 %v93
  %v307 = vunpack.c.l.b16 %v94
  %v308 = vunpack.c.l.b16 %v95
  %v309 = vunpack.c.l.b16 %v96
  %v310 = vunpack.c.l.b16 %v97
  %v311 = vunpack.c.l.b16 %v98
  %v312 = vunpack.c.l.b16 %v99
  %v313 = vunpack.c.l.b16 %v100
  %v314 = vunpack.c.l.b16 %v101
  %v315 = vunpack.c.l.b16 %v102
  %v316 = vunpack.c.l.b16 %v103
  %v317 = vunpack.c.l.b16 %v104
  %v318 = vunpack.c.l.b16 %v105
  %v319 = vunpack.c.l.b16 %v106
  %v320 = vunpack.c.l.b16 %v107
  %v321 = vunpack.c.l.b16 %v108
  %v322 = vunpack.c.l.b16 %v109
  %v323 = vunpack.c.l.b16 %v110
  %v324 = vunpack.c.l.b16 %v111
  %v325 = vpack.c.b16 %v294, %v293
  %v326 = vpack.c.b16 %v296, %v295
  %v327 = vpack.c.b16 %v298, %v297
  %v328 = vpack.c.b16 %v300, %v299
  %v329 = vpack.c.b16 %v302, %v301
  %v330 = vpack.c.b16 %v304, %v303
  %v331 = vpack.c.b16 %v306, %v305
  %v332 = vpack.c.b16 %v308, %v307
  %v333 = vpack.c.b16 %v310, %v309
  %v334 = vpack.c.b16 %v312, %v311
  %v335 = vpack.c.b16 %v314, %v313
  %v336 = vpack.c.b16 %v316, %v315
  %v337 = vpack.c.b16 %v318, %v317
  %v338 = vpack.c.b16 %v320, %v319
  %v339 = vpack.c.b16 %v322, %v321
  %v340 = vpack.c.b16 %v324, %v323
  %357 = vmatprep.subr.bf16.mxu0 0
  %358 = vmatpush1.bf16.msra.mxu0 %v325
  %359 = vmatprep.subr.bf16.mxu0 0
  %360 = vmatpush1.bf16.msra.mxu0 %v326
  %361 = vmatprep.subr.bf16.mxu0 0
  %362 = vmatpush1.bf16.msra.mxu0 %v327
  %363 = vmatprep.subr.bf16.mxu0 0
  %364 = vmatpush1.bf16.msra.mxu0 %v328
  %365 = vmatprep.subr.bf16.mxu0 0
  %366 = vmatpush1.bf16.msra.mxu0 %v329
  %367 = vmatprep.subr.bf16.mxu0 0
  %368 = vmatpush1.bf16.msra.mxu0 %v330
  %369 = vmatprep.subr.bf16.mxu0 0
  %370 = vmatpush1.bf16.msra.mxu0 %v331
  %371 = vmatprep.subr.bf16.mxu0 0
  %372 = vmatpush1.bf16.msra.mxu0 %v332
  %373 = vmatprep.subr.bf16.mxu0 0
  %374 = vmatpush1.bf16.msra.mxu0 %v333
  %375 = vmatprep.subr.bf16.mxu0 0
  %376 = vmatpush1.bf16.msra.mxu0 %v334
  %377 = vmatprep.subr.bf16.mxu0 0
  %378 = vmatpush1.bf16.msra.mxu0 %v335
  %379 = vmatprep.subr.bf16.mxu0 0
  %380 = vmatpush1.bf16.msra.mxu0 %v336
  %381 = vmatprep.subr.bf16.mxu0 0
  %382 = vmatpush1.bf16.msra.mxu0 %v337
  %383 = vmatprep.subr.bf16.mxu0 0
  %384 = vmatpush1.bf16.msra.mxu0 %v338
  %385 = vmatprep.subr.bf16.mxu0 0
  %386 = vmatpush1.bf16.msra.mxu0 %v339
  %387 = vmatprep.subr.bf16.mxu0 0
  %388 = vmatpush1.bf16.msra.mxu0 %v340
  %389 = vmatprep.mubr.bf16.mxu0 %v260
  %390 = vmatmul.mubr.bf16.gmra.mrb[0].mxu0 %v259
  %v391 = vpop.f32.mrb[0].mxu0
  %v392 = vadd.f32 0.0, %v391
  %v393 = vpop.f32.mrb[0].mxu0
  %v394 = vpop.f32.mrb[0].mxu0
  %v395 = vpop.f32.mrb[0].mxu0
  %396 = vdwg.mxu0
  %v397 = vmul.f32 %v392, 1.442695
  %v398 = vpow.pop %v397
  %vm399 = vcmask 64512
  %v400 = vsel %vm399, %v398, 0.0
  %401 = vadd.xlane.f32.xlu0 %v400
  %v402 = vpop.xlane.xlu0 %401
  %v403 = vrcp.pop %v402
  %v404 = vmul.f32 %v398, %v403
  %406 = vset.pattern.permute.xlu0 0
  %407 = vperm.xlu0 %406, %v404
  %v408 = vpop.permute.xlu0 %407
  %v410 = vmul.f32 %v408, %v61
  %411 = vset.pattern.permute.xlu0 1
  %412 = vperm.xlu0 %411, %v404
  %v413 = vpop.permute.xlu0 %412
  %v415 = vmul.f32 %v413, %v62
  %v416 = vadd.f32 %v410, %v415
  %417 = vset.pattern.permute.xlu0 2
  %418 = vperm.xlu0 %417, %v404
  %v419 = vpop.permute.xlu0 %418
  %v421 = vmul.f32 %v419, %v63
  %v422 = vadd.f32 %v416, %v421
  %423 = vset.pattern.permute.xlu0 3
  %424 = vperm.xlu0 %423, %v404
  %v425 = vpop.permute.xlu0 %424
  %v427 = vmul.f32 %v425, %v64
  %v428 = vadd.f32 %v422, %v427
  %429 = vset.pattern.permute.xlu0 4
  %430 = vperm.xlu0 %429, %v404
  %v431 = vpop.permute.xlu0 %430
  %v433 = vmul.f32 %v431, %v65
  %v434 = vadd.f32 %v428, %v433
  %435 = vset.pattern.permute.xlu0 5
  %436 = vperm.xlu0 %435, %v404
  %v437 = vpop.permute.xlu0 %436
  %v439 = vmul.f32 %v437, %v66
  %v440 = vadd.f32 %v434, %v439
  %441 = vset.pattern.permute.xlu0 6
  %442 = vperm.xlu0 %441, %v404
  %v443 = vpop.permute.xlu0 %442
  %v445 = vmul.f32 %v443, %v67
  %v446 = vadd.f32 %v440, %v445
  %447 = vset.pattern.permute.xlu0 7
  %448 = vperm.xlu0 %447, %v404
  %v449 = vpop.permute.xlu0 %448
  %v451 = vmul.f32 %v449, %v68
  %v452 = vadd.f32 %v446, %v451
  %v453 = vld [vmem:[%s3] sm:$0xff]
  %455 = vset.pattern.permute.xlu0 0
  %456 = vperm.xlu0 %455, %v453
  %v457 = vpop.permute.xlu0 %456
  %v460 = vlaneseq
  %v461 = vshrl.u32 %v460, 7
  %v462 = vsub.s32 0, %v461
  %v463 = vrot.slane %v70, %v462
  %v465 = vmul.f32 %v457, %v463
  %v466 = vadd.f32 %v452, %v465
  %v471 = vunpack.c.l.b16 %v112
  %v472 = vunpack.c.l.b16 %v113
  %v473 = vunpack.c.l.b16 %v114
  %v474 = vunpack.c.l.b16 %v115
  %v475 = vpack.c.b16 %v472, %v471
  %v476 = vpack.c.b16 %v474, %v473
  %479 = vmatprep.subr.bf16.mxu0 0
  %480 = vmatpush1.bf16.msra.mxu0 %v475
  %481 = vmatprep.subr.bf16.mxu0 0
  %482 = vmatpush1.bf16.msra.mxu0 %v476
  %483 = vmatprep.subr.bf16.mxu0 0
  %484 = vmatpush1.bf16.msra.mxu0 0
  %485 = vmatprep.subr.bf16.mxu0 0
  %486 = vmatpush1.bf16.msra.mxu0 0
  %487 = vmatprep.subr.bf16.mxu0 0
  %488 = vmatpush1.bf16.msra.mxu0 0
  %489 = vmatprep.subr.bf16.mxu0 0
  %490 = vmatpush1.bf16.msra.mxu0 0
  %491 = vmatprep.subr.bf16.mxu0 0
  %492 = vmatpush1.bf16.msra.mxu0 0
  %493 = vmatprep.subr.bf16.mxu0 0
  %494 = vmatpush1.bf16.msra.mxu0 0
  %495 = vmatprep.subr.bf16.mxu0 0
  %496 = vmatpush1.bf16.msra.mxu0 0
  %497 = vmatprep.subr.bf16.mxu0 0
  %498 = vmatpush1.bf16.msra.mxu0 0
  %499 = vmatprep.subr.bf16.mxu0 0
  %500 = vmatpush1.bf16.msra.mxu0 0
  %501 = vmatprep.subr.bf16.mxu0 0
  %502 = vmatpush1.bf16.msra.mxu0 0
  %503 = vmatprep.subr.bf16.mxu0 0
  %504 = vmatpush1.bf16.msra.mxu0 0
  %505 = vmatprep.subr.bf16.mxu0 0
  %506 = vmatpush1.bf16.msra.mxu0 0
  %507 = vmatprep.subr.bf16.mxu0 0
  %508 = vmatpush1.bf16.msra.mxu0 0
  %509 = vmatprep.subr.bf16.mxu0 0
  %510 = vmatpush1.bf16.msra.mxu0 0
  %511 = vmatprep.mubr.bf16.mxu0 0
  %512 = vmatmul.mubr.bf16.gmra.mrb[0].mxu0 %v138
  %v513 = vpop.f32.mrb[0].mxu0
  %v514 = vadd.f32 0.0, %v513
  %v515 = vpop.f32.mrb[0].mxu0
  %v516 = vpop.f32.mrb[0].mxu0
  %v517 = vpop.f32.mrb[0].mxu0
  %518 = vdwg.mxu0
  %v519 = vadd.f32 %v466, %v514
  %v521 = vlaneseq
  %v522 = vshrl.u32 %v521, 7
  %v523 = vsub.s32 0, %v522
  %v524 = vrot.slane %v71, %v523
  %v526 = vadd.f32 %v519, %v524
  %v527 = vxor.u32 %v526, 2147483648
  %v528 = vmul.f32 %v527, 1.442695
  %v529 = vpow.pop %v528
  %v530 = vadd.f32 %v529, 1.0
  %v531 = vrcp.pop %v530
  %v532 = vmul.f32 1.0, %v531
  %v533 = vtanh.pop %v526
  %v534 = vmul.f32 %v532, 0.0
  %536 = vrot.lane.b32.xlu0 %v533, 64
  %v537 = vpop.permute.xlu0 %536
  %v539 = vmul.f32 %v532, %v537
  %541 = vrot.lane.b32.xlu0 %v539, 32
  %v542 = vpop.permute.xlu0 %541
  %v544 = vadd.f32 %v534, %v542
  %v545 = vtanh.pop %v544
  %547 = vrot.lane.b32.xlu0 %v545, 64
  %v548 = vpop.permute.xlu0 %547
  %v550 = vmul.f32 %v532, %v548
  %552 = vrot.lane.b32.xlu0 %v550, 32
  %v553 = vpop.permute.xlu0 %552
  %555 = vst.msk [vmem:[#allocation2] sm:$0xff] %vm136, %v553
  %v556 = vpack.c.bf16 %v550, %v550
  %v557 = vpack.c.bf16 %v544, %v544
  %559 = vrot.lane.b32.xlu0 %v557, 96
  %v560 = vpop.permute.xlu0 %559
  %v562 = vsel %vm136, %v560, 0
  %564 = vmatprep.subr.bf16.mxu0 %v129
  %565 = vmatpush1.bf16.msra.mxu0 %v128
  %566 = vmatprep.subr.bf16.mxu0 %v131
  %567 = vmatpush1.bf16.msra.mxu0 %v130
  %568 = vmatprep.subr.bf16.mxu0 0
  %569 = vmatpush1.bf16.msra.mxu0 0
  %570 = vmatprep.subr.bf16.mxu0 0
  %571 = vmatpush1.bf16.msra.mxu0 0
  %572 = vmatprep.subr.bf16.mxu0 0
  %573 = vmatpush1.bf16.msra.mxu0 0
  %574 = vmatprep.subr.bf16.mxu0 0
  %575 = vmatpush1.bf16.msra.mxu0 0
  %576 = vmatprep.subr.bf16.mxu0 0
  %577 = vmatpush1.bf16.msra.mxu0 0
  %578 = vmatprep.subr.bf16.mxu0 0
  %579 = vmatpush1.bf16.msra.mxu0 0
  %580 = vmatprep.subr.bf16.mxu0 0
  %581 = vmatpush1.bf16.msra.mxu0 0
  %582 = vmatprep.subr.bf16.mxu0 0
  %583 = vmatpush1.bf16.msra.mxu0 0
  %584 = vmatprep.subr.bf16.mxu0 0
  %585 = vmatpush1.bf16.msra.mxu0 0
  %586 = vmatprep.subr.bf16.mxu0 0
  %587 = vmatpush1.bf16.msra.mxu0 0
  %588 = vmatprep.subr.bf16.mxu0 0
  %589 = vmatpush1.bf16.msra.mxu0 0
  %590 = vmatprep.subr.bf16.mxu0 0
  %591 = vmatpush1.bf16.msra.mxu0 0
  %592 = vmatprep.subr.bf16.mxu0 0
  %593 = vmatpush1.bf16.msra.mxu0 0
  %594 = vmatprep.subr.bf16.mxu0 0
  %595 = vmatpush1.bf16.msra.mxu0 0
  %596 = vmatprep.mubr.bf16.mxu0 0
  %597 = vmatmul.mubr.bf16.gmra.mrb[0].mxu0 %v562
  %v598 = vpop.f32.mrb[0].mxu0
  %v599 = vadd.f32 0.0, %v598
  %v600 = vpop.f32.mrb[0].mxu0
  %v601 = vadd.f32 0.0, %v600
  %v602 = vpop.f32.mrb[0].mxu0
  %v603 = vpop.f32.mrb[0].mxu0
  %604 = vdwg.mxu0
  %606 = vrot.lane.b32.xlu0 %v556, 32
  %v607 = vpop.permute.xlu0 %606
  %v609 = vsel %vm136, %v607, 0
  %611 = vmatprep.subr.bf16.mxu0 %v194
  %612 = vmatpush1.bf16.msra.mxu0 %v193
  %613 = vmatprep.subr.bf16.mxu0 %v196
  %614 = vmatpush1.bf16.msra.mxu0 %v195
  %615 = vmatprep.subr.bf16.mxu0 0
  %616 = vmatpush1.bf16.msra.mxu0 0
  %617 = vmatprep.subr.bf16.mxu0 0
  %618 = vmatpush1.bf16.msra.mxu0 0
  %619 = vmatprep.subr.bf16.mxu0 0
  %620 = vmatpush1.bf16.msra.mxu0 0
  %621 = vmatprep.subr.bf16.mxu0 0
  %622 = vmatpush1.bf16.msra.mxu0 0
  %623 = vmatprep.subr.bf16.mxu0 0
  %624 = vmatpush1.bf16.msra.mxu0 0
  %625 = vmatprep.subr.bf16.mxu0 0
  %626 = vmatpush1.bf16.msra.mxu0 0
  %627 = vmatprep.subr.bf16.mxu0 0
  %628 = vmatpush1.bf16.msra.mxu0 0
  %629 = vmatprep.subr.bf16.mxu0 0
  %630 = vmatpush1.bf16.msra.mxu0 0
  %631 = vmatprep.subr.bf16.mxu0 0
  %632 = vmatpush1.bf16.msra.mxu0 0
  %633 = vmatprep.subr.bf16.mxu0 0
  %634 = vmatpush1.bf16.msra.mxu0 0
  %635 = vmatprep.subr.bf16.mxu0 0
  %636 = vmatpush1.bf16.msra.mxu0 0
  %637 = vmatprep.subr.bf16.mxu0 0
  %638 = vmatpush1.bf16.msra.mxu0 0
  %639 = vmatprep.subr.bf16.mxu0 0
  %640 = vmatpush1.bf16.msra.mxu0 0
  %641 = vmatprep.subr.bf16.mxu0 0
  %642 = vmatpush1.bf16.msra.mxu0 0
  %643 = vmatprep.mubr.bf16.mxu0 0
  %644 = vmatmul.mubr.bf16.gmra.mrb[0].mxu0 %v609
  %v645 = vpop.f32.mrb[0].mxu0
  %v646 = vadd.f32 %v599, %v645
  %v647 = vpop.f32.mrb[0].mxu0
  %v648 = vadd.f32 %v601, %v647
  %v649 = vpop.f32.mrb[0].mxu0
  %v650 = vpop.f32.mrb[0].mxu0
  %651 = vdwg.mxu0
  %v652 = vadd.f32 %v646, %v246
  %v653 = vadd.f32 %v648, %v250
  %v654 = vadd.f32 %v652, %v59
  %v655 = vadd.f32 %v653, %v60
  %v656 = vtanh.pop %v654
  %v657 = vtanh.pop %v655
  %v658 = vpack.c.bf16 %v656, %v656
  %v659 = vpack.c.bf16 %v657, %v657
  %660 = vmatprep.subr.bf16.mxu0 0
  %661 = vmatpush1.bf16.msra.mxu0 %v325
  %662 = vmatprep.subr.bf16.mxu0 0
  %663 = vmatpush1.bf16.msra.mxu0 %v326
  %664 = vmatprep.subr.bf16.mxu0 0
  %665 = vmatpush1.bf16.msra.mxu0 %v327
  %666 = vmatprep.subr.bf16.mxu0 0
  %667 = vmatpush1.bf16.msra.mxu0 %v328
  %668 = vmatprep.subr.bf16.mxu0 0
  %669 = vmatpush1.bf16.msra.mxu0 %v329
  %670 = vmatprep.subr.bf16.mxu0 0
  %671 = vmatpush1.bf16.msra.mxu0 %v330
  %672 = vmatprep.subr.bf16.mxu0 0
  %673 = vmatpush1.bf16.msra.mxu0 %v331
  %674 = vmatprep.subr.bf16.mxu0 0
  %675 = vmatpush1.bf16.msra.mxu0 %v332
  %676 = vmatprep.subr.bf16.mxu0 0
  %677 = vmatpush1.bf16.msra.mxu0 %v333
  %678 = vmatprep.subr.bf16.mxu0 0
  %679 = vmatpush1.bf16.msra.mxu0 %v334
  %680 = vmatprep.subr.bf16.mxu0 0
  %681 = vmatpush1.bf16.msra.mxu0 %v335
  %682 = vmatprep.subr.bf16.mxu0 0
  %683 = vmatpush1.bf16.msra.mxu0 %v336
  %684 = vmatprep.subr.bf16.mxu0 0
  %685 = vmatpush1.bf16.msra.mxu0 %v337
  %686 = vmatprep.subr.bf16.mxu0 0
  %687 = vmatpush1.bf16.msra.mxu0 %v338
  %688 = vmatprep.subr.bf16.mxu0 0
  %689 = vmatpush1.bf16.msra.mxu0 %v339
  %690 = vmatprep.subr.bf16.mxu0 0
  %691 = vmatpush1.bf16.msra.mxu0 %v340
  %692 = vmatprep.mubr.bf16.mxu0 %v659
  %693 = vmatmul.mubr.bf16.gmra.mrb[0].mxu0 %v658
  %v694 = vpop.f32.mrb[0].mxu0
  %v695 = vadd.f32 0.0, %v694
  %v696 = vpop.f32.mrb[0].mxu0
  %v697 = vpop.f32.mrb[0].mxu0
  %v698 = vpop.f32.mrb[0].mxu0
  %699 = vdwg.mxu0
  %v700 = vmul.f32 %v695, 1.442695
  %v701 = vpow.pop %v700
  %v702 = vsel %vm399, %v701, 0.0
  %703 = vadd.xlane.f32.xlu0 %v702
  %v704 = vpop.xlane.xlu0 %703
  %v705 = vrcp.pop %v704
  %v706 = vmul.f32 %v701, %v705
  %708 = vset.pattern.permute.xlu0 0
  %709 = vperm.xlu0 %708, %v706
  %v710 = vpop.permute.xlu0 %709
  %v712 = vmul.f32 %v710, %v61
  %713 = vset.pattern.permute.xlu0 1
  %714 = vperm.xlu0 %713, %v706
  %v715 = vpop.permute.xlu0 %714
  %v717 = vmul.f32 %v715, %v62
  %v718 = vadd.f32 %v712, %v717
  %719 = vset.pattern.permute.xlu0 2
  %720 = vperm.xlu0 %719, %v706
  %v721 = vpop.permute.xlu0 %720
  %v723 = vmul.f32 %v721, %v63
  %v724 = vadd.f32 %v718, %v723
  %725 = vset.pattern.permute.xlu0 3
  %726 = vperm.xlu0 %725, %v706
  %v727 = vpop.permute.xlu0 %726
  %v729 = vmul.f32 %v727, %v64
  %v730 = vadd.f32 %v724, %v729
  %731 = vset.pattern.permute.xlu0 4
  %732 = vperm.xlu0 %731, %v706
  %v733 = vpop.permute.xlu0 %732
  %v735 = vmul.f32 %v733, %v65
  %v736 = vadd.f32 %v730, %v735
  %737 = vset.pattern.permute.xlu0 5
  %738 = vperm.xlu0 %737, %v706
  %v739 = vpop.permute.xlu0 %738
  %v741 = vmul.f32 %v739, %v66
  %v742 = vadd.f32 %v736, %v741
  %743 = vset.pattern.permute.xlu0 6
  %744 = vperm.xlu0 %743, %v706
  %v745 = vpop.permute.xlu0 %744
  %v747 = vmul.f32 %v745, %v67
  %v748 = vadd.f32 %v742, %v747
  %749 = vset.pattern.permute.xlu0 7
  %750 = vperm.xlu0 %749, %v706
  %v751 = vpop.permute.xlu0 %750
  %v753 = vmul.f32 %v751, %v68
  %v754 = vadd.f32 %v748, %v753
  %v755 = vld [vmem:[%s3] sm:$0xff]
  %757 = vset.pattern.permute.xlu0 1
  %758 = vperm.xlu0 %757, %v755
  %v759 = vpop.permute.xlu0 %758
  %v761 = vmul.f32 %v759, %v463
  %v762 = vadd.f32 %v754, %v761
  %763 = vmatprep.subr.bf16.mxu0 0
  %764 = vmatpush1.bf16.msra.mxu0 %v475
  %765 = vmatprep.subr.bf16.mxu0 0
  %766 = vmatpush1.bf16.msra.mxu0 %v476
  %767 = vmatprep.subr.bf16.mxu0 0
  %768 = vmatpush1.bf16.msra.mxu0 0
  %769 = vmatprep.subr.bf16.mxu0 0
  %770 = vmatpush1.bf16.msra.mxu0 0
  %771 = vmatprep.subr.bf16.mxu0 0
  %772 = vmatpush1.bf16.msra.mxu0 0
  %773 = vmatprep.subr.bf16.mxu0 0
  %774 = vmatpush1.bf16.msra.mxu0 0
  %775 = vmatprep.subr.bf16.mxu0 0
  %776 = vmatpush1.bf16.msra.mxu0 0
  %777 = vmatprep.subr.bf16.mxu0 0
  %778 = vmatpush1.bf16.msra.mxu0 0
  %779 = vmatprep.subr.bf16.mxu0 0
  %780 = vmatpush1.bf16.msra.mxu0 0
  %781 = vmatprep.subr.bf16.mxu0 0
  %782 = vmatpush1.bf16.msra.mxu0 0
  %783 = vmatprep.subr.bf16.mxu0 0
  %784 = vmatpush1.bf16.msra.mxu0 0
  %785 = vmatprep.subr.bf16.mxu0 0
  %786 = vmatpush1.bf16.msra.mxu0 0
  %787 = vmatprep.subr.bf16.mxu0 0
  %788 = vmatpush1.bf16.msra.mxu0 0
  %789 = vmatprep.subr.bf16.mxu0 0
  %790 = vmatpush1.bf16.msra.mxu0 0
  %791 = vmatprep.subr.bf16.mxu0 0
  %792 = vmatpush1.bf16.msra.mxu0 0
  %793 = vmatprep.subr.bf16.mxu0 0
  %794 = vmatpush1.bf16.msra.mxu0 0
  %795 = vmatprep.mubr.bf16.mxu0 0
  %796 = vmatmul.mubr.bf16.gmra.mrb[0].mxu0 %v609
  %v797 = vpop.f32.mrb[0].mxu0
  %v798 = vadd.f32 0.0, %v797
  %v799 = vpop.f32.mrb[0].mxu0
  %v800 = vpop.f32.mrb[0].mxu0
  %v801 = vpop.f32.mrb[0].mxu0
  %802 = vdwg.mxu0
  %v803 = vadd.f32 %v762, %v798
  %v804 = vadd.f32 %v803, %v524
  %v805 = vxor.u32 %v804, 2147483648
  %v806 = vmul.f32 %v805, 1.442695
  %v807 = vpow.pop %v806
  %v808 = vadd.f32 %v807, 1.0
  %v809 = vrcp.pop %v808
  %v810 = vmul.f32 1.0, %v809
  %v811 = vtanh.pop %v804
  %v812 = vmul.f32 %v810, %v544
  %814 = vrot.lane.b32.xlu0 %v811, 64
  %v815 = vpop.permute.xlu0 %814
  %v817 = vmul.f32 %v810, %v815
  %819 = vrot.lane.b32.xlu0 %v817, 32
  %v820 = vpop.permute.xlu0 %819
  %v822 = vadd.f32 %v812, %v820
  %v823 = vtanh.pop %v822
  %825 = vrot.lane.b32.xlu0 %v823, 64
  %v826 = vpop.permute.xlu0 %825
  %v828 = vmul.f32 %v810, %v826
  %830 = vrot.lane.b32.xlu0 %v828, 64
  %v831 = vpop.permute.xlu0 %830
  %vm833 = vcmask 523520
  %834 = vst.msk [vmem:[#allocation2] sm:$0xff] %vm833, %v831
  %v835 = vpack.c.bf16 %v828, %v828
  %v836 = vpack.c.bf16 %v822, %v822
  %838 = vrot.lane.b32.xlu0 %v836, 96
  %v839 = vpop.permute.xlu0 %838
  %v841 = vsel %vm136, %v839, 0
  %843 = vmatprep.subr.bf16.mxu0 %v129
  %844 = vmatpush1.bf16.msra.mxu0 %v128
  %845 = vmatprep.subr.bf16.mxu0 %v131
  %846 = vmatpush1.bf16.msra.mxu0 %v130
  %847 = vmatprep.subr.bf16.mxu0 0
  %848 = vmatpush1.bf16.msra.mxu0 0
  %849 = vmatprep.subr.bf16.mxu0 0
  %850 = vmatpush1.bf16.msra.mxu0 0
  %851 = vmatprep.subr.bf16.mxu0 0
  %852 = vmatpush1.bf16.msra.mxu0 0
  %853 = vmatprep.subr.bf16.mxu0 0
  %854 = vmatpush1.bf16.msra.mxu0 0
  %855 = vmatprep.subr.bf16.mxu0 0
  %856 = vmatpush1.bf16.msra.mxu0 0
  %857 = vmatprep.subr.bf16.mxu0 0
  %858 = vmatpush1.bf16.msra.mxu0 0
  %859 = vmatprep.subr.bf16.mxu0 0
  %860 = vmatpush1.bf16.msra.mxu0 0
  %861 = vmatprep.subr.bf16.mxu0 0
  %862 = vmatpush1.bf16.msra.mxu0 0
  %863 = vmatprep.subr.bf16.mxu0 0
  %864 = vmatpush1.bf16.msra.mxu0 0
  %865 = vmatprep.subr.bf16.mxu0 0
  %866 = vmatpush1.bf16.msra.mxu0 0
  %867 = vmatprep.subr.bf16.mxu0 0
  %868 = vmatpush1.bf16.msra.mxu0 0
  %869 = vmatprep.subr.bf16.mxu0 0
  %870 = vmatpush1.bf16.msra.mxu0 0
  %871 = vmatprep.subr.bf16.mxu0 0
  %872 = vmatpush1.bf16.msra.mxu0 0
  %873 = vmatprep.subr.bf16.mxu0 0
  %874 = vmatpush1.bf16.msra.mxu0 0
  %875 = vmatprep.mubr.bf16.mxu0 0
  %876 = vmatmul.mubr.bf16.gmra.mrb[0].mxu0 %v841
  %v877 = vpop.f32.mrb[0].mxu0
  %v878 = vadd.f32 0.0, %v877
  %v879 = vpop.f32.mrb[0].mxu0
  %v880 = vadd.f32 0.0, %v879
  %v881 = vpop.f32.mrb[0].mxu0
  %v882 = vpop.f32.mrb[0].mxu0
  %883 = vdwg.mxu0
  %885 = vrot.lane.b32.xlu0 %v835, 32
  %v886 = vpop.permute.xlu0 %885
  %v888 = vsel %vm136, %v886, 0
  %890 = vmatprep.subr.bf16.mxu0 %v194
  %891 = vmatpush1.bf16.msra.mxu0 %v193
  %892 = vmatprep.subr.bf16.mxu0 %v196
  %893 = vmatpush1.bf16.msra.mxu0 %v195
  %894 = vmatprep.subr.bf16.mxu0 0
  %895 = vmatpush1.bf16.msra.mxu0 0
  %896 = vmatprep.subr.bf16.mxu0 0
  %897 = vmatpush1.bf16.msra.mxu0 0
  %898 = vmatprep.subr.bf16.mxu0 0
  %899 = vmatpush1.bf16.msra.mxu0 0
  %900 = vmatprep.subr.bf16.mxu0 0
  %901 = vmatpush1.bf16.msra.mxu0 0
  %902 = vmatprep.subr.bf16.mxu0 0
  %903 = vmatpush1.bf16.msra.mxu0 0
  %904 = vmatprep.subr.bf16.mxu0 0
  %905 = vmatpush1.bf16.msra.mxu0 0
  %906 = vmatprep.subr.bf16.mxu0 0
  %907 = vmatpush1.bf16.msra.mxu0 0
  %908 = vmatprep.subr.bf16.mxu0 0
  %909 = vmatpush1.bf16.msra.mxu0 0
  %910 = vmatprep.subr.bf16.mxu0 0
  %911 = vmatpush1.bf16.msra.mxu0 0
  %912 = vmatprep.subr.bf16.mxu0 0
  %913 = vmatpush1.bf16.msra.mxu0 0
  %914 = vmatprep.subr.bf16.mxu0 0
  %915 = vmatpush1.bf16.msra.mxu0 0
  %916 = vmatprep.subr.bf16.mxu0 0
  %917 = vmatpush1.bf16.msra.mxu0 0
  %918 = vmatprep.subr.bf16.mxu0 0
  %919 = vmatpush1.bf16.msra.mxu0 0
  %920 = vmatprep.subr.bf16.mxu0 0
  %921 = vmatpush1.bf16.msra.mxu0 0
  %922 = vmatprep.mubr.bf16.mxu0 0
  %923 = vmatmul.mubr.bf16.gmra.mrb[0].mxu0 %v888
  %v924 = vpop.f32.mrb[0].mxu0
  %v925 = vadd.f32 %v878, %v924
  %v926 = vpop.f32.mrb[0].mxu0
  %v927 = vadd.f32 %v880, %v926
  %v928 = vpop.f32.mrb[0].mxu0
  %v929 = vpop.f32.mrb[0].mxu0
  %930 = vdwg.mxu0
  %v931 = vadd.f32 %v925, %v246
  %v932 = vadd.f32 %v927, %v250
  %v933 = vadd.f32 %v931, %v59
  %v934 = vadd.f32 %v932, %v60
  %v935 = vtanh.pop %v933
  %v936 = vtanh.pop %v934
  %v937 = vpack.c.bf16 %v935, %v935
  %v938 = vpack.c.bf16 %v936, %v936
  %939 = vmatprep.subr.bf16.mxu0 0
  %940 = vmatpush1.bf16.msra.mxu0 %v325
  %941 = vmatprep.subr.bf16.mxu0 0
  %942 = vmatpush1.bf16.msra.mxu0 %v326
  %943 = vmatprep.subr.bf16.mxu0 0
  %944 = vmatpush1.bf16.msra.mxu0 %v327
  %945 = vmatprep.subr.bf16.mxu0 0
  %946 = vmatpush1.bf16.msra.mxu0 %v328
  %947 = vmatprep.subr.bf16.mxu0 0
  %948 = vmatpush1.bf16.msra.mxu0 %v329
  %949 = vmatprep.subr.bf16.mxu0 0
  %950 = vmatpush1.bf16.msra.mxu0 %v330
  %951 = vmatprep.subr.bf16.mxu0 0
  %952 = vmatpush1.bf16.msra.mxu0 %v331
  %953 = vmatprep.subr.bf16.mxu0 0
  %954 = vmatpush1.bf16.msra.mxu0 %v332
  %955 = vmatprep.subr.bf16.mxu0 0
  %956 = vmatpush1.bf16.msra.mxu0 %v333
  %957 = vmatprep.subr.bf16.mxu0 0
  %958 = vmatpush1.bf16.msra.mxu0 %v334
  %959 = vmatprep.subr.bf16.mxu0 0
  %960 = vmatpush1.bf16.msra.mxu0 %v335
  %961 = vmatprep.subr.bf16.mxu0 0
  %962 = vmatpush1.bf16.msra.mxu0 %v336
  %963 = vmatprep.subr.bf16.mxu0 0
  %964 = vmatpush1.bf16.msra.mxu0 %v337
  %965 = vmatprep.subr.bf16.mxu0 0
  %966 = vmatpush1.bf16.msra.mxu0 %v338
  %967 = vmatprep.subr.bf16.mxu0 0
  %968 = vmatpush1.bf16.msra.mxu0 %v339
  %969 = vmatprep.subr.bf16.mxu0 0
  %970 = vmatpush1.bf16.msra.mxu0 %v340
  %971 = vmatprep.mubr.bf16.mxu0 %v938
  %972 = vmatmul.mubr.bf16.gmra.mrb[0].mxu0 %v937
  %v973 = vpop.f32.mrb[0].mxu0
  %v974 = vadd.f32 0.0, %v973
  %v975 = vpop.f32.mrb[0].mxu0
  %v976 = vpop.f32.mrb[0].mxu0
  %v977 = vpop.f32.mrb[0].mxu0
  %978 = vdwg.mxu0
  %v979 = vmul.f32 %v974, 1.442695
  %v980 = vpow.pop %v979
  %v981 = vsel %vm399, %v980, 0.0
  %982 = vadd.xlane.f32.xlu0 %v981
  %v983 = vpop.xlane.xlu0 %982
  %v984 = vrcp.pop %v983
  %v985 = vmul.f32 %v980, %v984
  %987 = vset.pattern.permute.xlu0 0
  %988 = vperm.xlu0 %987, %v985
  %v989 = vpop.permute.xlu0 %988
  %v991 = vmul.f32 %v989, %v61
  %992 = vset.pattern.permute.xlu0 1
  %993 = vperm.xlu0 %992, %v985
  %v994 = vpop.permute.xlu0 %993
  %v996 = vmul.f32 %v994, %v62
  %v997 = vadd.f32 %v991, %v996
  %998 = vset.pattern.permute.xlu0 2
  %999 = vperm.xlu0 %998, %v985
  %v1000 = vpop.permute.xlu0 %999
  %v1002 = vmul.f32 %v1000, %v63
  %v1003 = vadd.f32 %v997, %v1002
  %1004 = vset.pattern.permute.xlu0 3
  %1005 = vperm.xlu0 %1004, %v985
  %v1006 = vpop.permute.xlu0 %1005
  %v1008 = vmul.f32 %v1006, %v64
  %v1009 = vadd.f32 %v1003, %v1008
  %1010 = vset.pattern.permute.xlu0 4
  %1011 = vperm.xlu0 %1010, %v985
  %v1012 = vpop.permute.xlu0 %1011
  %v1014 = vmul.f32 %v1012, %v65
  %v1015 = vadd.f32 %v1009, %v1014
  %1016 = vset.pattern.permute.xlu0 5
  %1017 = vperm.xlu0 %1016, %v985
  %v1018 = vpop.permute.xlu0 %1017
  %v1020 = vmul.f32 %v1018, %v66
  %v1021 = vadd.f32 %v1015, %v1020
  %1022 = vset.pattern.permute.xlu0 6
  %1023 = vperm.xlu0 %1022, %v985
  %v1024 = vpop.permute.xlu0 %1023
  %v1026 = vmul.f32 %v1024, %v67
  %v1027 = vadd.f32 %v1021, %v1026
  %1028 = vset.pattern.permute.xlu0 7
  %1029 = vperm.xlu0 %1028, %v985
  %v1030 = vpop.permute.xlu0 %1029
  %v1032 = vmul.f32 %v1030, %v68
  %v1033 = vadd.f32 %v1027, %v1032
  %v1034 = vld [vmem:[%s3] sm:$0xff]
  %1036 = vset.pattern.permute.xlu0 2
  %1037 = vperm.xlu0 %1036, %v1034
  %v1038 = vpop.permute.xlu0 %1037
  %v1040 = vmul.f32 %v1038, %v463
  %v1041 = vadd.f32 %v1033, %v1040
  %1042 = vmatprep.subr.bf16.mxu0 0
  %1043 = vmatpush1.bf16.msra.mxu0 %v475
  %1044 = vmatprep.subr.bf16.mxu0 0
  %1045 = vmatpush1.bf16.msra.mxu0 %v476
  %1046 = vmatprep.subr.bf16.mxu0 0
  %1047 = vmatpush1.bf16.msra.mxu0 0
  %1048 = vmatprep.subr.bf16.mxu0 0
  %1049 = vmatpush1.bf16.msra.mxu0 0
  %1050 = vmatprep.subr.bf16.mxu0 0
  %1051 = vmatpush1.bf16.msra.mxu0 0
  %1052 = vmatprep.subr.bf16.mxu0 0
  %1053 = vmatpush1.bf16.msra.mxu0 0
  %1054 = vmatprep.subr.bf16.mxu0 0
  %1055 = vmatpush1.bf16.msra.mxu0 0
  %1056 = vmatprep.subr.bf16.mxu0 0
  %1057 = vmatpush1.bf16.msra.mxu0 0
  %1058 = vmatprep.subr.bf16.mxu0 0
  %1059 = vmatpush1.bf16.msra.mxu0 0
  %1060 = vmatprep.subr.bf16.mxu0 0
  %1061 = vmatpush1.bf16.msra.mxu0 0
  %1062 = vmatprep.subr.bf16.mxu0 0
  %1063 = vmatpush1.bf16.msra.mxu0 0
  %1064 = vmatprep.subr.bf16.mxu0 0
  %1065 = vmatpush1.bf16.msra.mxu0 0
  %1066 = vmatprep.subr.bf16.mxu0 0
  %1067 = vmatpush1.bf16.msra.mxu0 0
  %1068 = vmatprep.subr.bf16.mxu0 0
  %1069 = vmatpush1.bf16.msra.mxu0 0
  %1070 = vmatprep.subr.bf16.mxu0 0
  %1071 = vmatpush1.bf16.msra.mxu0 0
  %1072 = vmatprep.subr.bf16.mxu0 0
  %1073 = vmatpush1.bf16.msra.mxu0 0
  %1074 = vmatprep.mubr.bf16.mxu0 0
  %1075 = vmatmul.mubr.bf16.gmra.mrb[0].mxu0 %v888
  %v1076 = vpop.f32.mrb[0].mxu0
  %v1077 = vadd.f32 0.0, %v1076
  %v1078 = vpop.f32.mrb[0].mxu0
  %v1079 = vpop.f32.mrb[0].mxu0
  %v1080 = vpop.f32.mrb[0].mxu0
  %1081 = vdwg.mxu0
  %v1082 = vadd.f32 %v1041, %v1077
  %v1083 = vadd.f32 %v1082, %v524
  %v1084 = vxor.u32 %v1083, 2147483648
  %v1085 = vmul.f32 %v1084, 1.442695
  %v1086 = vpow.pop %v1085
  %v1087 = vadd.f32 %v1086, 1.0
  %v1088 = vrcp.pop %v1087
  %v1089 = vmul.f32 1.0, %v1088
  %v1090 = vtanh.pop %v1083
  %v1091 = vmul.f32 %v1089, %v822
  %1093 = vrot.lane.b32.xlu0 %v1090, 64
  %v1094 = vpop.permute.xlu0 %1093
  %v1096 = vmul.f32 %v1089, %v1094
  %1098 = vrot.lane.b32.xlu0 %v1096, 32
  %v1099 = vpop.permute.xlu0 %1098
  %v1101 = vadd.f32 %v1091, %v1099
  %v1102 = vtanh.pop %v1101
  %1104 = vrot.lane.b32.xlu0 %v1102, 64
  %v1105 = vpop.permute.xlu0 %1104
  %v1107 = vmul.f32 %v1089, %v1105
  %1109 = vrot.lane.b32.xlu0 %v1107, 96
  %v1110 = vpop.permute.xlu0 %1109
  %vm1112 = vcmask 785920
  %1113 = vst.msk [vmem:[#allocation2] sm:$0xff] %vm1112, %v1110
  %v1114 = vpack.c.bf16 %v1107, %v1107
  %v1115 = vpack.c.bf16 %v1101, %v1101
  %1117 = vrot.lane.b32.xlu0 %v1115, 96
  %v1118 = vpop.permute.xlu0 %1117
  %v1120 = vsel %vm136, %v1118, 0
  %1122 = vmatprep.subr.bf16.mxu0 %v129
  %1123 = vmatpush1.bf16.msra.mxu0 %v128
  %1124 = vmatprep.subr.bf16.mxu0 %v131
  %1125 = vmatpush1.bf16.msra.mxu0 %v130
  %1126 = vmatprep.subr.bf16.mxu0 0
  %1127 = vmatpush1.bf16.msra.mxu0 0
  %1128 = vmatprep.subr.bf16.mxu0 0
  %1129 = vmatpush1.bf16.msra.mxu0 0
  %1130 = vmatprep.subr.bf16.mxu0 0
  %1131 = vmatpush1.bf16.msra.mxu0 0
  %1132 = vmatprep.subr.bf16.mxu0 0
  %1133 = vmatpush1.bf16.msra.mxu0 0
  %1134 = vmatprep.subr.bf16.mxu0 0
  %1135 = vmatpush1.bf16.msra.mxu0 0
  %1136 = vmatprep.subr.bf16.mxu0 0
  %1137 = vmatpush1.bf16.msra.mxu0 0
  %1138 = vmatprep.subr.bf16.mxu0 0
  %1139 = vmatpush1.bf16.msra.mxu0 0
  %1140 = vmatprep.subr.bf16.mxu0 0
  %1141 = vmatpush1.bf16.msra.mxu0 0
  %1142 = vmatprep.subr.bf16.mxu0 0
  %1143 = vmatpush1.bf16.msra.mxu0 0
  %1144 = vmatprep.subr.bf16.mxu0 0
  %1145 = vmatpush1.bf16.msra.mxu0 0
  %1146 = vmatprep.subr.bf16.mxu0 0
  %1147 = vmatpush1.bf16.msra.mxu0 0
  %1148 = vmatprep.subr.bf16.mxu0 0
  %1149 = vmatpush1.bf16.msra.mxu0 0
  %1150 = vmatprep.subr.bf16.mxu0 0
  %1151 = vmatpush1.bf16.msra.mxu0 0
  %1152 = vmatprep.subr.bf16.mxu0 0
  %1153 = vmatpush1.bf16.msra.mxu0 0
  %1154 = vmatprep.mubr.bf16.mxu0 0
  %1155 = vmatmul.mubr.bf16.gmra.mrb[0].mxu0 %v1120
  %v1156 = vpop.f32.mrb[0].mxu0
  %v1157 = vadd.f32 0.0, %v1156
  %v1158 = vpop.f32.mrb[0].mxu0
  %v1159 = vadd.f32 0.0, %v1158
  %v1160 = vpop.f32.mrb[0].mxu0
  %v1161 = vpop.f32.mrb[0].mxu0
  %1162 = vdwg.mxu0
  %1164 = vrot.lane.b32.xlu0 %v1114, 32
  %v1165 = vpop.permute.xlu0 %1164
  %v1167 = vsel %vm136, %v1165, 0
  %1169 = vmatprep.subr.bf16.mxu0 %v194
  %1170 = vmatpush1.bf16.msra.mxu0 %v193
  %1171 = vmatprep.subr.bf16.mxu0 %v196
  %1172 = vmatpush1.bf16.msra.mxu0 %v195
  %1173 = vmatprep.subr.bf16.mxu0 0
  %1174 = vmatpush1.bf16.msra.mxu0 0
  %1175 = vmatprep.subr.bf16.mxu0 0
  %1176 = vmatpush1.bf16.msra.mxu0 0
  %1177 = vmatprep.subr.bf16.mxu0 0
  %1178 = vmatpush1.bf16.msra.mxu0 0
  %1179 = vmatprep.subr.bf16.mxu0 0
  %1180 = vmatpush1.bf16.msra.mxu0 0
  %1181 = vmatprep.subr.bf16.mxu0 0
  %1182 = vmatpush1.bf16.msra.mxu0 0
  %1183 = vmatprep.subr.bf16.mxu0 0
  %1184 = vmatpush1.bf16.msra.mxu0 0
  %1185 = vmatprep.subr.bf16.mxu0 0
  %1186 = vmatpush1.bf16.msra.mxu0 0
  %1187 = vmatprep.subr.bf16.mxu0 0
  %1188 = vmatpush1.bf16.msra.mxu0 0
  %1189 = vmatprep.subr.bf16.mxu0 0
  %1190 = vmatpush1.bf16.msra.mxu0 0
  %1191 = vmatprep.subr.bf16.mxu0 0
  %1192 = vmatpush1.bf16.msra.mxu0 0
  %1193 = vmatprep.subr.bf16.mxu0 0
  %1194 = vmatpush1.bf16.msra.mxu0 0
  %1195 = vmatprep.subr.bf16.mxu0 0
  %1196 = vmatpush1.bf16.msra.mxu0 0
  %1197 = vmatprep.subr.bf16.mxu0 0
  %1198 = vmatpush1.bf16.msra.mxu0 0
  %1199 = vmatprep.subr.bf16.mxu0 0
  %1200 = vmatpush1.bf16.msra.mxu0 0
  %1201 = vmatprep.mubr.bf16.mxu0 0
  %1202 = vmatmul.mubr.bf16.gmra.mrb[0].mxu0 %v1167
  %v1203 = vpop.f32.mrb[0].mxu0
  %v1204 = vadd.f32 %v1157, %v1203
  %v1205 = vpop.f32.mrb[0].mxu0
  %v1206 = vadd.f32 %v1159, %v1205
  %v1207 = vpop.f32.mrb[0].mxu0
  %v1208 = vpop.f32.mrb[0].mxu0
  %1209 = vdwg.mxu0
  %v1210 = vadd.f32 %v1204, %v246
  %v1211 = vadd.f32 %v1206, %v250
  %v1212 = vadd.f32 %v1210, %v59
  %v1213 = vadd.f32 %v1211, %v60
  %v1214 = vtanh.pop %v1212
  %v1215 = vtanh.pop %v1213
  %v1216 = vpack.c.bf16 %v1214, %v1214
  %v1217 = vpack.c.bf16 %v1215, %v1215
  %1218 = vmatprep.subr.bf16.mxu0 0
  %1219 = vmatpush1.bf16.msra.mxu0 %v325
  %1220 = vmatprep.subr.bf16.mxu0 0
  %1221 = vmatpush1.bf16.msra.mxu0 %v326
  %1222 = vmatprep.subr.bf16.mxu0 0
  %1223 = vmatpush1.bf16.msra.mxu0 %v327
  %1224 = vmatprep.subr.bf16.mxu0 0
  %1225 = vmatpush1.bf16.msra.mxu0 %v328
  %1226 = vmatprep.subr.bf16.mxu0 0
  %1227 = vmatpush1.bf16.msra.mxu0 %v329
  %1228 = vmatprep.subr.bf16.mxu0 0
  %1229 = vmatpush1.bf16.msra.mxu0 %v330
  %1230 = vmatprep.subr.bf16.mxu0 0
  %1231 = vmatpush1.bf16.msra.mxu0 %v331
  %1232 = vmatprep.subr.bf16.mxu0 0
  %1233 = vmatpush1.bf16.msra.mxu0 %v332
  %1234 = vmatprep.subr.bf16.mxu0 0
  %1235 = vmatpush1.bf16.msra.mxu0 %v333
  %1236 = vmatprep.subr.bf16.mxu0 0
  %1237 = vmatpush1.bf16.msra.mxu0 %v334
  %1238 = vmatprep.subr.bf16.mxu0 0
  %1239 = vmatpush1.bf16.msra.mxu0 %v335
  %1240 = vmatprep.subr.bf16.mxu0 0
  %1241 = vmatpush1.bf16.msra.mxu0 %v336
  %1242 = vmatprep.subr.bf16.mxu0 0
  %1243 = vmatpush1.bf16.msra.mxu0 %v337
  %1244 = vmatprep.subr.bf16.mxu0 0
  %1245 = vmatpush1.bf16.msra.mxu0 %v338
  %1246 = vmatprep.subr.bf16.mxu0 0
  %1247 = vmatpush1.bf16.msra.mxu0 %v339
  %1248 = vmatprep.subr.bf16.mxu0 0
  %1249 = vmatpush1.bf16.msra.mxu0 %v340
  %1250 = vmatprep.mubr.bf16.mxu0 %v1217
  %1251 = vmatmul.mubr.bf16.gmra.mrb[0].mxu0 %v1216
  %v1252 = vpop.f32.mrb[0].mxu0
  %v1253 = vadd.f32 0.0, %v1252
  %v1254 = vpop.f32.mrb[0].mxu0
  %v1255 = vpop.f32.mrb[0].mxu0
  %v1256 = vpop.f32.mrb[0].mxu0
  %1257 = vdwg.mxu0
  %v1258 = vmul.f32 %v1253, 1.442695
  %v1259 = vpow.pop %v1258
  %v1260 = vsel %vm399, %v1259, 0.0
  %1261 = vadd.xlane.f32.xlu0 %v1260
  %v1262 = vpop.xlane.xlu0 %1261
  %v1263 = vrcp.pop %v1262
  %v1264 = vmul.f32 %v1259, %v1263
  %1266 = vset.pattern.permute.xlu0 0
  %1267 = vperm.xlu0 %1266, %v1264
  %v1268 = vpop.permute.xlu0 %1267
  %v1270 = vmul.f32 %v1268, %v61
  %1271 = vset.pattern.permute.xlu0 1
  %1272 = vperm.xlu0 %1271, %v1264
  %v1273 = vpop.permute.xlu0 %1272
  %v1275 = vmul.f32 %v1273, %v62
  %v1276 = vadd.f32 %v1270, %v1275
  %1277 = vset.pattern.permute.xlu0 2
  %1278 = vperm.xlu0 %1277, %v1264
  %v1279 = vpop.permute.xlu0 %1278
  %v1281 = vmul.f32 %v1279, %v63
  %v1282 = vadd.f32 %v1276, %v1281
  %1283 = vset.pattern.permute.xlu0 3
  %1284 = vperm.xlu0 %1283, %v1264
  %v1285 = vpop.permute.xlu0 %1284
  %v1287 = vmul.f32 %v1285, %v64
  %v1288 = vadd.f32 %v1282, %v1287
  %1289 = vset.pattern.permute.xlu0 4
  %1290 = vperm.xlu0 %1289, %v1264
  %v1291 = vpop.permute.xlu0 %1290
  %v1293 = vmul.f32 %v1291, %v65
  %v1294 = vadd.f32 %v1288, %v1293
  %1295 = vset.pattern.permute.xlu0 5
  %1296 = vperm.xlu0 %1295, %v1264
  %v1297 = vpop.permute.xlu0 %1296
  %v1299 = vmul.f32 %v1297, %v66
  %v1300 = vadd.f32 %v1294, %v1299
  %1301 = vset.pattern.permute.xlu0 6
  %1302 = vperm.xlu0 %1301, %v1264
  %v1303 = vpop.permute.xlu0 %1302
  %v1305 = vmul.f32 %v1303, %v67
  %v1306 = vadd.f32 %v1300, %v1305
  %1307 = vset.pattern.permute.xlu0 7
  %1308 = vperm.xlu0 %1307, %v1264
  %v1309 = vpop.permute.xlu0 %1308
  %v1311 = vmul.f32 %v1309, %v68
  %v1312 = vadd.f32 %v1306, %v1311
  %v1313 = vld [vmem:[%s3] sm:$0xff]
  %1315 = vset.pattern.permute.xlu0 3
  %1316 = vperm.xlu0 %1315, %v1313
  %v1317 = vpop.permute.xlu0 %1316
  %v1319 = vmul.f32 %v1317, %v463
  %v1320 = vadd.f32 %v1312, %v1319
  %1321 = vmatprep.subr.bf16.mxu0 0
  %1322 = vmatpush1.bf16.msra.mxu0 %v475
  %1323 = vmatprep.subr.bf16.mxu0 0
  %1324 = vmatpush1.bf16.msra.mxu0 %v476
  %1325 = vmatprep.subr.bf16.mxu0 0
  %1326 = vmatpush1.bf16.msra.mxu0 0
  %1327 = vmatprep.subr.bf16.mxu0 0
  %1328 = vmatpush1.bf16.msra.mxu0 0
  %1329 = vmatprep.subr.bf16.mxu0 0
  %1330 = vmatpush1.bf16.msra.mxu0 0
  %1331 = vmatprep.subr.bf16.mxu0 0
  %1332 = vmatpush1.bf16.msra.mxu0 0
  %1333 = vmatprep.subr.bf16.mxu0 0
  %1334 = vmatpush1.bf16.msra.mxu0 0
  %1335 = vmatprep.subr.bf16.mxu0 0
  %1336 = vmatpush1.bf16.msra.mxu0 0
  %1337 = vmatprep.subr.bf16.mxu0 0
  %1338 = vmatpush1.bf16.msra.mxu0 0
  %1339 = vmatprep.subr.bf16.mxu0 0
  %1340 = vmatpush1.bf16.msra.mxu0 0
  %1341 = vmatprep.subr.bf16.mxu0 0
  %1342 = vmatpush1.bf16.msra.mxu0 0
  %1343 = vmatprep.subr.bf16.mxu0 0
  %1344 = vmatpush1.bf16.msra.mxu0 0
  %1345 = vmatprep.subr.bf16.mxu0 0
  %1346 = vmatpush1.bf16.msra.mxu0 0
  %1347 = vmatprep.subr.bf16.mxu0 0
  %1348 = vmatpush1.bf16.msra.mxu0 0
  %1349 = vmatprep.subr.bf16.mxu0 0
  %1350 = vmatpush1.bf16.msra.mxu0 0
  %1351 = vmatprep.subr.bf16.mxu0 0
  %1352 = vmatpush1.bf16.msra.mxu0 0
  %1353 = vmatprep.mubr.bf16.mxu0 0
  %1354 = vmatmul.mubr.bf16.gmra.mrb[0].mxu0 %v1167
  %v1355 = vpop.f32.mrb[0].mxu0
  %v1356 = vadd.f32 0.0, %v1355
  %v1357 = vpop.f32.mrb[0].mxu0
  %v1358 = vpop.f32.mrb[0].mxu0
  %v1359 = vpop.f32.mrb[0].mxu0
  %1360 = vdwg.mxu0
  %v1361 = vadd.f32 %v1320, %v1356
  %v1362 = vadd.f32 %v1361, %v524
  %v1363 = vxor.u32 %v1362, 2147483648
  %v1364 = vmul.f32 %v1363, 1.442695
  %v1365 = vpow.pop %v1364
  %v1366 = vadd.f32 %v1365, 1.0
  %v1367 = vrcp.pop %v1366
  %v1368 = vmul.f32 1.0, %v1367
  %v1369 = vtanh.pop %v1362
  %v1370 = vmul.f32 %v1368, %v1101
  %1372 = vrot.lane.b32.xlu0 %v1369, 64
  %v1373 = vpop.permute.xlu0 %1372
  %v1375 = vmul.f32 %v1368, %v1373
  %1377 = vrot.lane.b32.xlu0 %v1375, 32
  %v1378 = vpop.permute.xlu0 %1377
  %v1380 = vadd.f32 %v1370, %v1378
  %v1381 = vtanh.pop %v1380
  %1383 = vrot.lane.b32.xlu0 %v1381, 64
  %v1384 = vpop.permute.xlu0 %1383
  %v1386 = vmul.f32 %v1368, %v1384
  %vm1387 = vcmask 1048320
  %1388 = vst.msk [vmem:[#allocation2] sm:$0xff] %vm1387, %v1386
  %v1389 = vpack.c.bf16 %v1386, %v1386
  %v1390 = vpack.c.bf16 %v1380, %v1380
  %1392 = vrot.lane.b32.xlu0 %v1390, 96
  %v1393 = vpop.permute.xlu0 %1392
  %v1395 = vsel %vm136, %v1393, 0
  %1397 = vmatprep.subr.bf16.mxu0 %v129
  %1398 = vmatpush1.bf16.msra.mxu0 %v128
  %1399 = vmatprep.subr.bf16.mxu0 %v131
  %1400 = vmatpush1.bf16.msra.mxu0 %v130
  %1401 = vmatprep.subr.bf16.mxu0 0
  %1402 = vmatpush1.bf16.msra.mxu0 0
  %1403 = vmatprep.subr.bf16.mxu0 0
  %1404 = vmatpush1.bf16.msra.mxu0 0
  %1405 = vmatprep.subr.bf16.mxu0 0
  %1406 = vmatpush1.bf16.msra.mxu0 0
  %1407 = vmatprep.subr.bf16.mxu0 0
  %1408 = vmatpush1.bf16.msra.mxu0 0
  %1409 = vmatprep.subr.bf16.mxu0 0
  %1410 = vmatpush1.bf16.msra.mxu0 0
  %1411 = vmatprep.subr.bf16.mxu0 0
  %1412 = vmatpush1.bf16.msra.mxu0 0
  %1413 = vmatprep.subr.bf16.mxu0 0
  %1414 = vmatpush1.bf16.msra.mxu0 0
  %1415 = vmatprep.subr.bf16.mxu0 0
  %1416 = vmatpush1.bf16.msra.mxu0 0
  %1417 = vmatprep.subr.bf16.mxu0 0
  %1418 = vmatpush1.bf16.msra.mxu0 0
  %1419 = vmatprep.subr.bf16.mxu0 0
  %1420 = vmatpush1.bf16.msra.mxu0 0
  %1421 = vmatprep.subr.bf16.mxu0 0
  %1422 = vmatpush1.bf16.msra.mxu0 0
  %1423 = vmatprep.subr.bf16.mxu0 0
  %1424 = vmatpush1.bf16.msra.mxu0 0
  %1425 = vmatprep.subr.bf16.mxu0 0
  %1426 = vmatpush1.bf16.msra.mxu0 0
  %1427 = vmatprep.subr.bf16.mxu0 0
  %1428 = vmatpush1.bf16.msra.mxu0 0
  %1429 = vmatprep.mubr.bf16.mxu0 0
  %1430 = vmatmul.mubr.bf16.gmra.mrb[0].mxu0 %v1395
  %v1431 = vpop.f32.mrb[0].mxu0
  %v1432 = vadd.f32 0.0, %v1431
  %v1433 = vpop.f32.mrb[0].mxu0
  %v1434 = vadd.f32 0.0, %v1433
  %v1435 = vpop.f32.mrb[0].mxu0
  %v1436 = vpop.f32.mrb[0].mxu0
  %1437 = vdwg.mxu0
  %1439 = vrot.lane.b32.xlu0 %v1389, 32
  %v1440 = vpop.permute.xlu0 %1439
  %v1442 = vsel %vm136, %v1440, 0
  %1444 = vmatprep.subr.bf16.mxu0 %v194
  %1445 = vmatpush1.bf16.msra.mxu0 %v193
  %1446 = vmatprep.subr.bf16.mxu0 %v196
  %1447 = vmatpush1.bf16.msra.mxu0 %v195
  %1448 = vmatprep.subr.bf16.mxu0 0
  %1449 = vmatpush1.bf16.msra.mxu0 0
  %1450 = vmatprep.subr.bf16.mxu0 0
  %1451 = vmatpush1.bf16.msra.mxu0 0
  %1452 = vmatprep.subr.bf16.mxu0 0
  %1453 = vmatpush1.bf16.msra.mxu0 0
  %1454 = vmatprep.subr.bf16.mxu0 0
  %1455 = vmatpush1.bf16.msra.mxu0 0
  %1456 = vmatprep.subr.bf16.mxu0 0
  %1457 = vmatpush1.bf16.msra.mxu0 0
  %1458 = vmatprep.subr.bf16.mxu0 0
  %1459 = vmatpush1.bf16.msra.mxu0 0
  %1460 = vmatprep.subr.bf16.mxu0 0
  %1461 = vmatpush1.bf16.msra.mxu0 0
  %1462 = vmatprep.subr.bf16.mxu0 0
  %1463 = vmatpush1.bf16.msra.mxu0 0
  %1464 = vmatprep.subr.bf16.mxu0 0
  %1465 = vmatpush1.bf16.msra.mxu0 0
  %1466 = vmatprep.subr.bf16.mxu0 0
  %1467 = vmatpush1.bf16.msra.mxu0 0
  %1468 = vmatprep.subr.bf16.mxu0 0
  %1469 = vmatpush1.bf16.msra.mxu0 0
  %1470 = vmatprep.subr.bf16.mxu0 0
  %1471 = vmatpush1.bf16.msra.mxu0 0
  %1472 = vmatprep.subr.bf16.mxu0 0
  %1473 = vmatpush1.bf16.msra.mxu0 0
  %1474 = vmatprep.subr.bf16.mxu0 0
  %1475 = vmatpush1.bf16.msra.mxu0 0
  %1476 = vmatprep.mubr.bf16.mxu0 0
  %1477 = vmatmul.mubr.bf16.gmra.mrb[0].mxu0 %v1442
  %v1478 = vpop.f32.mrb[0].mxu0
  %v1479 = vadd.f32 %v1432, %v1478
  %v1480 = vpop.f32.mrb[0].mxu0
  %v1481 = vadd.f32 %v1434, %v1480
  %v1482 = vpop.f32.mrb[0].mxu0
  %v1483 = vpop.f32.mrb[0].mxu0
  %1484 = vdwg.mxu0
  %v1485 = vadd.f32 %v1479, %v246
  %v1486 = vadd.f32 %v1481, %v250
  %v1487 = vadd.f32 %v1485, %v59
  %v1488 = vadd.f32 %v1486, %v60
  %v1489 = vtanh.pop %v1487
  %v1490 = vtanh.pop %v1488
  %v1491 = vpack.c.bf16 %v1489, %v1489
  %v1492 = vpack.c.bf16 %v1490, %v1490
  %1493 = vmatprep.subr.bf16.mxu0 0
  %1494 = vmatpush1.bf16.msra.mxu0 %v325
  %1495 = vmatprep.subr.bf16.mxu0 0
  %1496 = vmatpush1.bf16.msra.mxu0 %v326
  %1497 = vmatprep.subr.bf16.mxu0 0
  %1498 = vmatpush1.bf16.msra.mxu0 %v327
  %1499 = vmatprep.subr.bf16.mxu0 0
  %1500 = vmatpush1.bf16.msra.mxu0 %v328
  %1501 = vmatprep.subr.bf16.mxu0 0
  %1502 = vmatpush1.bf16.msra.mxu0 %v329
  %1503 = vmatprep.subr.bf16.mxu0 0
  %1504 = vmatpush1.bf16.msra.mxu0 %v330
  %1505 = vmatprep.subr.bf16.mxu0 0
  %1506 = vmatpush1.bf16.msra.mxu0 %v331
  %1507 = vmatprep.subr.bf16.mxu0 0
  %1508 = vmatpush1.bf16.msra.mxu0 %v332
  %1509 = vmatprep.subr.bf16.mxu0 0
  %1510 = vmatpush1.bf16.msra.mxu0 %v333
  %1511 = vmatprep.subr.bf16.mxu0 0
  %1512 = vmatpush1.bf16.msra.mxu0 %v334
  %1513 = vmatprep.subr.bf16.mxu0 0
  %1514 = vmatpush1.bf16.msra.mxu0 %v335
  %1515 = vmatprep.subr.bf16.mxu0 0
  %1516 = vmatpush1.bf16.msra.mxu0 %v336
  %1517 = vmatprep.subr.bf16.mxu0 0
  %1518 = vmatpush1.bf16.msra.mxu0 %v337
  %1519 = vmatprep.subr.bf16.mxu0 0
  %1520 = vmatpush1.bf16.msra.mxu0 %v338
  %1521 = vmatprep.subr.bf16.mxu0 0
  %1522 = vmatpush1.bf16.msra.mxu0 %v339
  %1523 = vmatprep.subr.bf16.mxu0 0
  %1524 = vmatpush1.bf16.msra.mxu0 %v340
  %1525 = vmatprep.mubr.bf16.mxu0 %v1492
  %1526 = vmatmul.mubr.bf16.gmra.mrb[0].mxu0 %v1491
  %v1527 = vpop.f32.mrb[0].mxu0
  %v1528 = vadd.f32 0.0, %v1527
  %v1529 = vpop.f32.mrb[0].mxu0
  %v1530 = vpop.f32.mrb[0].mxu0
  %v1531 = vpop.f32.mrb[0].mxu0
  %1532 = vdwg.mxu0
  %v1533 = vmul.f32 %v1528, 1.442695
  %v1534 = vpow.pop %v1533
  %v1535 = vsel %vm399, %v1534, 0.0
  %1536 = vadd.xlane.f32.xlu0 %v1535
  %v1537 = vpop.xlane.xlu0 %1536
  %v1538 = vrcp.pop %v1537
  %v1539 = vmul.f32 %v1534, %v1538
  %1541 = vset.pattern.permute.xlu0 0
  %1542 = vperm.xlu0 %1541, %v1539
  %v1543 = vpop.permute.xlu0 %1542
  %v1545 = vmul.f32 %v1543, %v61
  %1546 = vset.pattern.permute.xlu0 1
  %1547 = vperm.xlu0 %1546, %v1539
  %v1548 = vpop.permute.xlu0 %1547
  %v1550 = vmul.f32 %v1548, %v62
  %v1551 = vadd.f32 %v1545, %v1550
  %1552 = vset.pattern.permute.xlu0 2
  %1553 = vperm.xlu0 %1552, %v1539
  %v1554 = vpop.permute.xlu0 %1553
  %v1556 = vmul.f32 %v1554, %v63
  %v1557 = vadd.f32 %v1551, %v1556
  %1558 = vset.pattern.permute.xlu0 3
  %1559 = vperm.xlu0 %1558, %v1539
  %v1560 = vpop.permute.xlu0 %1559
  %v1562 = vmul.f32 %v1560, %v64
  %v1563 = vadd.f32 %v1557, %v1562
  %1564 = vset.pattern.permute.xlu0 4
  %1565 = vperm.xlu0 %1564, %v1539
  %v1566 = vpop.permute.xlu0 %1565
  %v1568 = vmul.f32 %v1566, %v65
  %v1569 = vadd.f32 %v1563, %v1568
  %1570 = vset.pattern.permute.xlu0 5
  %1571 = vperm.xlu0 %1570, %v1539
  %v1572 = vpop.permute.xlu0 %1571
  %v1574 = vmul.f32 %v1572, %v66
  %v1575 = vadd.f32 %v1569, %v1574
  %1576 = vset.pattern.permute.xlu0 6
  %1577 = vperm.xlu0 %1576, %v1539
  %v1578 = vpop.permute.xlu0 %1577
  %v1580 = vmul.f32 %v1578, %v67
  %v1581 = vadd.f32 %v1575, %v1580
  %1582 = vset.pattern.permute.xlu0 7
  %1583 = vperm.xlu0 %1582, %v1539
  %v1584 = vpop.permute.xlu0 %1583
  %v1586 = vmul.f32 %v1584, %v68
  %v1587 = vadd.f32 %v1581, %v1586
  %v1588 = vld [vmem:[%s3] sm:$0xff]
  %1590 = vset.pattern.permute.xlu0 4
  %1591 = vperm.xlu0 %1590, %v1588
  %v1592 = vpop.permute.xlu0 %1591
  %v1594 = vmul.f32 %v1592, %v463
  %v1595 = vadd.f32 %v1587, %v1594
  %1596 = vmatprep.subr.bf16.mxu0 0
  %1597 = vmatpush1.bf16.msra.mxu0 %v475
  %1598 = vmatprep.subr.bf16.mxu0 0
  %1599 = vmatpush1.bf16.msra.mxu0 %v476
  %1600 = vmatprep.subr.bf16.mxu0 0
  %1601 = vmatpush1.bf16.msra.mxu0 0
  %1602 = vmatprep.subr.bf16.mxu0 0
  %1603 = vmatpush1.bf16.msra.mxu0 0
  %1604 = vmatprep.subr.bf16.mxu0 0
  %1605 = vmatpush1.bf16.msra.mxu0 0
  %1606 = vmatprep.subr.bf16.mxu0 0
  %1607 = vmatpush1.bf16.msra.mxu0 0
  %1608 = vmatprep.subr.bf16.mxu0 0
  %1609 = vmatpush1.bf16.msra.mxu0 0
  %1610 = vmatprep.subr.bf16.mxu0 0
  %1611 = vmatpush1.bf16.msra.mxu0 0
  %1612 = vmatprep.subr.bf16.mxu0 0
  %1613 = vmatpush1.bf16.msra.mxu0 0
  %1614 = vmatprep.subr.bf16.mxu0 0
  %1615 = vmatpush1.bf16.msra.mxu0 0
  %1616 = vmatprep.subr.bf16.mxu0 0
  %1617 = vmatpush1.bf16.msra.mxu0 0
  %1618 = vmatprep.subr.bf16.mxu0 0
  %1619 = vmatpush1.bf16.msra.mxu0 0
  %1620 = vmatprep.subr.bf16.mxu0 0
  %1621 = vmatpush1.bf16.msra.mxu0 0
  %1622 = vmatprep.subr.bf16.mxu0 0
  %1623 = vmatpush1.bf16.msra.mxu0 0
  %1624 = vmatprep.subr.bf16.mxu0 0
  %1625 = vmatpush1.bf16.msra.mxu0 0
  %1626 = vmatprep.subr.bf16.mxu0 0
  %1627 = vmatpush1.bf16.msra.mxu0 0
  %1628 = vmatprep.mubr.bf16.mxu0 0
  %1629 = vmatmul.mubr.bf16.gmra.mrb[0].mxu0 %v1442
  %v1630 = vpop.f32.mrb[0].mxu0
  %v1631 = vadd.f32 0.0, %v1630
  %v1632 = vpop.f32.mrb[0].mxu0
  %v1633 = vpop.f32.mrb[0].mxu0
  %v1634 = vpop.f32.mrb[0].mxu0
  %1635 = vdwg.mxu0
  %v1636 = vadd.f32 %v1595, %v1631
  %v1637 = vadd.f32 %v1636, %v524
  %v1638 = vxor.u32 %v1637, 2147483648
  %v1639 = vmul.f32 %v1638, 1.442695
  %v1640 = vpow.pop %v1639
  %v1641 = vadd.f32 %v1640, 1.0
  %v1642 = vrcp.pop %v1641
  %v1643 = vmul.f32 1.0, %v1642
  %v1644 = vtanh.pop %v1637
  %v1645 = vmul.f32 %v1643, %v1380
  %1647 = vrot.lane.b32.xlu0 %v1644, 64
  %v1648 = vpop.permute.xlu0 %1647
  %v1650 = vmul.f32 %v1643, %v1648
  %1652 = vrot.lane.b32.xlu0 %v1650, 32
  %v1653 = vpop.permute.xlu0 %1652
  %v1655 = vadd.f32 %v1645, %v1653
  %v1656 = vtanh.pop %v1655
  %1658 = vrot.lane.b32.xlu0 %v1656, 64
  %v1659 = vpop.permute.xlu0 %1658
  %v1661 = vmul.f32 %v1643, %v1659
  %1663 = vrot.lane.b32.xlu0 %v1661, 32
  %v1664 = vpop.permute.xlu0 %1663
  %1666 = vst.msk [vmem:[#allocation2 + $0x8] sm:$0xff] %vm136, %v1664
  %v1667 = vpack.c.bf16 %v1661, %v1661
  %v1668 = vpack.c.bf16 %v1655, %v1655
  %1670 = vrot.lane.b32.xlu0 %v1668, 96
  %v1671 = vpop.permute.xlu0 %1670
  %v1673 = vsel %vm136, %v1671, 0
  %1675 = vmatprep.subr.bf16.mxu0 %v129
  %1676 = vmatpush1.bf16.msra.mxu0 %v128
  %1677 = vmatprep.subr.bf16.mxu0 %v131
  %1678 = vmatpush1.bf16.msra.mxu0 %v130
  %1679 = vmatprep.subr.bf16.mxu0 0
  %1680 = vmatpush1.bf16.msra.mxu0 0
  %1681 = vmatprep.subr.bf16.mxu0 0
  %1682 = vmatpush1.bf16.msra.mxu0 0
  %1683 = vmatprep.subr.bf16.mxu0 0
  %1684 = vmatpush1.bf16.msra.mxu0 0
  %1685 = vmatprep.subr.bf16.mxu0 0
  %1686 = vmatpush1.bf16.msra.mxu0 0
  %1687 = vmatprep.subr.bf16.mxu0 0
  %1688 = vmatpush1.bf16.msra.mxu0 0
  %1689 = vmatprep.subr.bf16.mxu0 0
  %1690 = vmatpush1.bf16.msra.mxu0 0
  %1691 = vmatprep.subr.bf16.mxu0 0
  %1692 = vmatpush1.bf16.msra.mxu0 0
  %1693 = vmatprep.subr.bf16.mxu0 0
  %1694 = vmatpush1.bf16.msra.mxu0 0
  %1695 = vmatprep.subr.bf16.mxu0 0
  %1696 = vmatpush1.bf16.msra.mxu0 0
  %1697 = vmatprep.subr.bf16.mxu0 0
  %1698 = vmatpush1.bf16.msra.mxu0 0
  %1699 = vmatprep.subr.bf16.mxu0 0
  %1700 = vmatpush1.bf16.msra.mxu0 0
  %1701 = vmatprep.subr.bf16.mxu0 0
  %1702 = vmatpush1.bf16.msra.mxu0 0
  %1703 = vmatprep.subr.bf16.mxu0 0
  %1704 = vmatpush1.bf16.msra.mxu0 0
  %1705 = vmatprep.subr.bf16.mxu0 0
  %1706 = vmatpush1.bf16.msra.mxu0 0
  %1707 = vmatprep.mubr.bf16.mxu0 0
  %1708 = vmatmul.mubr.bf16.gmra.mrb[0].mxu0 %v1673
  %v1709 = vpop.f32.mrb[0].mxu0
  %v1710 = vadd.f32 0.0, %v1709
  %v1711 = vpop.f32.mrb[0].mxu0
  %v1712 = vadd.f32 0.0, %v1711
  %v1713 = vpop.f32.mrb[0].mxu0
  %v1714 = vpop.f32.mrb[0].mxu0
  %1715 = vdwg.mxu0
  %1717 = vrot.lane.b32.xlu0 %v1667, 32
  %v1718 = vpop.permute.xlu0 %1717
  %v1720 = vsel %vm136, %v1718, 0
  %1722 = vmatprep.subr.bf16.mxu0 %v194
  %1723 = vmatpush1.bf16.msra.mxu0 %v193
  %1724 = vmatprep.subr.bf16.mxu0 %v196
  %1725 = vmatpush1.bf16.msra.mxu0 %v195
  %1726 = vmatprep.subr.bf16.mxu0 0
  %1727 = vmatpush1.bf16.msra.mxu0 0
  %1728 = vmatprep.subr.bf16.mxu0 0
  %1729 = vmatpush1.bf16.msra.mxu0 0
  %1730 = vmatprep.subr.bf16.mxu0 0
  %1731 = vmatpush1.bf16.msra.mxu0 0
  %1732 = vmatprep.subr.bf16.mxu0 0
  %1733 = vmatpush1.bf16.msra.mxu0 0
  %1734 = vmatprep.subr.bf16.mxu0 0
  %1735 = vmatpush1.bf16.msra.mxu0 0
  %1736 = vmatprep.subr.bf16.mxu0 0
  %1737 = vmatpush1.bf16.msra.mxu0 0
  %1738 = vmatprep.subr.bf16.mxu0 0
  %1739 = vmatpush1.bf16.msra.mxu0 0
  %1740 = vmatprep.subr.bf16.mxu0 0
  %1741 = vmatpush1.bf16.msra.mxu0 0
  %1742 = vmatprep.subr.bf16.mxu0 0
  %1743 = vmatpush1.bf16.msra.mxu0 0
  %1744 = vmatprep.subr.bf16.mxu0 0
  %1745 = vmatpush1.bf16.msra.mxu0 0
  %1746 = vmatprep.subr.bf16.mxu0 0
  %1747 = vmatpush1.bf16.msra.mxu0 0
  %1748 = vmatprep.subr.bf16.mxu0 0
  %1749 = vmatpush1.bf16.msra.mxu0 0
  %1750 = vmatprep.subr.bf16.mxu0 0
  %1751 = vmatpush1.bf16.msra.mxu0 0
  %1752 = vmatprep.subr.bf16.mxu0 0
  %1753 = vmatpush1.bf16.msra.mxu0 0
  %1754 = vmatprep.mubr.bf16.mxu0 0
  %1755 = vmatmul.mubr.bf16.gmra.mrb[0].mxu0 %v1720
  %v1756 = vpop.f32.mrb[0].mxu0
  %v1757 = vadd.f32 %v1710, %v1756
  %v1758 = vpop.f32.mrb[0].mxu0
  %v1759 = vadd.f32 %v1712, %v1758
  %v1760 = vpop.f32.mrb[0].mxu0
  %v1761 = vpop.f32.mrb[0].mxu0
  %1762 = vdwg.mxu0
  %v1763 = vadd.f32 %v1757, %v246
  %v1764 = vadd.f32 %v1759, %v250
  %v1765 = vadd.f32 %v1763, %v59
  %v1766 = vadd.f32 %v1764, %v60
  %v1767 = vtanh.pop %v1765
  %v1768 = vtanh.pop %v1766
  %v1769 = vpack.c.bf16 %v1767, %v1767
  %v1770 = vpack.c.bf16 %v1768, %v1768
  %1771 = vmatprep.subr.bf16.mxu0 0
  %1772 = vmatpush1.bf16.msra.mxu0 %v325
  %1773 = vmatprep.subr.bf16.mxu0 0
  %1774 = vmatpush1.bf16.msra.mxu0 %v326
  %1775 = vmatprep.subr.bf16.mxu0 0
  %1776 = vmatpush1.bf16.msra.mxu0 %v327
  %1777 = vmatprep.subr.bf16.mxu0 0
  %1778 = vmatpush1.bf16.msra.mxu0 %v328
  %1779 = vmatprep.subr.bf16.mxu0 0
  %1780 = vmatpush1.bf16.msra.mxu0 %v329
  %1781 = vmatprep.subr.bf16.mxu0 0
  %1782 = vmatpush1.bf16.msra.mxu0 %v330
  %1783 = vmatprep.subr.bf16.mxu0 0
  %1784 = vmatpush1.bf16.msra.mxu0 %v331
  %1785 = vmatprep.subr.bf16.mxu0 0
  %1786 = vmatpush1.bf16.msra.mxu0 %v332
  %1787 = vmatprep.subr.bf16.mxu0 0
  %1788 = vmatpush1.bf16.msra.mxu0 %v333
  %1789 = vmatprep.subr.bf16.mxu0 0
  %1790 = vmatpush1.bf16.msra.mxu0 %v334
  %1791 = vmatprep.subr.bf16.mxu0 0
  %1792 = vmatpush1.bf16.msra.mxu0 %v335
  %1793 = vmatprep.subr.bf16.mxu0 0
  %1794 = vmatpush1.bf16.msra.mxu0 %v336
  %1795 = vmatprep.subr.bf16.mxu0 0
  %1796 = vmatpush1.bf16.msra.mxu0 %v337
  %1797 = vmatprep.subr.bf16.mxu0 0
  %1798 = vmatpush1.bf16.msra.mxu0 %v338
  %1799 = vmatprep.subr.bf16.mxu0 0
  %1800 = vmatpush1.bf16.msra.mxu0 %v339
  %1801 = vmatprep.subr.bf16.mxu0 0
  %1802 = vmatpush1.bf16.msra.mxu0 %v340
  %1803 = vmatprep.mubr.bf16.mxu0 %v1770
  %1804 = vmatmul.mubr.bf16.gmra.mrb[0].mxu0 %v1769
  %v1805 = vpop.f32.mrb[0].mxu0
  %v1806 = vadd.f32 0.0, %v1805
  %v1807 = vpop.f32.mrb[0].mxu0
  %v1808 = vpop.f32.mrb[0].mxu0
  %v1809 = vpop.f32.mrb[0].mxu0
  %1810 = vdwg.mxu0
  %v1811 = vmul.f32 %v1806, 1.442695
  %v1812 = vpow.pop %v1811
  %v1813 = vsel %vm399, %v1812, 0.0
  %1814 = vadd.xlane.f32.xlu0 %v1813
  %v1815 = vpop.xlane.xlu0 %1814
  %v1816 = vrcp.pop %v1815
  %v1817 = vmul.f32 %v1812, %v1816
  %1819 = vset.pattern.permute.xlu0 0
  %1820 = vperm.xlu0 %1819, %v1817
  %v1821 = vpop.permute.xlu0 %1820
  %v1823 = vmul.f32 %v1821, %v61
  %1824 = vset.pattern.permute.xlu0 1
  %1825 = vperm.xlu0 %1824, %v1817
  %v1826 = vpop.permute.xlu0 %1825
  %v1828 = vmul.f32 %v1826, %v62
  %v1829 = vadd.f32 %v1823, %v1828
  %1830 = vset.pattern.permute.xlu0 2
  %1831 = vperm.xlu0 %1830, %v1817
  %v1832 = vpop.permute.xlu0 %1831
  %v1834 = vmul.f32 %v1832, %v63
  %v1835 = vadd.f32 %v1829, %v1834
  %1836 = vset.pattern.permute.xlu0 3
  %1837 = vperm.xlu0 %1836, %v1817
  %v1838 = vpop.permute.xlu0 %1837
  %v1840 = vmul.f32 %v1838, %v64
  %v1841 = vadd.f32 %v1835, %v1840
  %1842 = vset.pattern.permute.xlu0 4
  %1843 = vperm.xlu0 %1842, %v1817
  %v1844 = vpop.permute.xlu0 %1843
  %v1846 = vmul.f32 %v1844, %v65
  %v1847 = vadd.f32 %v1841, %v1846
  %1848 = vset.pattern.permute.xlu0 5
  %1849 = vperm.xlu0 %1848, %v1817
  %v1850 = vpop.permute.xlu0 %1849
  %v1852 = vmul.f32 %v1850, %v66
  %v1853 = vadd.f32 %v1847, %v1852
  %1854 = vset.pattern.permute.xlu0 6
  %1855 = vperm.xlu0 %1854, %v1817
  %v1856 = vpop.permute.xlu0 %1855
  %v1858 = vmul.f32 %v1856, %v67
  %v1859 = vadd.f32 %v1853, %v1858
  %1860 = vset.pattern.permute.xlu0 7
  %1861 = vperm.xlu0 %1860, %v1817
  %v1862 = vpop.permute.xlu0 %1861
  %v1864 = vmul.f32 %v1862, %v68
  %v1865 = vadd.f32 %v1859, %v1864
  %v1866 = vld [vmem:[%s3] sm:$0xff]
  %1868 = vset.pattern.permute.xlu0 5
  %1869 = vperm.xlu0 %1868, %v1866
  %v1870 = vpop.permute.xlu0 %1869
  %v1872 = vmul.f32 %v1870, %v463
  %v1873 = vadd.f32 %v1865, %v1872
  %1874 = vmatprep.subr.bf16.mxu0 0
  %1875 = vmatpush1.bf16.msra.mxu0 %v475
  %1876 = vmatprep.subr.bf16.mxu0 0
  %1877 = vmatpush1.bf16.msra.mxu0 %v476
  %1878 = vmatprep.subr.bf16.mxu0 0
  %1879 = vmatpush1.bf16.msra.mxu0 0
  %1880 = vmatprep.subr.bf16.mxu0 0
  %1881 = vmatpush1.bf16.msra.mxu0 0
  %1882 = vmatprep.subr.bf16.mxu0 0
  %1883 = vmatpush1.bf16.msra.mxu0 0
  %1884 = vmatprep.subr.bf16.mxu0 0
  %1885 = vmatpush1.bf16.msra.mxu0 0
  %1886 = vmatprep.subr.bf16.mxu0 0
  %1887 = vmatpush1.bf16.msra.mxu0 0
  %1888 = vmatprep.subr.bf16.mxu0 0
  %1889 = vmatpush1.bf16.msra.mxu0 0
  %1890 = vmatprep.subr.bf16.mxu0 0
  %1891 = vmatpush1.bf16.msra.mxu0 0
  %1892 = vmatprep.subr.bf16.mxu0 0
  %1893 = vmatpush1.bf16.msra.mxu0 0
  %1894 = vmatprep.subr.bf16.mxu0 0
  %1895 = vmatpush1.bf16.msra.mxu0 0
  %1896 = vmatprep.subr.bf16.mxu0 0
  %1897 = vmatpush1.bf16.msra.mxu0 0
  %1898 = vmatprep.subr.bf16.mxu0 0
  %1899 = vmatpush1.bf16.msra.mxu0 0
  %1900 = vmatprep.subr.bf16.mxu0 0
  %1901 = vmatpush1.bf16.msra.mxu0 0
  %1902 = vmatprep.subr.bf16.mxu0 0
  %1903 = vmatpush1.bf16.msra.mxu0 0
  %1904 = vmatprep.subr.bf16.mxu0 0
  %1905 = vmatpush1.bf16.msra.mxu0 0
  %1906 = vmatprep.mubr.bf16.mxu0 0
  %1907 = vmatmul.mubr.bf16.gmra.mrb[0].mxu0 %v1720
  %v1908 = vpop.f32.mrb[0].mxu0
  %v1909 = vadd.f32 0.0, %v1908
  %v1910 = vpop.f32.mrb[0].mxu0
  %v1911 = vpop.f32.mrb[0].mxu0
  %v1912 = vpop.f32.mrb[0].mxu0
  %1913 = vdwg.mxu0
  %v1914 = vadd.f32 %v1873, %v1909
  %v1915 = vadd.f32 %v1914, %v524
  %v1916 = vxor.u32 %v1915, 2147483648
  %v1917 = vmul.f32 %v1916, 1.442695
  %v1918 = vpow.pop %v1917
  %v1919 = vadd.f32 %v1918, 1.0
  %v1920 = vrcp.pop %v1919
  %v1921 = vmul.f32 1.0, %v1920
  %v1922 = vtanh.pop %v1915
  %v1923 = vmul.f32 %v1921, %v1655
  %1925 = vrot.lane.b32.xlu0 %v1922, 64
  %v1926 = vpop.permute.xlu0 %1925
  %v1928 = vmul.f32 %v1921, %v1926
  %1930 = vrot.lane.b32.xlu0 %v1928, 32
  %v1931 = vpop.permute.xlu0 %1930
  %v1933 = vadd.f32 %v1923, %v1931
  %v1934 = vtanh.pop %v1933
  %1936 = vrot.lane.b32.xlu0 %v1934, 64
  %v1937 = vpop.permute.xlu0 %1936
  %v1939 = vmul.f32 %v1921, %v1937
  %1941 = vrot.lane.b32.xlu0 %v1939, 64
  %v1942 = vpop.permute.xlu0 %1941
  %1944 = vst.msk [vmem:[#allocation2 + $0x8] sm:$0xff] %vm833, %v1942
  %v1945 = vpack.c.bf16 %v1939, %v1939
  %v1946 = vpack.c.bf16 %v1933, %v1933
  %1948 = vrot.lane.b32.xlu0 %v1946, 96
  %v1949 = vpop.permute.xlu0 %1948
  %v1951 = vsel %vm136, %v1949, 0
  %1953 = vmatprep.subr.bf16.mxu0 %v129
  %1954 = vmatpush1.bf16.msra.mxu0 %v128
  %1955 = vmatprep.subr.bf16.mxu0 %v131
  %1956 = vmatpush1.bf16.msra.mxu0 %v130
  %1957 = vmatprep.subr.bf16.mxu0 0
  %1958 = vmatpush1.bf16.msra.mxu0 0
  %1959 = vmatprep.subr.bf16.mxu0 0
  %1960 = vmatpush1.bf16.msra.mxu0 0
  %1961 = vmatprep.subr.bf16.mxu0 0
  %1962 = vmatpush1.bf16.msra.mxu0 0
  %1963 = vmatprep.subr.bf16.mxu0 0
  %1964 = vmatpush1.bf16.msra.mxu0 0
  %1965 = vmatprep.subr.bf16.mxu0 0
  %1966 = vmatpush1.bf16.msra.mxu0 0
  %1967 = vmatprep.subr.bf16.mxu0 0
  %1968 = vmatpush1.bf16.msra.mxu0 0
  %1969 = vmatprep.subr.bf16.mxu0 0
  %1970 = vmatpush1.bf16.msra.mxu0 0
  %1971 = vmatprep.subr.bf16.mxu0 0
  %1972 = vmatpush1.bf16.msra.mxu0 0
  %1973 = vmatprep.subr.bf16.mxu0 0
  %1974 = vmatpush1.bf16.msra.mxu0 0
  %1975 = vmatprep.subr.bf16.mxu0 0
  %1976 = vmatpush1.bf16.msra.mxu0 0
  %1977 = vmatprep.subr.bf16.mxu0 0
  %1978 = vmatpush1.bf16.msra.mxu0 0
  %1979 = vmatprep.subr.bf16.mxu0 0
  %1980 = vmatpush1.bf16.msra.mxu0 0
  %1981 = vmatprep.subr.bf16.mxu0 0
  %1982 = vmatpush1.bf16.msra.mxu0 0
  %1983 = vmatprep.subr.bf16.mxu0 0
  %1984 = vmatpush1.bf16.msra.mxu0 0
  %1985 = vmatprep.mubr.bf16.mxu0 0
  %1986 = vmatmul.mubr.bf16.gmra.mrb[0].mxu0 %v1951
  %v1987 = vpop.f32.mrb[0].mxu0
  %v1988 = vadd.f32 0.0, %v1987
  %v1989 = vpop.f32.mrb[0].mxu0
  %v1990 = vadd.f32 0.0, %v1989
  %v1991 = vpop.f32.mrb[0].mxu0
  %v1992 = vpop.f32.mrb[0].mxu0
  %1993 = vdwg.mxu0
  %1995 = vrot.lane.b32.xlu0 %v1945, 32
  %v1996 = vpop.permute.xlu0 %1995
  %v1998 = vsel %vm136, %v1996, 0
  %2000 = vmatprep.subr.bf16.mxu0 %v194
  %2001 = vmatpush1.bf16.msra.mxu0 %v193
  %2002 = vmatprep.subr.bf16.mxu0 %v196
  %2003 = vmatpush1.bf16.msra.mxu0 %v195
  %2004 = vmatprep.subr.bf16.mxu0 0
  %2005 = vmatpush1.bf16.msra.mxu0 0
  %2006 = vmatprep.subr.bf16.mxu0 0
  %2007 = vmatpush1.bf16.msra.mxu0 0
  %2008 = vmatprep.subr.bf16.mxu0 0
  %2009 = vmatpush1.bf16.msra.mxu0 0
  %2010 = vmatprep.subr.bf16.mxu0 0
  %2011 = vmatpush1.bf16.msra.mxu0 0
  %2012 = vmatprep.subr.bf16.mxu0 0
  %2013 = vmatpush1.bf16.msra.mxu0 0
  %2014 = vmatprep.subr.bf16.mxu0 0
  %2015 = vmatpush1.bf16.msra.mxu0 0
  %2016 = vmatprep.subr.bf16.mxu0 0
  %2017 = vmatpush1.bf16.msra.mxu0 0
  %2018 = vmatprep.subr.bf16.mxu0 0
  %2019 = vmatpush1.bf16.msra.mxu0 0
  %2020 = vmatprep.subr.bf16.mxu0 0
  %2021 = vmatpush1.bf16.msra.mxu0 0
  %2022 = vmatprep.subr.bf16.mxu0 0
  %2023 = vmatpush1.bf16.msra.mxu0 0
  %2024 = vmatprep.subr.bf16.mxu0 0
  %2025 = vmatpush1.bf16.msra.mxu0 0
  %2026 = vmatprep.subr.bf16.mxu0 0
  %2027 = vmatpush1.bf16.msra.mxu0 0
  %2028 = vmatprep.subr.bf16.mxu0 0
  %2029 = vmatpush1.bf16.msra.mxu0 0
  %2030 = vmatprep.subr.bf16.mxu0 0
  %2031 = vmatpush1.bf16.msra.mxu0 0
  %2032 = vmatprep.mubr.bf16.mxu0 0
  %2033 = vmatmul.mubr.bf16.gmra.mrb[0].mxu0 %v1998
  %v2034 = vpop.f32.mrb[0].mxu0
  %v2035 = vadd.f32 %v1988, %v2034
  %v2036 = vpop.f32.mrb[0].mxu0
  %v2037 = vadd.f32 %v1990, %v2036
  %v2038 = vpop.f32.mrb[0].mxu0
  %v2039 = vpop.f32.mrb[0].mxu0
  %2040 = vdwg.mxu0
  %v2041 = vadd.f32 %v2035, %v246
  %v2042 = vadd.f32 %v2037, %v250
  %v2043 = vadd.f32 %v2041, %v59
  %v2044 = vadd.f32 %v2042, %v60
  %v2045 = vtanh.pop %v2043
  %v2046 = vtanh.pop %v2044
  %v2047 = vpack.c.bf16 %v2045, %v2045
  %v2048 = vpack.c.bf16 %v2046, %v2046
  %2049 = vmatprep.subr.bf16.mxu0 0
  %2050 = vmatpush1.bf16.msra.mxu0 %v325
  %2051 = vmatprep.subr.bf16.mxu0 0
  %2052 = vmatpush1.bf16.msra.mxu0 %v326
  %2053 = vmatprep.subr.bf16.mxu0 0
  %2054 = vmatpush1.bf16.msra.mxu0 %v327
  %2055 = vmatprep.subr.bf16.mxu0 0
  %2056 = vmatpush1.bf16.msra.mxu0 %v328
  %2057 = vmatprep.subr.bf16.mxu0 0
  %2058 = vmatpush1.bf16.msra.mxu0 %v329
  %2059 = vmatprep.subr.bf16.mxu0 0
  %2060 = vmatpush1.bf16.msra.mxu0 %v330
  %2061 = vmatprep.subr.bf16.mxu0 0
  %2062 = vmatpush1.bf16.msra.mxu0 %v331
  %2063 = vmatprep.subr.bf16.mxu0 0
  %2064 = vmatpush1.bf16.msra.mxu0 %v332
  %2065 = vmatprep.subr.bf16.mxu0 0
  %2066 = vmatpush1.bf16.msra.mxu0 %v333
  %2067 = vmatprep.subr.bf16.mxu0 0
  %2068 = vmatpush1.bf16.msra.mxu0 %v334
  %2069 = vmatprep.subr.bf16.mxu0 0
  %2070 = vmatpush1.bf16.msra.mxu0 %v335
  %2071 = vmatprep.subr.bf16.mxu0 0
  %2072 = vmatpush1.bf16.msra.mxu0 %v336
  %2073 = vmatprep.subr.bf16.mxu0 0
  %2074 = vmatpush1.bf16.msra.mxu0 %v337
  %2075 = vmatprep.subr.bf16.mxu0 0
  %2076 = vmatpush1.bf16.msra.mxu0 %v338
  %2077 = vmatprep.subr.bf16.mxu0 0
  %2078 = vmatpush1.bf16.msra.mxu0 %v339
  %2079 = vmatprep.subr.bf16.mxu0 0
  %2080 = vmatpush1.bf16.msra.mxu0 %v340
  %2081 = vmatprep.mubr.bf16.mxu0 %v2048
  %2082 = vmatmul.mubr.bf16.gmra.mrb[0].mxu0 %v2047
  %v2083 = vpop.f32.mrb[0].mxu0
  %v2084 = vadd.f32 0.0, %v2083
  %v2085 = vpop.f32.mrb[0].mxu0
  %v2086 = vpop.f32.mrb[0].mxu0
  %v2087 = vpop.f32.mrb[0].mxu0
  %2088 = vdwg.mxu0
  %v2089 = vmul.f32 %v2084, 1.442695
  %v2090 = vpow.pop %v2089
  %v2091 = vsel %vm399, %v2090, 0.0
  %2092 = vadd.xlane.f32.xlu0 %v2091
  %v2093 = vpop.xlane.xlu0 %2092
  %v2094 = vrcp.pop %v2093
  %v2095 = vmul.f32 %v2090, %v2094
  %2097 = vset.pattern.permute.xlu0 0
  %2098 = vperm.xlu0 %2097, %v2095
  %v2099 = vpop.permute.xlu0 %2098
  %v2101 = vmul.f32 %v2099, %v61
  %2102 = vset.pattern.permute.xlu0 1
  %2103 = vperm.xlu0 %2102, %v2095
  %v2104 = vpop.permute.xlu0 %2103
  %v2106 = vmul.f32 %v2104, %v62
  %v2107 = vadd.f32 %v2101, %v2106
  %2108 = vset.pattern.permute.xlu0 2
  %2109 = vperm.xlu0 %2108, %v2095
  %v2110 = vpop.permute.xlu0 %2109
  %v2112 = vmul.f32 %v2110, %v63
  %v2113 = vadd.f32 %v2107, %v2112
  %2114 = vset.pattern.permute.xlu0 3
  %2115 = vperm.xlu0 %2114, %v2095
  %v2116 = vpop.permute.xlu0 %2115
  %v2118 = vmul.f32 %v2116, %v64
  %v2119 = vadd.f32 %v2113, %v2118
  %2120 = vset.pattern.permute.xlu0 4
  %2121 = vperm.xlu0 %2120, %v2095
  %v2122 = vpop.permute.xlu0 %2121
  %v2124 = vmul.f32 %v2122, %v65
  %v2125 = vadd.f32 %v2119, %v2124
  %2126 = vset.pattern.permute.xlu0 5
  %2127 = vperm.xlu0 %2126, %v2095
  %v2128 = vpop.permute.xlu0 %2127
  %v2130 = vmul.f32 %v2128, %v66
  %v2131 = vadd.f32 %v2125, %v2130
  %2132 = vset.pattern.permute.xlu0 6
  %2133 = vperm.xlu0 %2132, %v2095
  %v2134 = vpop.permute.xlu0 %2133
  %v2136 = vmul.f32 %v2134, %v67
  %v2137 = vadd.f32 %v2131, %v2136
  %2138 = vset.pattern.permute.xlu0 7
  %2139 = vperm.xlu0 %2138, %v2095
  %v2140 = vpop.permute.xlu0 %2139
  %v2142 = vmul.f32 %v2140, %v68
  %v2143 = vadd.f32 %v2137, %v2142
  %v2144 = vld [vmem:[%s3] sm:$0xff]
  %2146 = vset.pattern.permute.xlu0 6
  %2147 = vperm.xlu0 %2146, %v2144
  %v2148 = vpop.permute.xlu0 %2147
  %v2150 = vmul.f32 %v2148, %v463
  %v2151 = vadd.f32 %v2143, %v2150
  %2152 = vmatprep.subr.bf16.mxu0 0
  %2153 = vmatpush1.bf16.msra.mxu0 %v475
  %2154 = vmatprep.subr.bf16.mxu0 0
  %2155 = vmatpush1.bf16.msra.mxu0 %v476
  %2156 = vmatprep.subr.bf16.mxu0 0
  %2157 = vmatpush1.bf16.msra.mxu0 0
  %2158 = vmatprep.subr.bf16.mxu0 0
  %2159 = vmatpush1.bf16.msra.mxu0 0
  %2160 = vmatprep.subr.bf16.mxu0 0
  %2161 = vmatpush1.bf16.msra.mxu0 0
  %2162 = vmatprep.subr.bf16.mxu0 0
  %2163 = vmatpush1.bf16.msra.mxu0 0
  %2164 = vmatprep.subr.bf16.mxu0 0
  %2165 = vmatpush1.bf16.msra.mxu0 0
  %2166 = vmatprep.subr.bf16.mxu0 0
  %2167 = vmatpush1.bf16.msra.mxu0 0
  %2168 = vmatprep.subr.bf16.mxu0 0
  %2169 = vmatpush1.bf16.msra.mxu0 0
  %2170 = vmatprep.subr.bf16.mxu0 0
  %2171 = vmatpush1.bf16.msra.mxu0 0
  %2172 = vmatprep.subr.bf16.mxu0 0
  %2173 = vmatpush1.bf16.msra.mxu0 0
  %2174 = vmatprep.subr.bf16.mxu0 0
  %2175 = vmatpush1.bf16.msra.mxu0 0
  %2176 = vmatprep.subr.bf16.mxu0 0
  %2177 = vmatpush1.bf16.msra.mxu0 0
  %2178 = vmatprep.subr.bf16.mxu0 0
  %2179 = vmatpush1.bf16.msra.mxu0 0
  %2180 = vmatprep.subr.bf16.mxu0 0
  %2181 = vmatpush1.bf16.msra.mxu0 0
  %2182 = vmatprep.subr.bf16.mxu0 0
  %2183 = vmatpush1.bf16.msra.mxu0 0
  %2184 = vmatprep.mubr.bf16.mxu0 0
  %2185 = vmatmul.mubr.bf16.gmra.mrb[0].mxu0 %v1998
  %v2186 = vpop.f32.mrb[0].mxu0
  %v2187 = vadd.f32 0.0, %v2186
  %v2188 = vpop.f32.mrb[0].mxu0
  %v2189 = vpop.f32.mrb[0].mxu0
  %v2190 = vpop.f32.mrb[0].mxu0
  %2191 = vdwg.mxu0
  %v2192 = vadd.f32 %v2151, %v2187
  %v2193 = vadd.f32 %v2192, %v524
  %v2194 = vxor.u32 %v2193, 2147483648
  %v2195 = vmul.f32 %v2194, 1.442695
  %v2196 = vpow.pop %v2195
  %v2197 = vadd.f32 %v2196, 1.0
  %v2198 = vrcp.pop %v2197
  %v2199 = vmul.f32 1.0, %v2198
  %v2200 = vtanh.pop %v2193
  %v2201 = vmul.f32 %v2199, %v1933
  %2203 = vrot.lane.b32.xlu0 %v2200, 64
  %v2204 = vpop.permute.xlu0 %2203
  %v2206 = vmul.f32 %v2199, %v2204
  %2208 = vrot.lane.b32.xlu0 %v2206, 32
  %v2209 = vpop.permute.xlu0 %2208
  %v2211 = vadd.f32 %v2201, %v2209
  %v2212 = vtanh.pop %v2211
  %2214 = vrot.lane.b32.xlu0 %v2212, 64
  %v2215 = vpop.permute.xlu0 %2214
  %v2217 = vmul.f32 %v2199, %v2215
  %2219 = vrot.lane.b32.xlu0 %v2217, 96
  %v2220 = vpop.permute.xlu0 %2219
  %2222 = vst.msk [vmem:[#allocation2 + $0x8] sm:$0xff] %vm1112, %v2220
  %v2223 = vpack.c.bf16 %v2217, %v2217
  %v2224 = vpack.c.bf16 %v2211, %v2211
  %2226 = vrot.lane.b32.xlu0 %v2224, 96
  %v2227 = vpop.permute.xlu0 %2226
  %v2229 = vsel %vm136, %v2227, 0
  %2231 = vmatprep.subr.bf16.mxu0 %v129
  %2232 = vmatpush1.bf16.msra.mxu0 %v128
  %2233 = vmatprep.subr.bf16.mxu0 %v131
  %2234 = vmatpush1.bf16.msra.mxu0 %v130
  %2235 = vmatprep.subr.bf16.mxu0 0
  %2236 = vmatpush1.bf16.msra.mxu0 0
  %2237 = vmatprep.subr.bf16.mxu0 0
  %2238 = vmatpush1.bf16.msra.mxu0 0
  %2239 = vmatprep.subr.bf16.mxu0 0
  %2240 = vmatpush1.bf16.msra.mxu0 0
  %2241 = vmatprep.subr.bf16.mxu0 0
  %2242 = vmatpush1.bf16.msra.mxu0 0
  %2243 = vmatprep.subr.bf16.mxu0 0
  %2244 = vmatpush1.bf16.msra.mxu0 0
  %2245 = vmatprep.subr.bf16.mxu0 0
  %2246 = vmatpush1.bf16.msra.mxu0 0
  %2247 = vmatprep.subr.bf16.mxu0 0
  %2248 = vmatpush1.bf16.msra.mxu0 0
  %2249 = vmatprep.subr.bf16.mxu0 0
  %2250 = vmatpush1.bf16.msra.mxu0 0
  %2251 = vmatprep.subr.bf16.mxu0 0
  %2252 = vmatpush1.bf16.msra.mxu0 0
  %2253 = vmatprep.subr.bf16.mxu0 0
  %2254 = vmatpush1.bf16.msra.mxu0 0
  %2255 = vmatprep.subr.bf16.mxu0 0
  %2256 = vmatpush1.bf16.msra.mxu0 0
  %2257 = vmatprep.subr.bf16.mxu0 0
  %2258 = vmatpush1.bf16.msra.mxu0 0
  %2259 = vmatprep.subr.bf16.mxu0 0
  %2260 = vmatpush1.bf16.msra.mxu0 0
  %2261 = vmatprep.subr.bf16.mxu0 0
  %2262 = vmatpush1.bf16.msra.mxu0 0
  %2263 = vmatprep.mubr.bf16.mxu0 0
  %2264 = vmatmul.mubr.bf16.gmra.mrb[0].mxu0 %v2229
  %v2265 = vpop.f32.mrb[0].mxu0
  %v2266 = vadd.f32 0.0, %v2265
  %v2267 = vpop.f32.mrb[0].mxu0
  %v2268 = vadd.f32 0.0, %v2267
  %v2269 = vpop.f32.mrb[0].mxu0
  %v2270 = vpop.f32.mrb[0].mxu0
  %2271 = vdwg.mxu0
  %2273 = vrot.lane.b32.xlu0 %v2223, 32
  %v2274 = vpop.permute.xlu0 %2273
  %v2276 = vsel %vm136, %v2274, 0
  %2278 = vmatprep.subr.bf16.mxu0 %v194
  %2279 = vmatpush1.bf16.msra.mxu0 %v193
  %2280 = vmatprep.subr.bf16.mxu0 %v196
  %2281 = vmatpush1.bf16.msra.mxu0 %v195
  %2282 = vmatprep.subr.bf16.mxu0 0
  %2283 = vmatpush1.bf16.msra.mxu0 0
  %2284 = vmatprep.subr.bf16.mxu0 0
  %2285 = vmatpush1.bf16.msra.mxu0 0
  %2286 = vmatprep.subr.bf16.mxu0 0
  %2287 = vmatpush1.bf16.msra.mxu0 0
  %2288 = vmatprep.subr.bf16.mxu0 0
  %2289 = vmatpush1.bf16.msra.mxu0 0
  %2290 = vmatprep.subr.bf16.mxu0 0
  %2291 = vmatpush1.bf16.msra.mxu0 0
  %2292 = vmatprep.subr.bf16.mxu0 0
  %2293 = vmatpush1.bf16.msra.mxu0 0
  %2294 = vmatprep.subr.bf16.mxu0 0
  %2295 = vmatpush1.bf16.msra.mxu0 0
  %2296 = vmatprep.subr.bf16.mxu0 0
  %2297 = vmatpush1.bf16.msra.mxu0 0
  %2298 = vmatprep.subr.bf16.mxu0 0
  %2299 = vmatpush1.bf16.msra.mxu0 0
  %2300 = vmatprep.subr.bf16.mxu0 0
  %2301 = vmatpush1.bf16.msra.mxu0 0
  %2302 = vmatprep.subr.bf16.mxu0 0
  %2303 = vmatpush1.bf16.msra.mxu0 0
  %2304 = vmatprep.subr.bf16.mxu0 0
  %2305 = vmatpush1.bf16.msra.mxu0 0
  %2306 = vmatprep.subr.bf16.mxu0 0
  %2307 = vmatpush1.bf16.msra.mxu0 0
  %2308 = vmatprep.subr.bf16.mxu0 0
  %2309 = vmatpush1.bf16.msra.mxu0 0
  %2310 = vmatprep.mubr.bf16.mxu0 0
  %2311 = vmatmul.mubr.bf16.gmra.mrb[0].mxu0 %v2276
  %v2312 = vpop.f32.mrb[0].mxu0
  %v2313 = vadd.f32 %v2266, %v2312
  %v2314 = vpop.f32.mrb[0].mxu0
  %v2315 = vadd.f32 %v2268, %v2314
  %v2316 = vpop.f32.mrb[0].mxu0
  %v2317 = vpop.f32.mrb[0].mxu0
  %2318 = vdwg.mxu0
  %v2319 = vadd.f32 %v2313, %v246
  %v2320 = vadd.f32 %v2315, %v250
  %v2321 = vadd.f32 %v2319, %v59
  %v2322 = vadd.f32 %v2320, %v60
  %v2323 = vtanh.pop %v2321
  %v2324 = vtanh.pop %v2322
  %v2325 = vpack.c.bf16 %v2323, %v2323
  %v2326 = vpack.c.bf16 %v2324, %v2324
  %2327 = vmatprep.subr.bf16.mxu0 0
  %2328 = vmatpush1.bf16.msra.mxu0 %v325
  %2329 = vmatprep.subr.bf16.mxu0 0
  %2330 = vmatpush1.bf16.msra.mxu0 %v326
  %2331 = vmatprep.subr.bf16.mxu0 0
  %2332 = vmatpush1.bf16.msra.mxu0 %v327
  %2333 = vmatprep.subr.bf16.mxu0 0
  %2334 = vmatpush1.bf16.msra.mxu0 %v328
  %2335 = vmatprep.subr.bf16.mxu0 0
  %2336 = vmatpush1.bf16.msra.mxu0 %v329
  %2337 = vmatprep.subr.bf16.mxu0 0
  %2338 = vmatpush1.bf16.msra.mxu0 %v330
  %2339 = vmatprep.subr.bf16.mxu0 0
  %2340 = vmatpush1.bf16.msra.mxu0 %v331
  %2341 = vmatprep.subr.bf16.mxu0 0
  %2342 = vmatpush1.bf16.msra.mxu0 %v332
  %2343 = vmatprep.subr.bf16.mxu0 0
  %2344 = vmatpush1.bf16.msra.mxu0 %v333
  %2345 = vmatprep.subr.bf16.mxu0 0
  %2346 = vmatpush1.bf16.msra.mxu0 %v334
  %2347 = vmatprep.subr.bf16.mxu0 0
  %2348 = vmatpush1.bf16.msra.mxu0 %v335
  %2349 = vmatprep.subr.bf16.mxu0 0
  %2350 = vmatpush1.bf16.msra.mxu0 %v336
  %2351 = vmatprep.subr.bf16.mxu0 0
  %2352 = vmatpush1.bf16.msra.mxu0 %v337
  %2353 = vmatprep.subr.bf16.mxu0 0
  %2354 = vmatpush1.bf16.msra.mxu0 %v338
  %2355 = vmatprep.subr.bf16.mxu0 0
  %2356 = vmatpush1.bf16.msra.mxu0 %v339
  %2357 = vmatprep.subr.bf16.mxu0 0
  %2358 = vmatpush1.bf16.msra.mxu0 %v340
  %2359 = vmatprep.mubr.bf16.mxu0 %v2326
  %2360 = vmatmul.mubr.bf16.gmra.mrb[0].mxu0 %v2325
  %v2361 = vpop.f32.mrb[0].mxu0
  %v2362 = vadd.f32 0.0, %v2361
  %v2363 = vpop.f32.mrb[0].mxu0
  %v2364 = vpop.f32.mrb[0].mxu0
  %v2365 = vpop.f32.mrb[0].mxu0
  %2366 = vdwg.mxu0
  %v2367 = vmul.f32 %v2362, 1.442695
  %v2368 = vpow.pop %v2367
  %v2369 = vsel %vm399, %v2368, 0.0
  %2370 = vadd.xlane.f32.xlu0 %v2369
  %v2371 = vpop.xlane.xlu0 %2370
  %v2372 = vrcp.pop %v2371
  %v2373 = vmul.f32 %v2368, %v2372
  %2375 = vset.pattern.permute.xlu0 0
  %2376 = vperm.xlu0 %2375, %v2373
  %v2377 = vpop.permute.xlu0 %2376
  %v2379 = vmul.f32 %v2377, %v61
  %2380 = vset.pattern.permute.xlu0 1
  %2381 = vperm.xlu0 %2380, %v2373
  %v2382 = vpop.permute.xlu0 %2381
  %v2384 = vmul.f32 %v2382, %v62
  %v2385 = vadd.f32 %v2379, %v2384
  %2386 = vset.pattern.permute.xlu0 2
  %2387 = vperm.xlu0 %2386, %v2373
  %v2388 = vpop.permute.xlu0 %2387
  %v2390 = vmul.f32 %v2388, %v63
  %v2391 = vadd.f32 %v2385, %v2390
  %2392 = vset.pattern.permute.xlu0 3
  %2393 = vperm.xlu0 %2392, %v2373
  %v2394 = vpop.permute.xlu0 %2393
  %v2396 = vmul.f32 %v2394, %v64
  %v2397 = vadd.f32 %v2391, %v2396
  %2398 = vset.pattern.permute.xlu0 4
  %2399 = vperm.xlu0 %2398, %v2373
  %v2400 = vpop.permute.xlu0 %2399
  %v2402 = vmul.f32 %v2400, %v65
  %v2403 = vadd.f32 %v2397, %v2402
  %2404 = vset.pattern.permute.xlu0 5
  %2405 = vperm.xlu0 %2404, %v2373
  %v2406 = vpop.permute.xlu0 %2405
  %v2408 = vmul.f32 %v2406, %v66
  %v2409 = vadd.f32 %v2403, %v2408
  %2410 = vset.pattern.permute.xlu0 6
  %2411 = vperm.xlu0 %2410, %v2373
  %v2412 = vpop.permute.xlu0 %2411
  %v2414 = vmul.f32 %v2412, %v67
  %v2415 = vadd.f32 %v2409, %v2414
  %2416 = vset.pattern.permute.xlu0 7
  %2417 = vperm.xlu0 %2416, %v2373
  %v2418 = vpop.permute.xlu0 %2417
  %v2420 = vmul.f32 %v2418, %v68
  %v2421 = vadd.f32 %v2415, %v2420
  %v2422 = vld [vmem:[%s3] sm:$0xff]
  %2424 = vset.pattern.permute.xlu0 7
  %2425 = vperm.xlu0 %2424, %v2422
  %v2426 = vpop.permute.xlu0 %2425
  %v2428 = vmul.f32 %v2426, %v463
  %v2429 = vadd.f32 %v2421, %v2428
  %2430 = vmatprep.subr.bf16.mxu0 0
  %2431 = vmatpush1.bf16.msra.mxu0 %v475
  %2432 = vmatprep.subr.bf16.mxu0 0
  %2433 = vmatpush1.bf16.msra.mxu0 %v476
  %2434 = vmatprep.subr.bf16.mxu0 0
  %2435 = vmatpush1.bf16.msra.mxu0 0
  %2436 = vmatprep.subr.bf16.mxu0 0
  %2437 = vmatpush1.bf16.msra.mxu0 0
  %2438 = vmatprep.subr.bf16.mxu0 0
  %2439 = vmatpush1.bf16.msra.mxu0 0
  %2440 = vmatprep.subr.bf16.mxu0 0
  %2441 = vmatpush1.bf16.msra.mxu0 0
  %2442 = vmatprep.subr.bf16.mxu0 0
  %2443 = vmatpush1.bf16.msra.mxu0 0
  %2444 = vmatprep.subr.bf16.mxu0 0
  %2445 = vmatpush1.bf16.msra.mxu0 0
  %2446 = vmatprep.subr.bf16.mxu0 0
  %2447 = vmatpush1.bf16.msra.mxu0 0
  %2448 = vmatprep.subr.bf16.mxu0 0
  %2449 = vmatpush1.bf16.msra.mxu0 0
  %2450 = vmatprep.subr.bf16.mxu0 0
  %2451 = vmatpush1.bf16.msra.mxu0 0
  %2452 = vmatprep.subr.bf16.mxu0 0
  %2453 = vmatpush1.bf16.msra.mxu0 0
  %2454 = vmatprep.subr.bf16.mxu0 0
  %2455 = vmatpush1.bf16.msra.mxu0 0
  %2456 = vmatprep.subr.bf16.mxu0 0
  %2457 = vmatpush1.bf16.msra.mxu0 0
  %2458 = vmatprep.subr.bf16.mxu0 0
  %2459 = vmatpush1.bf16.msra.mxu0 0
  %2460 = vmatprep.subr.bf16.mxu0 0
  %2461 = vmatpush1.bf16.msra.mxu0 0
  %2462 = vmatprep.mubr.bf16.mxu0 0
  %2463 = vmatmul.mubr.bf16.gmra.mrb[0].mxu0 %v2276
  %v2464 = vpop.f32.mrb[0].mxu0
  %v2465 = vadd.f32 0.0, %v2464
  %v2466 = vpop.f32.mrb[0].mxu0
  %v2467 = vpop.f32.mrb[0].mxu0
  %v2468 = vpop.f32.mrb[0].mxu0
  %2469 = vdwg.mxu0
  %v2470 = vadd.f32 %v2429, %v2465
  %v2471 = vadd.f32 %v2470, %v524
  %v2472 = vxor.u32 %v2471, 2147483648
  %v2473 = vmul.f32 %v2472, 1.442695
  %v2474 = vpow.pop %v2473
  %v2475 = vadd.f32 %v2474, 1.0
  %v2476 = vrcp.pop %v2475
  %v2477 = vmul.f32 1.0, %v2476
  %v2478 = vtanh.pop %v2471
  %v2479 = vmul.f32 %v2477, %v2211
  %2481 = vrot.lane.b32.xlu0 %v2478, 64
  %v2482 = vpop.permute.xlu0 %2481
  %v2484 = vmul.f32 %v2477, %v2482
  %2486 = vrot.lane.b32.xlu0 %v2484, 32
  %v2487 = vpop.permute.xlu0 %2486
  %v2489 = vadd.f32 %v2479, %v2487
  %v2490 = vtanh.pop %v2489
  %2492 = vrot.lane.b32.xlu0 %v2490, 64
  %v2493 = vpop.permute.xlu0 %2492
  %v2495 = vmul.f32 %v2477, %v2493
  %2496 = vst.msk [vmem:[#allocation2 + $0x8] sm:$0xff] %vm1387, %v2495
  %v2497 = vld [vmem:[#allocation2] sm:$0xff]
  %v2498 = vld [vmem:[#allocation2 + $0x8] sm:$0xff]
  %v2499 = vpack.c.bf16 %v2497, %v2497
  %v2500 = vpack.c.bf16 %v2498, %v2498
  %v2501 = vld [vmem:[%s11] sm:$0xf]
  %v2502 = vld [vmem:[%s11 + $0x4] sm:$0xf]
  %v2503 = vld [vmem:[%s11 + $0x8] sm:$0xf]
  %v2504 = vld [vmem:[%s11 + $0xc] sm:$0xf]
  %v2505 = vld [vmem:[%s11 + $0x10] sm:$0xf]
  %v2506 = vld [vmem:[%s11 + $0x14] sm:$0xf]
  %v2507 = vld [vmem:[%s11 + $0x18] sm:$0xf]
  %v2508 = vld [vmem:[%s11 + $0x1c] sm:$0xf]
  %v2509 = vld [vmem:[%s11 + $0x20] sm:$0xf]
  %v2510 = vld [vmem:[%s11 + $0x24] sm:$0xf]
  %v2511 = vld [vmem:[%s11 + $0x28] sm:$0xf]
  %v2512 = vld [vmem:[%s11 + $0x2c] sm:$0xf]
  %v2513 = vld [vmem:[%s11 + $0x30] sm:$0xf]
  %v2514 = vld [vmem:[%s11 + $0x34] sm:$0xf]
  %v2515 = vld [vmem:[%s11 + $0x38] sm:$0xf]
  %v2516 = vld [vmem:[%s11 + $0x3c] sm:$0xf]
  %v2517 = vld [vmem:[%s11 + $0x40] sm:$0xf]
  %v2518 = vld [vmem:[%s11 + $0x44] sm:$0xf]
  %v2519 = vld [vmem:[%s11 + $0x48] sm:$0xf]
  %v2520 = vld [vmem:[%s11 + $0x4c] sm:$0xf]
  %v2521 = vld [vmem:[%s11 + $0x50] sm:$0xf]
  %v2522 = vld [vmem:[%s11 + $0x54] sm:$0xf]
  %v2523 = vld [vmem:[%s11 + $0x58] sm:$0xf]
  %v2524 = vld [vmem:[%s11 + $0x5c] sm:$0xf]
  %v2525 = vld [vmem:[%s11 + $0x60] sm:$0xf]
  %v2526 = vld [vmem:[%s11 + $0x64] sm:$0xf]
  %v2527 = vld [vmem:[%s11 + $0x68] sm:$0xf]
  %v2528 = vld [vmem:[%s11 + $0x6c] sm:$0xf]
  %v2529 = vld [vmem:[%s11 + $0x70] sm:$0xf]
  %v2530 = vld [vmem:[%s11 + $0x74] sm:$0xf]
  %v2531 = vld [vmem:[%s11 + $0x78] sm:$0xf]
  %v2532 = vld [vmem:[%s11 + $0x7c] sm:$0xf]
  %v2533 = vld [vmem:[%s12] sm:$0x1]
  %v2535 = vlaneseq
  %v2536 = vshrl.u32 %v2535, 7
  %v2537 = vsub.s32 0, %v2536
  %v2538 = vrot.slane %v2533, %v2537
  %v2572 = vunpack.c.l.b16 %v2501
  %v2573 = vunpack.c.l.b16 %v2502
  %v2574 = vunpack.c.l.b16 %v2503
  %v2575 = vunpack.c.l.b16 %v2504
  %v2576 = vunpack.c.l.b16 %v2505
  %v2577 = vunpack.c.l.b16 %v2506
  %v2578 = vunpack.c.l.b16 %v2507
  %v2579 = vunpack.c.l.b16 %v2508
  %v2580 = vunpack.c.l.b16 %v2509
  %v2581 = vunpack.c.l.b16 %v2510
  %v2582 = vunpack.c.l.b16 %v2511
  %v2583 = vunpack.c.l.b16 %v2512
  %v2584 = vunpack.c.l.b16 %v2513
  %v2585 = vunpack.c.l.b16 %v2514
  %v2586 = vunpack.c.l.b16 %v2515
  %v2587 = vunpack.c.l.b16 %v2516
  %v2588 = vunpack.c.l.b16 %v2517
  %v2589 = vunpack.c.l.b16 %v2518
  %v2590 = vunpack.c.l.b16 %v2519
  %v2591 = vunpack.c.l.b16 %v2520
  %v2592 = vunpack.c.l.b16 %v2521
  %v2593 = vunpack.c.l.b16 %v2522
  %v2594 = vunpack.c.l.b16 %v2523
  %v2595 = vunpack.c.l.b16 %v2524
  %v2596 = vunpack.c.l.b16 %v2525
  %v2597 = vunpack.c.l.b16 %v2526
  %v2598 = vunpack.c.l.b16 %v2527
  %v2599 = vunpack.c.l.b16 %v2528
  %v2600 = vunpack.c.l.b16 %v2529
  %v2601 = vunpack.c.l.b16 %v2530
  %v2602 = vunpack.c.l.b16 %v2531
  %v2603 = vunpack.c.l.b16 %v2532
  %v2604 = vpack.c.b16 %v2573, %v2572
  %v2605 = vpack.c.b16 %v2575, %v2574
  %v2606 = vpack.c.b16 %v2577, %v2576
  %v2607 = vpack.c.b16 %v2579, %v2578
  %v2608 = vpack.c.b16 %v2581, %v2580
  %v2609 = vpack.c.b16 %v2583, %v2582
  %v2610 = vpack.c.b16 %v2585, %v2584
  %v2611 = vpack.c.b16 %v2587, %v2586
  %v2612 = vpack.c.b16 %v2589, %v2588
  %v2613 = vpack.c.b16 %v2591, %v2590
  %v2614 = vpack.c.b16 %v2593, %v2592
  %v2615 = vpack.c.b16 %v2595, %v2594
  %v2616 = vpack.c.b16 %v2597, %v2596
  %v2617 = vpack.c.b16 %v2599, %v2598
  %v2618 = vpack.c.b16 %v2601, %v2600
  %v2619 = vpack.c.b16 %v2603, %v2602
  %2636 = vmatprep.subr.bf16.mxu0 0
  %2637 = vmatpush1.bf16.msra.mxu0 %v2604
  %2638 = vmatprep.subr.bf16.mxu0 0
  %2639 = vmatpush1.bf16.msra.mxu0 %v2605
  %2640 = vmatprep.subr.bf16.mxu0 0
  %2641 = vmatpush1.bf16.msra.mxu0 %v2606
  %2642 = vmatprep.subr.bf16.mxu0 0
  %2643 = vmatpush1.bf16.msra.mxu0 %v2607
  %2644 = vmatprep.subr.bf16.mxu0 0
  %2645 = vmatpush1.bf16.msra.mxu0 %v2608
  %2646 = vmatprep.subr.bf16.mxu0 0
  %2647 = vmatpush1.bf16.msra.mxu0 %v2609
  %2648 = vmatprep.subr.bf16.mxu0 0
  %2649 = vmatpush1.bf16.msra.mxu0 %v2610
  %2650 = vmatprep.subr.bf16.mxu0 0
  %2651 = vmatpush1.bf16.msra.mxu0 %v2611
  %2652 = vmatprep.subr.bf16.mxu0 0
  %2653 = vmatpush1.bf16.msra.mxu0 %v2612
  %2654 = vmatprep.subr.bf16.mxu0 0
  %2655 = vmatpush1.bf16.msra.mxu0 %v2613
  %2656 = vmatprep.subr.bf16.mxu0 0
  %2657 = vmatpush1.bf16.msra.mxu0 %v2614
  %2658 = vmatprep.subr.bf16.mxu0 0
  %2659 = vmatpush1.bf16.msra.mxu0 %v2615
  %2660 = vmatprep.subr.bf16.mxu0 0
  %2661 = vmatpush1.bf16.msra.mxu0 %v2616
  %2662 = vmatprep.subr.bf16.mxu0 0
  %2663 = vmatpush1.bf16.msra.mxu0 %v2617
  %2664 = vmatprep.subr.bf16.mxu0 0
  %2665 = vmatpush1.bf16.msra.mxu0 %v2618
  %2666 = vmatprep.subr.bf16.mxu0 0
  %2667 = vmatpush1.bf16.msra.mxu0 %v2619
  %2668 = vmatprep.mubr.bf16.mxu0 %v2500
  %2669 = vmatmul.mubr.bf16.gmra.mrb[0].mxu0 %v2499
  %v2670 = vpop.f32.mrb[0].mxu0
  %v2671 = vadd.f32 %v2538, %v2670
  %v2672 = vpop.f32.mrb[0].mxu0
  %v2673 = vpop.f32.mrb[0].mxu0
  %v2674 = vpop.f32.mrb[0].mxu0
  %2675 = vdwg.mxu0
  %v2676 = vld [vmem:[%s2] sm:$0xff]
  %v2677 = vld [vmem:[%s2 + $0x8] sm:$0xff]
  %v2678 = vmul.f32 %v2377, %v2676
  %v2679 = vmul.f32 %v2382, %v2676
  %2681 = vrot.lane.b32.xlu0 %v2679, 96
  %v2682 = vpop.permute.xlu0 %2681
  %v2684 = vadd.f32 %v2678, %v2682
  %v2685 = vmul.f32 %v2388, %v2676
  %2687 = vrot.lane.b32.xlu0 %v2685, 64
  %v2688 = vpop.permute.xlu0 %2687
  %v2690 = vadd.f32 %v2684, %v2688
  %v2691 = vmul.f32 %v2394, %v2676
  %2693 = vrot.lane.b32.xlu0 %v2691, 32
  %v2694 = vpop.permute.xlu0 %2693
  %v2696 = vadd.f32 %v2690, %v2694
  %v2697 = vmul.f32 %v2400, %v2677
  %v2698 = vadd.f32 %v2696, %v2697
  %v2699 = vmul.f32 %v2406, %v2677
  %2701 = vrot.lane.b32.xlu0 %v2699, 96
  %v2702 = vpop.permute.xlu0 %2701
  %v2704 = vadd.f32 %v2698, %v2702
  %v2705 = vmul.f32 %v2412, %v2677
  %2707 = vrot.lane.b32.xlu0 %v2705, 64
  %v2708 = vpop.permute.xlu0 %2707
  %v2710 = vadd.f32 %v2704, %v2708
  %v2711 = vmul.f32 %v2418, %v2677
  %2713 = vrot.lane.b32.xlu0 %v2711, 32
  %v2714 = vpop.permute.xlu0 %2713
  %v2716 = vadd.f32 %v2710, %v2714
  %v2717 = vpack.c.bf16 %v2671, %v2671
  %v2718 = vld [vmem:[%s13] sm:$0xf]
  %v2719 = vld [vmem:[%s13 + $0x4] sm:$0xf]
  %v2720 = vld [vmem:[%s13 + $0x8] sm:$0xf]
  %v2721 = vld [vmem:[%s13 + $0xc] sm:$0xf]
  %v2726 = vunpack.c.l.b16 %v2718
  %v2727 = vunpack.c.l.b16 %v2719
  %v2728 = vunpack.c.l.b16 %v2720
  %v2729 = vunpack.c.l.b16 %v2721
  %v2730 = vpack.c.b16 %v2727, %v2726
  %v2731 = vpack.c.b16 %v2729, %v2728
  %v2735 = vsel %vm136, %v2717, 0
  %2737 = vmatprep.subr.bf16.mxu0 0
  %2738 = vmatpush1.bf16.msra.mxu0 %v2730
  %2739 = vmatprep.subr.bf16.mxu0 0
  %2740 = vmatpush1.bf16.msra.mxu0 %v2731
  %2741 = vmatprep.subr.bf16.mxu0 0
  %2742 = vmatpush1.bf16.msra.mxu0 0
  %2743 = vmatprep.subr.bf16.mxu0 0
  %2744 = vmatpush1.bf16.msra.mxu0 0
  %2745 = vmatprep.subr.bf16.mxu0 0
  %2746 = vmatpush1.bf16.msra.mxu0 0
  %2747 = vmatprep.subr.bf16.mxu0 0
  %2748 = vmatpush1.bf16.msra.mxu0 0
  %2749 = vmatprep.subr.bf16.mxu0 0
  %2750 = vmatpush1.bf16.msra.mxu0 0
  %2751 = vmatprep.subr.bf16.mxu0 0
  %2752 = vmatpush1.bf16.msra.mxu0 0
  %2753 = vmatprep.subr.bf16.mxu0 0
  %2754 = vmatpush1.bf16.msra.mxu0 0
  %2755 = vmatprep.subr.bf16.mxu0 0
  %2756 = vmatpush1.bf16.msra.mxu0 0
  %2757 = vmatprep.subr.bf16.mxu0 0
  %2758 = vmatpush1.bf16.msra.mxu0 0
  %2759 = vmatprep.subr.bf16.mxu0 0
  %2760 = vmatpush1.bf16.msra.mxu0 0
  %2761 = vmatprep.subr.bf16.mxu0 0
  %2762 = vmatpush1.bf16.msra.mxu0 0
  %2763 = vmatprep.subr.bf16.mxu0 0
  %2764 = vmatpush1.bf16.msra.mxu0 0
  %2765 = vmatprep.subr.bf16.mxu0 0
  %2766 = vmatpush1.bf16.msra.mxu0 0
  %2767 = vmatprep.subr.bf16.mxu0 0
  %2768 = vmatpush1.bf16.msra.mxu0 0
  %2769 = vmatprep.mubr.bf16.mxu0 0
  %2770 = vmatmul.mubr.bf16.gmra.mrb[0].mxu0 %v2735
  %v2771 = vpop.f32.mrb[0].mxu0
  %v2772 = vadd.f32 %v2716, %v2771
  %v2773 = vpop.f32.mrb[0].mxu0
  %v2774 = vpop.f32.mrb[0].mxu0
  %v2775 = vpop.f32.mrb[0].mxu0
  %2776 = vdwg.mxu0
  %v2777 = vld [vmem:[%s14] sm:$0x1]
  %v2779 = vlaneseq
  %v2780 = vshrl.u32 %v2779, 7
  %v2781 = vsub.s32 0, %v2780
  %v2782 = vrot.slane %v2777, %v2781
  %v2784 = vadd.f32 %v2772, %v2782
  %v2785 = vpack.c.bf16 %v2784, %v2784
  %v2786 = vld [vmem:[%s15] sm:$0xf]
  %v2787 = vld [vmem:[%s15 + $0x4] sm:$0xf]
  %v2788 = vld [vmem:[%s15 + $0x8] sm:$0xf]
  %v2789 = vld [vmem:[%s15 + $0xc] sm:$0xf]
  %v2790 = vld [vmem:[#allocation3] sm:$0x1]
  %v2792 = vlaneseq
  %v2793 = vshrl.u32 %v2792, 7
  %v2794 = vsub.s32 0, %v2793
  %v2795 = vrot.slane %v2790, %v2794
  %v2801 = vunpack.c.l.b16 %v2786
  %v2802 = vunpack.c.l.b16 %v2787
  %v2803 = vunpack.c.l.b16 %v2788
  %v2804 = vunpack.c.l.b16 %v2789
  %v2805 = vpack.c.b16 %v2802, %v2801
  %v2806 = vpack.c.b16 %v2804, %v2803
  %v2810 = vsel %vm136, %v2785, 0
  %2812 = vmatprep.subr.bf16.mxu0 0
  %2813 = vmatpush1.bf16.msra.mxu0 %v2805
  %2814 = vmatprep.subr.bf16.mxu0 0
  %2815 = vmatpush1.bf16.msra.mxu0 %v2806
  %2816 = vmatprep.subr.bf16.mxu0 0
  %2817 = vmatpush1.bf16.msra.mxu0 0
  %2818 = vmatprep.subr.bf16.mxu0 0
  %2819 = vmatpush1.bf16.msra.mxu0 0
  %2820 = vmatprep.subr.bf16.mxu0 0
  %2821 = vmatpush1.bf16.msra.mxu0 0
  %2822 = vmatprep.subr.bf16.mxu0 0
  %2823 = vmatpush1.bf16.msra.mxu0 0
  %2824 = vmatprep.subr.bf16.mxu0 0
  %2825 = vmatpush1.bf16.msra.mxu0 0
  %2826 = vmatprep.subr.bf16.mxu0 0
  %2827 = vmatpush1.bf16.msra.mxu0 0
  %2828 = vmatprep.subr.bf16.mxu0 0
  %2829 = vmatpush1.bf16.msra.mxu0 0
  %2830 = vmatprep.subr.bf16.mxu0 0
  %2831 = vmatpush1.bf16.msra.mxu0 0
  %2832 = vmatprep.subr.bf16.mxu0 0
  %2833 = vmatpush1.bf16.msra.mxu0 0
  %2834 = vmatprep.subr.bf16.mxu0 0
  %2835 = vmatpush1.bf16.msra.mxu0 0
  %2836 = vmatprep.subr.bf16.mxu0 0
  %2837 = vmatpush1.bf16.msra.mxu0 0
  %2838 = vmatprep.subr.bf16.mxu0 0
  %2839 = vmatpush1.bf16.msra.mxu0 0
  %2840 = vmatprep.subr.bf16.mxu0 0
  %2841 = vmatpush1.bf16.msra.mxu0 0
  %2842 = vmatprep.subr.bf16.mxu0 0
  %2843 = vmatpush1.bf16.msra.mxu0 0
  %2844 = vmatprep.mubr.bf16.mxu0 0
  %2845 = vmatmul.mubr.bf16.gmra.mrb[0].mxu0 %v2810
  %v2846 = vpop.f32.mrb[0].mxu0
  %v2847 = vadd.f32 %v2795, %v2846
  %v2848 = vpop.f32.mrb[0].mxu0
  %v2849 = vpop.f32.mrb[0].mxu0
  %v2850 = vpop.f32.mrb[0].mxu0
  %2851 = vdwg.mxu0
  %vm2852 = vcmask 7168
  %2853 = vst.msk [vmem:[%s17] sm:$0xff] %vm2852, %v2847
  // Predicated region
  $region70: #{tpu_custom_call.1} parent=0 // pred_check
    _
  $region71: #{tpu_custom_call.1} parent=0 // pred_check_branch
    %2855 = sbr.rel (0) target = $region73
  $region72: #{tpu_custom_call.1} parent=0 // pred_region
    _
  $region73: #{tpu_custom_call.1} parent=0 // pred_fallthru
    _
  // Predicated region
  $region74: #{tpu_custom_call.1} parent=0 // pred_check
    _
  $region75: #{tpu_custom_call.1} parent=0 // pred_check_branch
    %2857 = sbr.rel (0) target = $region77
  $region76: #{tpu_custom_call.1} parent=0 // pred_region
    _
  $region77: #{tpu_custom_call.1} parent=0 // pred_fallthru
    _

</llo_original>
